<compile_context>
chip_gen: v7x
topology: tpu7x:2x2x1
jax: 0.10.0
libtpu: 0.0.40
codegen_flags: <defaults>
</compile_context>

<pallas_src>
import math

import jax
import jax.numpy as jnp
from jax.experimental import pallas as pl
from jax.experimental.pallas import tpu as pltpu


_VMEM = pl.BlockSpec(memory_space=pltpu.MemorySpace.VMEM)
_SMEM = pl.BlockSpec(memory_space=pltpu.MemorySpace.SMEM)


# ----------------------------- Pallas kernels ------------------------------ #

def _conv_prelu_kernel(a_ref, w_ref, p_ref, b_ref, o_ref):
    # o = PReLU(W @ patches + b); bf16 operands -> f32 accumulate on the MXU.
    y = jnp.dot(w_ref[...], p_ref[...], preferred_element_type=jnp.float32)
    y = y + b_ref[...]                              # (OC, 1) broadcast over lanes
    alpha = a_ref[0]                                # scalar PReLU slope from SMEM
    o_ref[...] = jnp.where(y >= 0.0, y, alpha * y)


def _avgpool_kernel(x_ref, inv_ref, o_ref):
    # x: (2, 2, C*N, OH*OW) = the four 2x2 taps; multiply by reciprocal counts.
    s = x_ref[0, 0] + x_ref[0, 1] + x_ref[1, 0] + x_ref[1, 1]
    o_ref[...] = s * inv_ref[...]                   # (1, OH*OW) broadcast over rows


def _mlp_kernel(a_ref, x_ref, w1_ref, b1_ref, w2_ref, b2_ref, w3_ref, b3_ref, o_ref):
    # ip1 -> PReLU -> ip2 -> PReLU -> ip3, fused in one call (batch is tiny).
    h = jnp.dot(x_ref[...], w1_ref[...], preferred_element_type=jnp.float32) + b1_ref[...]
    h = jnp.where(h >= 0.0, h, a_ref[0] * h)
    h = jnp.dot(h.astype(jnp.bfloat16), w2_ref[...],
                preferred_element_type=jnp.float32) + b2_ref[...]
    h = jnp.where(h >= 0.0, h, a_ref[1] * h)
    o_ref[...] = jnp.dot(h.astype(jnp.bfloat16), w3_ref[...],
                         preferred_element_type=jnp.float32) + b3_ref[...]


# ------------------------------ Pallas wrappers ----------------------------- #

def _round_up(x, m):
    return (x + m - 1) // m * m


def _m_tiling(m):
    """Pad M (the lane axis) to 128 and pick a tile size that divides it."""
    if m <= 1024:
        mp = _round_up(m, 128)
        return mp, mp                      # single tile
    mp = _round_up(m, 512)
    return mp, (1024 if mp % 1024 == 0 else 512)


def conv_matmul_prelu(wm, patches, b, alpha, tm):
    """wm: (OC, Kp) bf16; patches: (Kp, Mp) bf16; b: (OC,) f32 -> (OC, Mp) f32."""
    oc, kp = wm.shape
    mp = patches.shape[1]
    b2 = jnp.asarray(b, jnp.float32).reshape(oc, 1)
    a1 = jnp.asarray(alpha, jnp.float32).reshape(1)
    return pl.pallas_call(
        _conv_prelu_kernel,
        out_shape=jax.ShapeDtypeStruct((oc, mp), jnp.float32),
        grid=(mp // tm,),
        in_specs=[
            _SMEM,                                        # alpha scalar
            pl.BlockSpec((oc, kp), lambda i: (0, 0)),     # full weight, resident
            pl.BlockSpec((kp, tm), lambda i: (0, i)),     # M-tile of patches
            pl.BlockSpec((oc, 1), lambda i: (0, 0)),      # bias column
        ],
        out_specs=pl.BlockSpec((oc, tm), lambda i: (0, i)),
        compiler_params=pltpu.CompilerParams(dimension_semantics=("parallel",)),
    )(a1, wm, patches, b2)


def conv2d_prelu(x, w, b, alpha, stride=1, pad=0):
    """x: (C, N, H, W) f32 (CNHW); w: (OC, C, KH, KW). Returns CNHW f32."""
    if pad:
        x = jnp.pad(x, ((0, 0), (0, 0), (pad, pad), (pad, pad)))
    c, n, h, wd = x.shape
    oc, ic, kh, kw = w.shape
    oh = (h - kh) // stride + 1
    ow = (wd - kw) // stride + 1

    # im2col in transposed (K, M) orientation; M = (n, oh, ow) flattened.
    cols = []
    for i in range(kh):
        for j in range(kw):
            cols.append(x[:, :, i:i + stride * (oh - 1) + 1:stride,
                          j:j + stride * (ow - 1) + 1:stride])
    k = c * kh * kw
    m = n * oh * ow
    patches = jnp.stack(cols, axis=1).reshape(k, m)

    kp = _round_up(k, 8)
    mp, tm = _m_tiling(m)
    patches = jnp.pad(patches, ((0, kp - k), (0, mp - m))).astype(jnp.bfloat16)
    wm = jnp.pad(w.reshape(oc, k), ((0, 0), (0, kp - k))).astype(jnp.bfloat16)

    y = conv_matmul_prelu(wm, patches, b, alpha, tm)          # (OC, Mp) f32
    return y[:, :m].reshape(oc, n, oh, ow)                    # already CNHW


def avg_pool_2x2_ceil(x):
    """nn.AvgPool2d(2, 2, ceil_mode=True) on a CNHW activation."""
    c, n, h, w = x.shape
    oh, ow = -(-h // 2), -(-w // 2)
    xp = jnp.pad(x, ((0, 0), (0, 0), (0, 2 * oh - h), (0, 2 * ow - w)))
    # One swizzle copy: (C,N,2OH,2OW) -> (2, 2, C*N, OH*OW); leading dims = window taps.
    taps = (xp.reshape(c * n, oh, 2, ow, 2)
              .transpose(2, 4, 0, 1, 3)
              .reshape(2, 2, c * n, oh * ow))
    # Reciprocal of the clipped-window element count (PyTorch ceil_mode divisor).
    ch = jnp.minimum((jnp.arange(oh) + 1) * 2, h) - jnp.arange(oh) * 2
    cw = jnp.minimum((jnp.arange(ow) + 1) * 2, w) - jnp.arange(ow) * 2
    inv = (1.0 / (ch[:, None] * cw[None, :]).astype(jnp.float32)).reshape(1, oh * ow)

    y = pl.pallas_call(
        _avgpool_kernel,
        out_shape=jax.ShapeDtypeStruct((c * n, oh * ow), jnp.float32),
        in_specs=[_VMEM, _VMEM],
        out_specs=_VMEM,
    )(taps, inv)
    return y.reshape(c, n, oh, ow)


def mlp_head(x, ip1, ip2, ip3, a1, a2):
    """Fused ip1 -> PReLU -> ip2 -> PReLU -> ip3. x: (N, 1280) f32 -> (N, 42) f32."""
    n = x.shape[0]
    (w1, b1), (w2, b2), (w3, b3) = ip1, ip2, ip3
    alphas = jnp.stack([jnp.asarray(a1, jnp.float32), jnp.asarray(a2, jnp.float32)])
    return pl.pallas_call(
        _mlp_kernel,
        out_shape=jax.ShapeDtypeStruct((n, w3.shape[0]), jnp.float32),
        in_specs=[_SMEM] + [_VMEM] * 7,
        out_specs=_VMEM,
    )(alphas,
      x.astype(jnp.bfloat16),
      w1.T.astype(jnp.bfloat16), b1.reshape(1, -1).astype(jnp.float32),
      w2.T.astype(jnp.bfloat16), b2.reshape(1, -1).astype(jnp.float32),
      w3.T.astype(jnp.bfloat16), b3.reshape(1, -1).astype(jnp.float32))


# ------------------------------- Model glue --------------------------------- #

def init_params(key):
    def conv_init(k, oc, ic, kh, kw):
        kw_, kb_ = jax.random.split(k)
        fan_in = ic * kh * kw
        w = jax.random.normal(kw_, (oc, ic, kh, kw), jnp.float32) / math.sqrt(fan_in)
        b = 0.01 * jax.random.normal(kb_, (oc,), jnp.float32)
        return w, b

    def lin_init(k, out_f, in_f):
        kw_, kb_ = jax.random.split(k)
        w = jax.random.normal(kw_, (out_f, in_f), jnp.float32) / math.sqrt(in_f)
        b = 0.01 * jax.random.normal(kb_, (out_f,), jnp.float32)
        return w, b

    keys = jax.random.split(key, 10)
    return {
        "conv1_1": conv_init(keys[0], 8, 1, 5, 5),
        "conv2_1": conv_init(keys[1], 16, 8, 3, 3),
        "conv2_2": conv_init(keys[2], 16, 16, 3, 3),
        "conv3_1": conv_init(keys[3], 24, 16, 3, 3),
        "conv3_2": conv_init(keys[4], 24, 24, 3, 3),
        "conv4_1": conv_init(keys[5], 40, 24, 3, 3),
        "conv4_2": conv_init(keys[6], 80, 40, 3, 3),
        "ip1": lin_init(keys[7], 128, 4 * 4 * 80),
        "ip2": lin_init(keys[8], 128, 128),
        "ip3": lin_init(keys[9], 42, 128),
        # nn.PReLU() default: a single slope initialized to 0.25
        "alpha": {k: jnp.float32(0.25) for k in
                  ["conv1_1", "conv2_1", "conv2_2", "conv3_1", "conv3_2",
                   "conv4_1", "conv4_2", "ip1", "ip2"]},
    }


def net_forward(p, x):
    a = p["alpha"]
    x = jnp.transpose(x, (1, 0, 2, 3))                 # NCHW -> CNHW (once, at entry)
    x = conv2d_prelu(x, *p["conv1_1"], a["conv1_1"], stride=2)
    x = avg_pool_2x2_ceil(x)
    x = conv2d_prelu(x, *p["conv2_1"], a["conv2_1"])
    x = conv2d_prelu(x, *p["conv2_2"], a["conv2_2"])
    x = avg_pool_2x2_ceil(x)
    # NOTE: the reference module applies relu_conv3_2's PReLU to conv3_1's output too.
    x = conv2d_prelu(x, *p["conv3_1"], a["conv3_2"])
    x = conv2d_prelu(x, *p["conv3_2"], a["conv3_2"])
    x = avg_pool_2x2_ceil(x)
    x = conv2d_prelu(x, *p["conv4_1"], a["conv4_1"], pad=1)
    x = conv2d_prelu(x, *p["conv4_2"], a["conv4_2"], pad=1)
    n = x.shape[1]
    # CNHW (80, N, 4, 4) -> (N, 80*4*4) matching PyTorch's NCHW .view(-1, 4*4*80)
    feat = jnp.transpose(x, (1, 0, 2, 3)).reshape(n, 4 * 4 * 80)
    return mlp_head(feat, p["ip1"], p["ip2"], p["ip3"], a["ip1"], a["ip2"])


if __name__ == "__main__":
    params = init_params(jax.random.PRNGKey(42))
    # Input spatial size 112x112 is forced by the flatten to 4*4*80 features.
    x = jax.random.normal(jax.random.PRNGKey(0), (2, 1, 112, 112), jnp.float32)
    fwd = jax.jit(net_forward)
    out = jax.block_until_ready(fwd(params, x))
    assert out.shape == (2, 42) and out.dtype == jnp.float32, (out.shape, out.dtype)
    assert bool(jnp.all(jnp.isfinite(out)))
    print("KERNEL_OK")
</pallas_src>

<mosaic_0001>
module attributes {stable_mosaic.version = 11 : i64} {
  func.func @_conv_prelu_kernel(%arg0: i32, %arg1: memref<1xf32, #tpu.memory_space<smem>>, %arg2: memref<8x32xbf16, #tpu.memory_space<vmem>>, %arg3: memref<32x1024xbf16, #tpu.memory_space<vmem>>, %arg4: memref<8x1xf32, #tpu.memory_space<vmem>>, %arg5: memref<8x1024xf32, #tpu.memory_space<vmem>>) attributes {dimension_semantics = [#tpu.dimension_semantics<parallel>], iteration_bounds = array<i64: 6>, scalar_prefetch = 0 : i64, scratch_operands = 0 : i64, tpu.core_type = #tpu.core_type<tc>, window_params = [{transform_indices = @transform_0, window_bounds = array<i64: 1>}, {pipeline_mode = #tpu.pipeline_mode<synchronous>, transform_indices = @transform_1, window_bounds = array<i64: 8, 32>}, {transform_indices = @transform_2, window_bounds = array<i64: 32, 1024>}, {pipeline_mode = #tpu.pipeline_mode<synchronous>, transform_indices = @transform_3, window_bounds = array<i64: 8, 1>}, {transform_indices = @transform_4, window_bounds = array<i64: 8, 1024>}]} {
    %c0 = arith.constant 0 : index
    %c0_0 = arith.constant 0 : index
    %0 = vector.load %arg2[%c0, %c0_0] : memref<8x32xbf16, #tpu.memory_space<vmem>>, vector<8x32xbf16>
    %c0_1 = arith.constant 0 : index
    %c0_2 = arith.constant 0 : index
    %1 = vector.load %arg3[%c0_1, %c0_2] : memref<32x1024xbf16, #tpu.memory_space<vmem>>, vector<32x1024xbf16>
    %cst = arith.constant dense<0.000000e+00> : vector<8x1024xf32>
    %2 = tpu.matmul %0, %1, %cst {dimension_numbers = #tpu.dot_dimension_numbers<[1], [0], [0], [1], [0, 0, 1, 1], [], []>} : vector<8x32xbf16>, vector<32x1024xbf16>, vector<8x1024xf32> -> vector<8x1024xf32>
    %c0_3 = arith.constant 0 : index
    %c0_4 = arith.constant 0 : index
    %3 = vector.load %arg4[%c0_3, %c0_4] : memref<8x1xf32, #tpu.memory_space<vmem>>, vector<8x1xf32>
    %4 = vector.broadcast %3 : vector<8x1xf32> to vector<8x1024xf32>
    %5 = arith.addf %2, %4 : vector<8x1024xf32>
    %c0_5 = arith.constant 0 : index
    %6 = memref.load %arg1[%c0_5] : memref<1xf32, #tpu.memory_space<smem>>
    %cst_6 = arith.constant 0.000000e+00 : f32
    %7 = vector.broadcast %cst_6 : f32 to vector<8x1024xf32>
    %8 = arith.cmpf oge, %5, %7 : vector<8x1024xf32>
    %9 = vector.broadcast %6 : f32 to vector<8x1024xf32>
    %10 = arith.mulf %9, %5 : vector<8x1024xf32>
    %11 = arith.select %8, %5, %10 : vector<8x1024xi1>, vector<8x1024xf32>
    %c0_7 = arith.constant 0 : index
    %c0_8 = arith.constant 0 : index
    %12 = vector.load %arg5[%c0_7, %c0_8] : memref<8x1024xf32, #tpu.memory_space<vmem>>, vector<8x1024xf32>
    tpu.vector_store %arg5[%c0_7, %c0_8], %11 {strides = array<i32>} : memref<8x1024xf32, #tpu.memory_space<vmem>>, vector<8x1024xf32>,
    return
  }
  func.func @transform_0(%arg0: i32) -> i32 {
    %c0_i32 = arith.constant 0 : i32
    %c0_i32_0 = arith.constant 0 : i32
    return %c0_i32 : i32
  }
  func.func @transform_1(%arg0: i32) -> (i32, i32) {
    %c0_i32 = arith.constant 0 : i32
    %c0_i32_0 = arith.constant 0 : i32
    %c0_i32_1 = arith.constant 0 : i32
    return %c0_i32, %c0_i32_0 : i32, i32
  }
  func.func @transform_2(%arg0: i32) -> (i32, i32) {
    %c0_i32 = arith.constant 0 : i32
    %c0_i32_0 = arith.constant 0 : i32
    return %c0_i32, %arg0 : i32, i32
  }
  func.func @transform_3(%arg0: i32) -> (i32, i32) {
    %c0_i32 = arith.constant 0 : i32
    %c0_i32_0 = arith.constant 0 : i32
    %c0_i32_1 = arith.constant 0 : i32
    return %c0_i32, %c0_i32_0 : i32, i32
  }
  func.func @transform_4(%arg0: i32) -> (i32, i32) {
    %c0_i32 = arith.constant 0 : i32
    %c0_i32_0 = arith.constant 0 : i32
    return %c0_i32, %arg0 : i32, i32
  }
}

module attributes {stable_mosaic.version = 11 : i64} {
  func.func @_avgpool_kernel(%arg0: memref<2x2x16x729xf32, #tpu.memory_space<vmem>>, %arg1: memref<1x729xf32, #tpu.memory_space<vmem>>, %arg2: memref<16x729xf32, #tpu.memory_space<vmem>>) attributes {dimension_semantics = [], scalar_prefetch = 0 : i64, scratch_operands = 0 : i64, tpu.core_type = #tpu.core_type<tc>} {
    %c0 = arith.constant 0 : index
    %c0_0 = arith.constant 0 : index
    %c0_1 = arith.constant 0 : index
    %c0_2 = arith.constant 0 : index
    %0 = vector.load %arg0[%c0, %c0_0, %c0_1, %c0_2] : memref<2x2x16x729xf32, #tpu.memory_space<vmem>>, vector<1x1x16x729xf32>
    %1 = vector.shape_cast %0 : vector<1x1x16x729xf32> to vector<16x729xf32>
    %c0_3 = arith.constant 0 : index
    %c1 = arith.constant 1 : index
    %c0_4 = arith.constant 0 : index
    %c0_5 = arith.constant 0 : index
    %2 = vector.load %arg0[%c0_3, %c1, %c0_4, %c0_5] : memref<2x2x16x729xf32, #tpu.memory_space<vmem>>, vector<1x1x16x729xf32>
    %3 = vector.shape_cast %2 : vector<1x1x16x729xf32> to vector<16x729xf32>
    %4 = arith.addf %1, %3 : vector<16x729xf32>
    %c1_6 = arith.constant 1 : index
    %c0_7 = arith.constant 0 : index
    %c0_8 = arith.constant 0 : index
    %c0_9 = arith.constant 0 : index
    %5 = vector.load %arg0[%c1_6, %c0_7, %c0_8, %c0_9] : memref<2x2x16x729xf32, #tpu.memory_space<vmem>>, vector<1x1x16x729xf32>
    %6 = vector.shape_cast %5 : vector<1x1x16x729xf32> to vector<16x729xf32>
    %7 = arith.addf %4, %6 : vector<16x729xf32>
    %c1_10 = arith.constant 1 : index
    %c1_11 = arith.constant 1 : index
    %c0_12 = arith.constant 0 : index
    %c0_13 = arith.constant 0 : index
    %8 = vector.load %arg0[%c1_10, %c1_11, %c0_12, %c0_13] : memref<2x2x16x729xf32, #tpu.memory_space<vmem>>, vector<1x1x16x729xf32>
    %9 = vector.shape_cast %8 : vector<1x1x16x729xf32> to vector<16x729xf32>
    %10 = arith.addf %7, %9 : vector<16x729xf32>
    %c0_14 = arith.constant 0 : index
    %c0_15 = arith.constant 0 : index
    %11 = vector.load %arg1[%c0_14, %c0_15] : memref<1x729xf32, #tpu.memory_space<vmem>>, vector<1x729xf32>
    %12 = vector.broadcast %11 : vector<1x729xf32> to vector<16x729xf32>
    %13 = arith.mulf %10, %12 : vector<16x729xf32>
    %c0_16 = arith.constant 0 : index
    %c0_17 = arith.constant 0 : index
    %14 = vector.load %arg2[%c0_16, %c0_17] : memref<16x729xf32, #tpu.memory_space<vmem>>, vector<16x729xf32>
    tpu.vector_store %arg2[%c0_16, %c0_17], %13 {strides = array<i32>} : memref<16x729xf32, #tpu.memory_space<vmem>>, vector<16x729xf32>,
    return
  }
}

module attributes {stable_mosaic.version = 11 : i64} {
  func.func @_conv_prelu_kernel(%arg0: i32, %arg1: memref<1xf32, #tpu.memory_space<smem>>, %arg2: memref<16x72xbf16, #tpu.memory_space<vmem>>, %arg3: memref<72x512xbf16, #tpu.memory_space<vmem>>, %arg4: memref<16x1xf32, #tpu.memory_space<vmem>>, %arg5: memref<16x512xf32, #tpu.memory_space<vmem>>) attributes {dimension_semantics = [#tpu.dimension_semantics<parallel>], iteration_bounds = array<i64: 3>, scalar_prefetch = 0 : i64, scratch_operands = 0 : i64, tpu.core_type = #tpu.core_type<tc>, window_params = [{transform_indices = @transform_0, window_bounds = array<i64: 1>}, {pipeline_mode = #tpu.pipeline_mode<synchronous>, transform_indices = @transform_1, window_bounds = array<i64: 16, 72>}, {transform_indices = @transform_2, window_bounds = array<i64: 72, 512>}, {pipeline_mode = #tpu.pipeline_mode<synchronous>, transform_indices = @transform_3, window_bounds = array<i64: 16, 1>}, {transform_indices = @transform_4, window_bounds = array<i64: 16, 512>}]} {
    %c0 = arith.constant 0 : index
    %c0_0 = arith.constant 0 : index
    %0 = vector.load %arg2[%c0, %c0_0] : memref<16x72xbf16, #tpu.memory_space<vmem>>, vector<16x72xbf16>
    %c0_1 = arith.constant 0 : index
    %c0_2 = arith.constant 0 : index
    %1 = vector.load %arg3[%c0_1, %c0_2] : memref<72x512xbf16, #tpu.memory_space<vmem>>, vector<72x512xbf16>
    %cst = arith.constant dense<0.000000e+00> : vector<16x512xf32>
    %2 = tpu.matmul %0, %1, %cst {dimension_numbers = #tpu.dot_dimension_numbers<[1], [0], [0], [1], [0, 0, 1, 1], [], []>} : vector<16x72xbf16>, vector<72x512xbf16>, vector<16x512xf32> -> vector<16x512xf32>
    %c0_3 = arith.constant 0 : index
    %c0_4 = arith.constant 0 : index
    %3 = vector.load %arg4[%c0_3, %c0_4] : memref<16x1xf32, #tpu.memory_space<vmem>>, vector<16x1xf32>
    %4 = vector.broadcast %3 : vector<16x1xf32> to vector<16x512xf32>
    %5 = arith.addf %2, %4 : vector<16x512xf32>
    %c0_5 = arith.constant 0 : index
    %6 = memref.load %arg1[%c0_5] : memref<1xf32, #tpu.memory_space<smem>>
    %cst_6 = arith.constant 0.000000e+00 : f32
    %7 = vector.broadcast %cst_6 : f32 to vector<16x512xf32>
    %8 = arith.cmpf oge, %5, %7 : vector<16x512xf32>
    %9 = vector.broadcast %6 : f32 to vector<16x512xf32>
    %10 = arith.mulf %9, %5 : vector<16x512xf32>
    %11 = arith.select %8, %5, %10 : vector<16x512xi1>, vector<16x512xf32>
    %c0_7 = arith.constant 0 : index
    %c0_8 = arith.constant 0 : index
    %12 = vector.load %arg5[%c0_7, %c0_8] : memref<16x512xf32, #tpu.memory_space<vmem>>, vector<16x512xf32>
    tpu.vector_store %arg5[%c0_7, %c0_8], %11 {strides = array<i32>} : memref<16x512xf32, #tpu.memory_space<vmem>>, vector<16x512xf32>,
    return
  }
  func.func @transform_0(%arg0: i32) -> i32 {
    %c0_i32 = arith.constant 0 : i32
    %c0_i32_0 = arith.constant 0 : i32
    return %c0_i32 : i32
  }
  func.func @transform_1(%arg0: i32) -> (i32, i32) {
    %c0_i32 = arith.constant 0 : i32
    %c0_i32_0 = arith.constant 0 : i32
    %c0_i32_1 = arith.constant 0 : i32
    return %c0_i32, %c0_i32_0 : i32, i32
  }
  func.func @transform_2(%arg0: i32) -> (i32, i32) {
    %c0_i32 = arith.constant 0 : i32
    %c0_i32_0 = arith.constant 0 : i32
    return %c0_i32, %arg0 : i32, i32
  }
  func.func @transform_3(%arg0: i32) -> (i32, i32) {
    %c0_i32 = arith.constant 0 : i32
    %c0_i32_0 = arith.constant 0 : i32
    %c0_i32_1 = arith.constant 0 : i32
    return %c0_i32, %c0_i32_0 : i32, i32
  }
  func.func @transform_4(%arg0: i32) -> (i32, i32) {
    %c0_i32 = arith.constant 0 : i32
    %c0_i32_0 = arith.constant 0 : i32
    return %c0_i32, %arg0 : i32, i32
  }
}

module attributes {stable_mosaic.version = 11 : i64} {
  func.func @_conv_prelu_kernel(%arg0: i32, %arg1: memref<1xf32, #tpu.memory_space<smem>>, %arg2: memref<16x144xbf16, #tpu.memory_space<vmem>>, %arg3: memref<144x512xbf16, #tpu.memory_space<vmem>>, %arg4: memref<16x1xf32, #tpu.memory_space<vmem>>, %arg5: memref<16x512xf32, #tpu.memory_space<vmem>>) attributes {dimension_semantics = [#tpu.dimension_semantics<parallel>], iteration_bounds = array<i64: 3>, scalar_prefetch = 0 : i64, scratch_operands = 0 : i64, tpu.core_type = #tpu.core_type<tc>, window_params = [{transform_indices = @transform_0, window_bounds = array<i64: 1>}, {pipeline_mode = #tpu.pipeline_mode<synchronous>, transform_indices = @transform_1, window_bounds = array<i64: 16, 144>}, {transform_indices = @transform_2, window_bounds = array<i64: 144, 512>}, {pipeline_mode = #tpu.pipeline_mode<synchronous>, transform_indices = @transform_3, window_bounds = array<i64: 16, 1>}, {transform_indices = @transform_4, window_bounds = array<i64: 16, 512>}]} {
    %c0 = arith.constant 0 : index
    %c0_0 = arith.constant 0 : index
    %0 = vector.load %arg2[%c0, %c0_0] : memref<16x144xbf16, #tpu.memory_space<vmem>>, vector<16x144xbf16>
    %c0_1 = arith.constant 0 : index
    %c0_2 = arith.constant 0 : index
    %1 = vector.load %arg3[%c0_1, %c0_2] : memref<144x512xbf16, #tpu.memory_space<vmem>>, vector<144x512xbf16>
    %cst = arith.constant dense<0.000000e+00> : vector<16x512xf32>
    %2 = tpu.matmul %0, %1, %cst {dimension_numbers = #tpu.dot_dimension_numbers<[1], [0], [0], [1], [0, 0, 1, 1], [], []>} : vector<16x144xbf16>, vector<144x512xbf16>, vector<16x512xf32> -> vector<16x512xf32>
    %c0_3 = arith.constant 0 : index
    %c0_4 = arith.constant 0 : index
    %3 = vector.load %arg4[%c0_3, %c0_4] : memref<16x1xf32, #tpu.memory_space<vmem>>, vector<16x1xf32>
    %4 = vector.broadcast %3 : vector<16x1xf32> to vector<16x512xf32>
    %5 = arith.addf %2, %4 : vector<16x512xf32>
    %c0_5 = arith.constant 0 : index
    %6 = memref.load %arg1[%c0_5] : memref<1xf32, #tpu.memory_space<smem>>
    %cst_6 = arith.constant 0.000000e+00 : f32
    %7 = vector.broadcast %cst_6 : f32 to vector<16x512xf32>
    %8 = arith.cmpf oge, %5, %7 : vector<16x512xf32>
    %9 = vector.broadcast %6 : f32 to vector<16x512xf32>
    %10 = arith.mulf %9, %5 : vector<16x512xf32>
    %11 = arith.select %8, %5, %10 : vector<16x512xi1>, vector<16x512xf32>
    %c0_7 = arith.constant 0 : index
    %c0_8 = arith.constant 0 : index
    %12 = vector.load %arg5[%c0_7, %c0_8] : memref<16x512xf32, #tpu.memory_space<vmem>>, vector<16x512xf32>
    tpu.vector_store %arg5[%c0_7, %c0_8], %11 {strides = array<i32>} : memref<16x512xf32, #tpu.memory_space<vmem>>, vector<16x512xf32>,
    return
  }
  func.func @transform_0(%arg0: i32) -> i32 {
    %c0_i32 = arith.constant 0 : i32
    %c0_i32_0 = arith.constant 0 : i32
    return %c0_i32 : i32
  }
  func.func @transform_1(%arg0: i32) -> (i32, i32) {
    %c0_i32 = arith.constant 0 : i32
    %c0_i32_0 = arith.constant 0 : i32
    %c0_i32_1 = arith.constant 0 : i32
    return %c0_i32, %c0_i32_0 : i32, i32
  }
  func.func @transform_2(%arg0: i32) -> (i32, i32) {
    %c0_i32 = arith.constant 0 : i32
    %c0_i32_0 = arith.constant 0 : i32
    return %c0_i32, %arg0 : i32, i32
  }
  func.func @transform_3(%arg0: i32) -> (i32, i32) {
    %c0_i32 = arith.constant 0 : i32
    %c0_i32_0 = arith.constant 0 : i32
    %c0_i32_1 = arith.constant 0 : i32
    return %c0_i32, %c0_i32_0 : i32, i32
  }
  func.func @transform_4(%arg0: i32) -> (i32, i32) {
    %c0_i32 = arith.constant 0 : i32
    %c0_i32_0 = arith.constant 0 : i32
    return %c0_i32, %arg0 : i32, i32
  }
}

module attributes {stable_mosaic.version = 11 : i64} {
  func.func @_avgpool_kernel(%arg0: memref<2x2x32x144xf32, #tpu.memory_space<vmem>>, %arg1: memref<1x144xf32, #tpu.memory_space<vmem>>, %arg2: memref<32x144xf32, #tpu.memory_space<vmem>>) attributes {dimension_semantics = [], scalar_prefetch = 0 : i64, scratch_operands = 0 : i64, tpu.core_type = #tpu.core_type<tc>} {
    %c0 = arith.constant 0 : index
    %c0_0 = arith.constant 0 : index
    %c0_1 = arith.constant 0 : index
    %c0_2 = arith.constant 0 : index
    %0 = vector.load %arg0[%c0, %c0_0, %c0_1, %c0_2] : memref<2x2x32x144xf32, #tpu.memory_space<vmem>>, vector<1x1x32x144xf32>
    %1 = vector.shape_cast %0 : vector<1x1x32x144xf32> to vector<32x144xf32>
    %c0_3 = arith.constant 0 : index
    %c1 = arith.constant 1 : index
    %c0_4 = arith.constant 0 : index
    %c0_5 = arith.constant 0 : index
    %2 = vector.load %arg0[%c0_3, %c1, %c0_4, %c0_5] : memref<2x2x32x144xf32, #tpu.memory_space<vmem>>, vector<1x1x32x144xf32>
    %3 = vector.shape_cast %2 : vector<1x1x32x144xf32> to vector<32x144xf32>
    %4 = arith.addf %1, %3 : vector<32x144xf32>
    %c1_6 = arith.constant 1 : index
    %c0_7 = arith.constant 0 : index
    %c0_8 = arith.constant 0 : index
    %c0_9 = arith.constant 0 : index
    %5 = vector.load %arg0[%c1_6, %c0_7, %c0_8, %c0_9] : memref<2x2x32x144xf32, #tpu.memory_space<vmem>>, vector<1x1x32x144xf32>
    %6 = vector.shape_cast %5 : vector<1x1x32x144xf32> to vector<32x144xf32>
    %7 = arith.addf %4, %6 : vector<32x144xf32>
    %c1_10 = arith.constant 1 : index
    %c1_11 = arith.constant 1 : index
    %c0_12 = arith.constant 0 : index
    %c0_13 = arith.constant 0 : index
    %8 = vector.load %arg0[%c1_10, %c1_11, %c0_12, %c0_13] : memref<2x2x32x144xf32, #tpu.memory_space<vmem>>, vector<1x1x32x144xf32>
    %9 = vector.shape_cast %8 : vector<1x1x32x144xf32> to vector<32x144xf32>
    %10 = arith.addf %7, %9 : vector<32x144xf32>
    %c0_14 = arith.constant 0 : index
    %c0_15 = arith.constant 0 : index
    %11 = vector.load %arg1[%c0_14, %c0_15] : memref<1x144xf32, #tpu.memory_space<vmem>>, vector<1x144xf32>
    %12 = vector.broadcast %11 : vector<1x144xf32> to vector<32x144xf32>
    %13 = arith.mulf %10, %12 : vector<32x144xf32>
    %c0_16 = arith.constant 0 : index
    %c0_17 = arith.constant 0 : index
    %14 = vector.load %arg2[%c0_16, %c0_17] : memref<32x144xf32, #tpu.memory_space<vmem>>, vector<32x144xf32>
    tpu.vector_store %arg2[%c0_16, %c0_17], %13 {strides = array<i32>} : memref<32x144xf32, #tpu.memory_space<vmem>>, vector<32x144xf32>,
    return
  }
}

module attributes {stable_mosaic.version = 11 : i64} {
  func.func @_conv_prelu_kernel(%arg0: i32, %arg1: memref<1xf32, #tpu.memory_space<smem>>, %arg2: memref<24x144xbf16, #tpu.memory_space<vmem>>, %arg3: memref<144x256xbf16, #tpu.memory_space<vmem>>, %arg4: memref<24x1xf32, #tpu.memory_space<vmem>>, %arg5: memref<24x256xf32, #tpu.memory_space<vmem>>) attributes {dimension_semantics = [#tpu.dimension_semantics<parallel>], iteration_bounds = array<i64: 1>, scalar_prefetch = 0 : i64, scratch_operands = 0 : i64, tpu.core_type = #tpu.core_type<tc>, window_params = [{transform_indices = @transform_0, window_bounds = array<i64: 1>}, {pipeline_mode = #tpu.pipeline_mode<synchronous>, transform_indices = @transform_1, window_bounds = array<i64: 24, 144>}, {transform_indices = @transform_2, window_bounds = array<i64: 144, 256>}, {pipeline_mode = #tpu.pipeline_mode<synchronous>, transform_indices = @transform_3, window_bounds = array<i64: 24, 1>}, {transform_indices = @transform_4, window_bounds = array<i64: 24, 256>}]} {
    %c0 = arith.constant 0 : index
    %c0_0 = arith.constant 0 : index
    %0 = vector.load %arg2[%c0, %c0_0] : memref<24x144xbf16, #tpu.memory_space<vmem>>, vector<24x144xbf16>
    %c0_1 = arith.constant 0 : index
    %c0_2 = arith.constant 0 : index
    %1 = vector.load %arg3[%c0_1, %c0_2] : memref<144x256xbf16, #tpu.memory_space<vmem>>, vector<144x256xbf16>
    %cst = arith.constant dense<0.000000e+00> : vector<24x256xf32>
    %2 = tpu.matmul %0, %1, %cst {dimension_numbers = #tpu.dot_dimension_numbers<[1], [0], [0], [1], [0, 0, 1, 1], [], []>} : vector<24x144xbf16>, vector<144x256xbf16>, vector<24x256xf32> -> vector<24x256xf32>
    %c0_3 = arith.constant 0 : index
    %c0_4 = arith.constant 0 : index
    %3 = vector.load %arg4[%c0_3, %c0_4] : memref<24x1xf32, #tpu.memory_space<vmem>>, vector<24x1xf32>
    %4 = vector.broadcast %3 : vector<24x1xf32> to vector<24x256xf32>
    %5 = arith.addf %2, %4 : vector<24x256xf32>
    %c0_5 = arith.constant 0 : index
    %6 = memref.load %arg1[%c0_5] : memref<1xf32, #tpu.memory_space<smem>>
    %cst_6 = arith.constant 0.000000e+00 : f32
    %7 = vector.broadcast %cst_6 : f32 to vector<24x256xf32>
    %8 = arith.cmpf oge, %5, %7 : vector<24x256xf32>
    %9 = vector.broadcast %6 : f32 to vector<24x256xf32>
    %10 = arith.mulf %9, %5 : vector<24x256xf32>
    %11 = arith.select %8, %5, %10 : vector<24x256xi1>, vector<24x256xf32>
    %c0_7 = arith.constant 0 : index
    %c0_8 = arith.constant 0 : index
    %12 = vector.load %arg5[%c0_7, %c0_8] : memref<24x256xf32, #tpu.memory_space<vmem>>, vector<24x256xf32>
    tpu.vector_store %arg5[%c0_7, %c0_8], %11 {strides = array<i32>} : memref<24x256xf32, #tpu.memory_space<vmem>>, vector<24x256xf32>,
    return
  }
  func.func @transform_0(%arg0: i32) -> i32 {
    %c0_i32 = arith.constant 0 : i32
    %c0_i32_0 = arith.constant 0 : i32
    return %c0_i32 : i32
  }
  func.func @transform_1(%arg0: i32) -> (i32, i32) {
    %c0_i32 = arith.constant 0 : i32
    %c0_i32_0 = arith.constant 0 : i32
    %c0_i32_1 = arith.constant 0 : i32
    return %c0_i32, %c0_i32_0 : i32, i32
  }
  func.func @transform_2(%arg0: i32) -> (i32, i32) {
    %c0_i32 = arith.constant 0 : i32
    %c0_i32_0 = arith.constant 0 : i32
    return %c0_i32, %arg0 : i32, i32
  }
  func.func @transform_3(%arg0: i32) -> (i32, i32) {
    %c0_i32 = arith.constant 0 : i32
    %c0_i32_0 = arith.constant 0 : i32
    %c0_i32_1 = arith.constant 0 : i32
    return %c0_i32, %c0_i32_0 : i32, i32
  }
  func.func @transform_4(%arg0: i32) -> (i32, i32) {
    %c0_i32 = arith.constant 0 : i32
    %c0_i32_0 = arith.constant 0 : i32
    return %c0_i32, %arg0 : i32, i32
  }
}

module attributes {stable_mosaic.version = 11 : i64} {
  func.func @_conv_prelu_kernel(%arg0: i32, %arg1: memref<1xf32, #tpu.memory_space<smem>>, %arg2: memref<24x216xbf16, #tpu.memory_space<vmem>>, %arg3: memref<216x128xbf16, #tpu.memory_space<vmem>>, %arg4: memref<24x1xf32, #tpu.memory_space<vmem>>, %arg5: memref<24x128xf32, #tpu.memory_space<vmem>>) attributes {dimension_semantics = [#tpu.dimension_semantics<parallel>], iteration_bounds = array<i64: 1>, scalar_prefetch = 0 : i64, scratch_operands = 0 : i64, tpu.core_type = #tpu.core_type<tc>, window_params = [{transform_indices = @transform_0, window_bounds = array<i64: 1>}, {pipeline_mode = #tpu.pipeline_mode<synchronous>, transform_indices = @transform_1, window_bounds = array<i64: 24, 216>}, {transform_indices = @transform_2, window_bounds = array<i64: 216, 128>}, {pipeline_mode = #tpu.pipeline_mode<synchronous>, transform_indices = @transform_3, window_bounds = array<i64: 24, 1>}, {transform_indices = @transform_4, window_bounds = array<i64: 24, 128>}]} {
    %c0 = arith.constant 0 : index
    %c0_0 = arith.constant 0 : index
    %0 = vector.load %arg2[%c0, %c0_0] : memref<24x216xbf16, #tpu.memory_space<vmem>>, vector<24x216xbf16>
    %c0_1 = arith.constant 0 : index
    %c0_2 = arith.constant 0 : index
    %1 = vector.load %arg3[%c0_1, %c0_2] : memref<216x128xbf16, #tpu.memory_space<vmem>>, vector<216x128xbf16>
    %cst = arith.constant dense<0.000000e+00> : vector<24x128xf32>
    %2 = tpu.matmul %0, %1, %cst {dimension_numbers = #tpu.dot_dimension_numbers<[1], [0], [0], [1], [0, 0, 1, 1], [], []>} : vector<24x216xbf16>, vector<216x128xbf16>, vector<24x128xf32> -> vector<24x128xf32>
    %c0_3 = arith.constant 0 : index
    %c0_4 = arith.constant 0 : index
    %3 = vector.load %arg4[%c0_3, %c0_4] : memref<24x1xf32, #tpu.memory_space<vmem>>, vector<24x1xf32>
    %4 = vector.broadcast %3 : vector<24x1xf32> to vector<24x128xf32>
    %5 = arith.addf %2, %4 : vector<24x128xf32>
    %c0_5 = arith.constant 0 : index
    %6 = memref.load %arg1[%c0_5] : memref<1xf32, #tpu.memory_space<smem>>
    %cst_6 = arith.constant 0.000000e+00 : f32
    %7 = vector.broadcast %cst_6 : f32 to vector<24x128xf32>
    %8 = arith.cmpf oge, %5, %7 : vector<24x128xf32>
    %9 = vector.broadcast %6 : f32 to vector<24x128xf32>
    %10 = arith.mulf %9, %5 : vector<24x128xf32>
    %11 = arith.select %8, %5, %10 : vector<24x128xi1>, vector<24x128xf32>
    %c0_7 = arith.constant 0 : index
    %c0_8 = arith.constant 0 : index
    %12 = vector.load %arg5[%c0_7, %c0_8] : memref<24x128xf32, #tpu.memory_space<vmem>>, vector<24x128xf32>
    tpu.vector_store %arg5[%c0_7, %c0_8], %11 {strides = array<i32>} : memref<24x128xf32, #tpu.memory_space<vmem>>, vector<24x128xf32>,
    return
  }
  func.func @transform_0(%arg0: i32) -> i32 {
    %c0_i32 = arith.constant 0 : i32
    %c0_i32_0 = arith.constant 0 : i32
    return %c0_i32 : i32
  }
  func.func @transform_1(%arg0: i32) -> (i32, i32) {
    %c0_i32 = arith.constant 0 : i32
    %c0_i32_0 = arith.constant 0 : i32
    %c0_i32_1 = arith.constant 0 : i32
    return %c0_i32, %c0_i32_0 : i32, i32
  }
  func.func @transform_2(%arg0: i32) -> (i32, i32) {
    %c0_i32 = arith.constant 0 : i32
    %c0_i32_0 = arith.constant 0 : i32
    return %c0_i32, %arg0 : i32, i32
  }
  func.func @transform_3(%arg0: i32) -> (i32, i32) {
    %c0_i32 = arith.constant 0 : i32
    %c0_i32_0 = arith.constant 0 : i32
    %c0_i32_1 = arith.constant 0 : i32
    return %c0_i32, %c0_i32_0 : i32, i32
  }
  func.func @transform_4(%arg0: i32) -> (i32, i32) {
    %c0_i32 = arith.constant 0 : i32
    %c0_i32_0 = arith.constant 0 : i32
    return %c0_i32, %arg0 : i32, i32
  }
}

module attributes {stable_mosaic.version = 11 : i64} {
  func.func @_avgpool_kernel(%arg0: memref<2x2x48x16xf32, #tpu.memory_space<vmem>>, %arg1: memref<1x16xf32, #tpu.memory_space<vmem>>, %arg2: memref<48x16xf32, #tpu.memory_space<vmem>>) attributes {dimension_semantics = [], scalar_prefetch = 0 : i64, scratch_operands = 0 : i64, tpu.core_type = #tpu.core_type<tc>} {
    %c0 = arith.constant 0 : index
    %c0_0 = arith.constant 0 : index
    %c0_1 = arith.constant 0 : index
    %c0_2 = arith.constant 0 : index
    %0 = vector.load %arg0[%c0, %c0_0, %c0_1, %c0_2] : memref<2x2x48x16xf32, #tpu.memory_space<vmem>>, vector<1x1x48x16xf32>
    %1 = vector.shape_cast %0 : vector<1x1x48x16xf32> to vector<48x16xf32>
    %c0_3 = arith.constant 0 : index
    %c1 = arith.constant 1 : index
    %c0_4 = arith.constant 0 : index
    %c0_5 = arith.constant 0 : index
    %2 = vector.load %arg0[%c0_3, %c1, %c0_4, %c0_5] : memref<2x2x48x16xf32, #tpu.memory_space<vmem>>, vector<1x1x48x16xf32>
    %3 = vector.shape_cast %2 : vector<1x1x48x16xf32> to vector<48x16xf32>
    %4 = arith.addf %1, %3 : vector<48x16xf32>
    %c1_6 = arith.constant 1 : index
    %c0_7 = arith.constant 0 : index
    %c0_8 = arith.constant 0 : index
    %c0_9 = arith.constant 0 : index
    %5 = vector.load %arg0[%c1_6, %c0_7, %c0_8, %c0_9] : memref<2x2x48x16xf32, #tpu.memory_space<vmem>>, vector<1x1x48x16xf32>
    %6 = vector.shape_cast %5 : vector<1x1x48x16xf32> to vector<48x16xf32>
    %7 = arith.addf %4, %6 : vector<48x16xf32>
    %c1_10 = arith.constant 1 : index
    %c1_11 = arith.constant 1 : index
    %c0_12 = arith.constant 0 : index
    %c0_13 = arith.constant 0 : index
    %8 = vector.load %arg0[%c1_10, %c1_11, %c0_12, %c0_13] : memref<2x2x48x16xf32, #tpu.memory_space<vmem>>, vector<1x1x48x16xf32>
    %9 = vector.shape_cast %8 : vector<1x1x48x16xf32> to vector<48x16xf32>
    %10 = arith.addf %7, %9 : vector<48x16xf32>
    %c0_14 = arith.constant 0 : index
    %c0_15 = arith.constant 0 : index
    %11 = vector.load %arg1[%c0_14, %c0_15] : memref<1x16xf32, #tpu.memory_space<vmem>>, vector<1x16xf32>
    %12 = vector.broadcast %11 : vector<1x16xf32> to vector<48x16xf32>
    %13 = arith.mulf %10, %12 : vector<48x16xf32>
    %c0_16 = arith.constant 0 : index
    %c0_17 = arith.constant 0 : index
    %14 = vector.load %arg2[%c0_16, %c0_17] : memref<48x16xf32, #tpu.memory_space<vmem>>, vector<48x16xf32>
    tpu.vector_store %arg2[%c0_16, %c0_17], %13 {strides = array<i32>} : memref<48x16xf32, #tpu.memory_space<vmem>>, vector<48x16xf32>,
    return
  }
}

module attributes {stable_mosaic.version = 11 : i64} {
  func.func @_conv_prelu_kernel(%arg0: i32, %arg1: memref<1xf32, #tpu.memory_space<smem>>, %arg2: memref<40x216xbf16, #tpu.memory_space<vmem>>, %arg3: memref<216x128xbf16, #tpu.memory_space<vmem>>, %arg4: memref<40x1xf32, #tpu.memory_space<vmem>>, %arg5: memref<40x128xf32, #tpu.memory_space<vmem>>) attributes {dimension_semantics = [#tpu.dimension_semantics<parallel>], iteration_bounds = array<i64: 1>, scalar_prefetch = 0 : i64, scratch_operands = 0 : i64, tpu.core_type = #tpu.core_type<tc>, window_params = [{transform_indices = @transform_0, window_bounds = array<i64: 1>}, {pipeline_mode = #tpu.pipeline_mode<synchronous>, transform_indices = @transform_1, window_bounds = array<i64: 40, 216>}, {transform_indices = @transform_2, window_bounds = array<i64: 216, 128>}, {pipeline_mode = #tpu.pipeline_mode<synchronous>, transform_indices = @transform_3, window_bounds = array<i64: 40, 1>}, {transform_indices = @transform_4, window_bounds = array<i64: 40, 128>}]} {
    %c0 = arith.constant 0 : index
    %c0_0 = arith.constant 0 : index
    %0 = vector.load %arg2[%c0, %c0_0] : memref<40x216xbf16, #tpu.memory_space<vmem>>, vector<40x216xbf16>
    %c0_1 = arith.constant 0 : index
    %c0_2 = arith.constant 0 : index
    %1 = vector.load %arg3[%c0_1, %c0_2] : memref<216x128xbf16, #tpu.memory_space<vmem>>, vector<216x128xbf16>
    %cst = arith.constant dense<0.000000e+00> : vector<40x128xf32>
    %2 = tpu.matmul %0, %1, %cst {dimension_numbers = #tpu.dot_dimension_numbers<[1], [0], [0], [1], [0, 0, 1, 1], [], []>} : vector<40x216xbf16>, vector<216x128xbf16>, vector<40x128xf32> -> vector<40x128xf32>
    %c0_3 = arith.constant 0 : index
    %c0_4 = arith.constant 0 : index
    %3 = vector.load %arg4[%c0_3, %c0_4] : memref<40x1xf32, #tpu.memory_space<vmem>>, vector<40x1xf32>
    %4 = vector.broadcast %3 : vector<40x1xf32> to vector<40x128xf32>
    %5 = arith.addf %2, %4 : vector<40x128xf32>
    %c0_5 = arith.constant 0 : index
    %6 = memref.load %arg1[%c0_5] : memref<1xf32, #tpu.memory_space<smem>>
    %cst_6 = arith.constant 0.000000e+00 : f32
    %7 = vector.broadcast %cst_6 : f32 to vector<40x128xf32>
    %8 = arith.cmpf oge, %5, %7 : vector<40x128xf32>
    %9 = vector.broadcast %6 : f32 to vector<40x128xf32>
    %10 = arith.mulf %9, %5 : vector<40x128xf32>
    %11 = arith.select %8, %5, %10 : vector<40x128xi1>, vector<40x128xf32>
    %c0_7 = arith.constant 0 : index
    %c0_8 = arith.constant 0 : index
    %12 = vector.load %arg5[%c0_7, %c0_8] : memref<40x128xf32, #tpu.memory_space<vmem>>, vector<40x128xf32>
    tpu.vector_store %arg5[%c0_7, %c0_8], %11 {strides = array<i32>} : memref<40x128xf32, #tpu.memory_space<vmem>>, vector<40x128xf32>,
    return
  }
  func.func @transform_0(%arg0: i32) -> i32 {
    %c0_i32 = arith.constant 0 : i32
    %c0_i32_0 = arith.constant 0 : i32
    return %c0_i32 : i32
  }
  func.func @transform_1(%arg0: i32) -> (i32, i32) {
    %c0_i32 = arith.constant 0 : i32
    %c0_i32_0 = arith.constant 0 : i32
    %c0_i32_1 = arith.constant 0 : i32
    return %c0_i32, %c0_i32_0 : i32, i32
  }
  func.func @transform_2(%arg0: i32) -> (i32, i32) {
    %c0_i32 = arith.constant 0 : i32
    %c0_i32_0 = arith.constant 0 : i32
    return %c0_i32, %arg0 : i32, i32
  }
  func.func @transform_3(%arg0: i32) -> (i32, i32) {
    %c0_i32 = arith.constant 0 : i32
    %c0_i32_0 = arith.constant 0 : i32
    %c0_i32_1 = arith.constant 0 : i32
    return %c0_i32, %c0_i32_0 : i32, i32
  }
  func.func @transform_4(%arg0: i32) -> (i32, i32) {
    %c0_i32 = arith.constant 0 : i32
    %c0_i32_0 = arith.constant 0 : i32
    return %c0_i32, %arg0 : i32, i32
  }
}

module attributes {stable_mosaic.version = 11 : i64} {
  func.func @_conv_prelu_kernel(%arg0: i32, %arg1: memref<1xf32, #tpu.memory_space<smem>>, %arg2: memref<80x360xbf16, #tpu.memory_space<vmem>>, %arg3: memref<360x128xbf16, #tpu.memory_space<vmem>>, %arg4: memref<80x1xf32, #tpu.memory_space<vmem>>, %arg5: memref<80x128xf32, #tpu.memory_space<vmem>>) attributes {dimension_semantics = [#tpu.dimension_semantics<parallel>], iteration_bounds = array<i64: 1>, scalar_prefetch = 0 : i64, scratch_operands = 0 : i64, tpu.core_type = #tpu.core_type<tc>, window_params = [{transform_indices = @transform_0, window_bounds = array<i64: 1>}, {pipeline_mode = #tpu.pipeline_mode<synchronous>, transform_indices = @transform_1, window_bounds = array<i64: 80, 360>}, {transform_indices = @transform_2, window_bounds = array<i64: 360, 128>}, {pipeline_mode = #tpu.pipeline_mode<synchronous>, transform_indices = @transform_3, window_bounds = array<i64: 80, 1>}, {transform_indices = @transform_4, window_bounds = array<i64: 80, 128>}]} {
    %c0 = arith.constant 0 : index
    %c0_0 = arith.constant 0 : index
    %0 = vector.load %arg2[%c0, %c0_0] : memref<80x360xbf16, #tpu.memory_space<vmem>>, vector<80x360xbf16>
    %c0_1 = arith.constant 0 : index
    %c0_2 = arith.constant 0 : index
    %1 = vector.load %arg3[%c0_1, %c0_2] : memref<360x128xbf16, #tpu.memory_space<vmem>>, vector<360x128xbf16>
    %cst = arith.constant dense<0.000000e+00> : vector<80x128xf32>
    %2 = tpu.matmul %0, %1, %cst {dimension_numbers = #tpu.dot_dimension_numbers<[1], [0], [0], [1], [0, 0, 1, 1], [], []>} : vector<80x360xbf16>, vector<360x128xbf16>, vector<80x128xf32> -> vector<80x128xf32>
    %c0_3 = arith.constant 0 : index
    %c0_4 = arith.constant 0 : index
    %3 = vector.load %arg4[%c0_3, %c0_4] : memref<80x1xf32, #tpu.memory_space<vmem>>, vector<80x1xf32>
    %4 = vector.broadcast %3 : vector<80x1xf32> to vector<80x128xf32>
    %5 = arith.addf %2, %4 : vector<80x128xf32>
    %c0_5 = arith.constant 0 : index
    %6 = memref.load %arg1[%c0_5] : memref<1xf32, #tpu.memory_space<smem>>
    %cst_6 = arith.constant 0.000000e+00 : f32
    %7 = vector.broadcast %cst_6 : f32 to vector<80x128xf32>
    %8 = arith.cmpf oge, %5, %7 : vector<80x128xf32>
    %9 = vector.broadcast %6 : f32 to vector<80x128xf32>
    %10 = arith.mulf %9, %5 : vector<80x128xf32>
    %11 = arith.select %8, %5, %10 : vector<80x128xi1>, vector<80x128xf32>
    %c0_7 = arith.constant 0 : index
    %c0_8 = arith.constant 0 : index
    %12 = vector.load %arg5[%c0_7, %c0_8] : memref<80x128xf32, #tpu.memory_space<vmem>>, vector<80x128xf32>
    tpu.vector_store %arg5[%c0_7, %c0_8], %11 {strides = array<i32>} : memref<80x128xf32, #tpu.memory_space<vmem>>, vector<80x128xf32>,
    return
  }
  func.func @transform_0(%arg0: i32) -> i32 {
    %c0_i32 = arith.constant 0 : i32
    %c0_i32_0 = arith.constant 0 : i32
    return %c0_i32 : i32
  }
  func.func @transform_1(%arg0: i32) -> (i32, i32) {
    %c0_i32 = arith.constant 0 : i32
    %c0_i32_0 = arith.constant 0 : i32
    %c0_i32_1 = arith.constant 0 : i32
    return %c0_i32, %c0_i32_0 : i32, i32
  }
  func.func @transform_2(%arg0: i32) -> (i32, i32) {
    %c0_i32 = arith.constant 0 : i32
    %c0_i32_0 = arith.constant 0 : i32
    return %c0_i32, %arg0 : i32, i32
  }
  func.func @transform_3(%arg0: i32) -> (i32, i32) {
    %c0_i32 = arith.constant 0 : i32
    %c0_i32_0 = arith.constant 0 : i32
    %c0_i32_1 = arith.constant 0 : i32
    return %c0_i32, %c0_i32_0 : i32, i32
  }
  func.func @transform_4(%arg0: i32) -> (i32, i32) {
    %c0_i32 = arith.constant 0 : i32
    %c0_i32_0 = arith.constant 0 : i32
    return %c0_i32, %arg0 : i32, i32
  }
}

module attributes {stable_mosaic.version = 11 : i64} {
  func.func @_mlp_kernel(%arg0: memref<2xf32, #tpu.memory_space<smem>>, %arg1: memref<2x1280xbf16, #tpu.memory_space<vmem>>, %arg2: memref<1280x128xbf16, #tpu.memory_space<vmem>>, %arg3: memref<1x128xf32, #tpu.memory_space<vmem>>, %arg4: memref<128x128xbf16, #tpu.memory_space<vmem>>, %arg5: memref<1x128xf32, #tpu.memory_space<vmem>>, %arg6: memref<128x42xbf16, #tpu.memory_space<vmem>>, %arg7: memref<1x42xf32, #tpu.memory_space<vmem>>, %arg8: memref<2x42xf32, #tpu.memory_space<vmem>>) attributes {dimension_semantics = [], scalar_prefetch = 0 : i64, scratch_operands = 0 : i64, tpu.core_type = #tpu.core_type<tc>} {
    %c0 = arith.constant 0 : index
    %c0_0 = arith.constant 0 : index
    %0 = vector.load %arg1[%c0, %c0_0] : memref<2x1280xbf16, #tpu.memory_space<vmem>>, vector<2x1280xbf16>
    %c0_1 = arith.constant 0 : index
    %c0_2 = arith.constant 0 : index
    %1 = vector.load %arg2[%c0_1, %c0_2] : memref<1280x128xbf16, #tpu.memory_space<vmem>>, vector<1280x128xbf16>
    %cst = arith.constant dense<0.000000e+00> : vector<2x128xf32>
    %2 = tpu.matmul %0, %1, %cst {dimension_numbers = #tpu.dot_dimension_numbers<[1], [0], [0], [1], [0, 0, 1, 1], [], []>} : vector<2x1280xbf16>, vector<1280x128xbf16>, vector<2x128xf32> -> vector<2x128xf32>
    %c0_3 = arith.constant 0 : index
    %c0_4 = arith.constant 0 : index
    %3 = vector.load %arg3[%c0_3, %c0_4] : memref<1x128xf32, #tpu.memory_space<vmem>>, vector<1x128xf32>
    %4 = vector.broadcast %3 : vector<1x128xf32> to vector<2x128xf32>
    %5 = arith.addf %2, %4 : vector<2x128xf32>
    %cst_5 = arith.constant 0.000000e+00 : f32
    %6 = vector.broadcast %cst_5 : f32 to vector<2x128xf32>
    %7 = arith.cmpf oge, %5, %6 : vector<2x128xf32>
    %c0_6 = arith.constant 0 : index
    %8 = memref.load %arg0[%c0_6] : memref<2xf32, #tpu.memory_space<smem>>
    %9 = vector.broadcast %8 : f32 to vector<2x128xf32>
    %10 = arith.mulf %9, %5 : vector<2x128xf32>
    %11 = arith.select %7, %5, %10 : vector<2x128xi1>, vector<2x128xf32>
    %12 = arith.truncf %11 : vector<2x128xf32> to vector<2x128xbf16>
    %c0_7 = arith.constant 0 : index
    %c0_8 = arith.constant 0 : index
    %13 = vector.load %arg4[%c0_7, %c0_8] : memref<128x128xbf16, #tpu.memory_space<vmem>>, vector<128x128xbf16>
    %cst_9 = arith.constant dense<0.000000e+00> : vector<2x128xf32>
    %14 = tpu.matmul %12, %13, %cst_9 {dimension_numbers = #tpu.dot_dimension_numbers<[1], [0], [0], [1], [0, 0, 1, 1], [], []>} : vector<2x128xbf16>, vector<128x128xbf16>, vector<2x128xf32> -> vector<2x128xf32>
    %c0_10 = arith.constant 0 : index
    %c0_11 = arith.constant 0 : index
    %15 = vector.load %arg5[%c0_10, %c0_11] : memref<1x128xf32, #tpu.memory_space<vmem>>, vector<1x128xf32>
    %16 = vector.broadcast %15 : vector<1x128xf32> to vector<2x128xf32>
    %17 = arith.addf %14, %16 : vector<2x128xf32>
    %cst_12 = arith.constant 0.000000e+00 : f32
    %18 = vector.broadcast %cst_12 : f32 to vector<2x128xf32>
    %19 = arith.cmpf oge, %17, %18 : vector<2x128xf32>
    %c1 = arith.constant 1 : index
    %20 = memref.load %arg0[%c1] : memref<2xf32, #tpu.memory_space<smem>>
    %21 = vector.broadcast %20 : f32 to vector<2x128xf32>
    %22 = arith.mulf %21, %17 : vector<2x128xf32>
    %23 = arith.select %19, %17, %22 : vector<2x128xi1>, vector<2x128xf32>
    %24 = arith.truncf %23 : vector<2x128xf32> to vector<2x128xbf16>
    %c0_13 = arith.constant 0 : index
    %c0_14 = arith.constant 0 : index
    %25 = vector.load %arg6[%c0_13, %c0_14] : memref<128x42xbf16, #tpu.memory_space<vmem>>, vector<128x42xbf16>
    %cst_15 = arith.constant dense<0.000000e+00> : vector<2x42xf32>
    %26 = tpu.matmul %24, %25, %cst_15 {dimension_numbers = #tpu.dot_dimension_numbers<[1], [0], [0], [1], [0, 0, 1, 1], [], []>} : vector<2x128xbf16>, vector<128x42xbf16>, vector<2x42xf32> -> vector<2x42xf32>
    %c0_16 = arith.constant 0 : index
    %c0_17 = arith.constant 0 : index
    %27 = vector.load %arg7[%c0_16, %c0_17] : memref<1x42xf32, #tpu.memory_space<vmem>>, vector<1x42xf32>
    %28 = vector.broadcast %27 : vector<1x42xf32> to vector<2x42xf32>
    %29 = arith.addf %26, %28 : vector<2x42xf32>
    %c0_18 = arith.constant 0 : index
    %c0_19 = arith.constant 0 : index
    %30 = vector.load %arg8[%c0_18, %c0_19] : memref<2x42xf32, #tpu.memory_space<vmem>>, vector<2x42xf32>
    tpu.vector_store %arg8[%c0_18, %c0_19], %29 {strides = array<i32>} : memref<2x42xf32, #tpu.memory_space<vmem>>, vector<2x42xf32>,
    return
  }
}

</mosaic_0001>

<llo_original>
// kernel: net_forward.11
$region0: #{net_forward.11}
  #allocation0 [shape = 'u32[]', space=smem, size = 0x4, offset = 0x4, fixed_abs, tag = 'smem constant byte address 0x4 - core index']
  #allocation1 [shape = 'u32[144,128]{1,0:T(1,128)}', space=vmem, size = 0x12000, scoped, tag = 'internal scratch']
  #allocation2 [shape = 'f32[1]{0:T(128)S(6)}', space=smem, size = 0x200, scoped, tag = 'scoped memory for net_forward.11']
  %s0 = inlined_call_operand.<no memory space> [shape: f32[1], index: 0, kind: input, shape index: {}]
  %s1 = inlined_call_operand.vmem [shape: bf16[8,32], index: 1, kind: input, shape index: {}]
  %s2 = inlined_call_operand.vmem [shape: bf16[32,6144], index: 2, kind: input, shape index: {}]
  %s3 = inlined_call_operand.vmem [shape: f32[8,1], index: 3, kind: input, shape index: {}]
  %s4 = inlined_call_operand.vmem [shape: f32[8,6144], index: 4, kind: output, shape index: {}]
  %s5 = sld [smem:[#allocation0]]
  $region72: #{net_forward.11} parent=0
    _
  %s7 = ssub.s32 1, %s5
  %s8 = scalar_select 0, %s7, %s5
  %9 = sst [smem:[#allocation2]] %s0
  $region1: #{net_forward.11} parent=0
    #allocation3 [shape = 'u8[131072]{0}', space=vmem, size = 0x20000, scoped, tag = 'input window, operand 2']
    loop: start=0, step=1, limit=8
    $region2: #{net_forward.11} parent=1 // loop_pre_header
      _
    $region3: #{net_forward.11} parent=1 // loop_header
      %s11 = sphi 0, %s15
      %p12 = scmp.ge.s32.totalorder %s11, 8
      %s19 = sphi 0, %s19
      %s21 = sphi 0, %s19
      %s22 = sphi 0, %s21
      %s36 = sphi 0, %s22
      %s40 = sphi 0, %s40
      %s42 = sphi 0, %s40
      %s43 = sphi 0, %s42
      %s57 = sphi 0, %s43
      %s63 = sphi 0, %s65
      %s66 = sphi 0, %s63
      %s67 = sphi 0, %s66
      %s83 = sphi 0, %s67
      %s87 = sphi 0, %s87
      %s89 = sphi 0, %s87
      %s90 = sphi 0, %s89
      %s104 = sphi 0, %s90
      %s110 = sphi 0, %s112
      %s113 = sphi 0, %s110
      %s114 = sphi 0, %s113
      %s130 = sphi 0, %s114
    $region4: #{net_forward.11} parent=1 // loop_header_branch
      %14 = sbr.rel (%p12) target = $region8
    $region5: #{net_forward.11} parent=1 // loop_body
      %s16 = ssub.s32 %s11, 1
      %s17 = ssub.s32 %s11, 2
      %s18 = sadd.s32 %s11, 1
      %s20 = sadd.s32 %s19, 1
      %p23 = scmp.eq.s32.totalorder %s11, 5
      %p24 = scmp.ne.s32.totalorder %s19, %s21
      %p25 = scmp.eq.s32.totalorder %s11, 0
      %p26 = por %p24, %p25
      %p27 = scmp.ne.s32.totalorder %s19, %s21
      %p28 = scmp.eq.s32.totalorder %s16, 5
      %p29 = por %p27, %p28
      %p30 = scmp.ne.s32.totalorder %s21, %s22
      %p31 = scmp.eq.s32.totalorder %s16, 0
      %p32 = por %p30, %p31
      %p33 = scmp.ne.s32.totalorder %s21, %s22
      %p34 = scmp.eq.s32.totalorder %s17, 5
      %p35 = por %p33, %p34
      %p37 = scmp.ne.s32.totalorder %s22, %s36
      %p38 = scmp.eq.s32.totalorder %s17, 0
      %p39 = por %p37, %p38
      %s41 = sadd.s32 %s40, 1
      %p44 = scmp.eq.s32.totalorder %s11, 5
      %p45 = scmp.ne.s32.totalorder %s40, %s42
      %p46 = scmp.eq.s32.totalorder %s11, 0
      %p47 = por %p45, %p46
      %p48 = scmp.ne.s32.totalorder %s40, %s42
      %p49 = scmp.eq.s32.totalorder %s16, 5
      %p50 = por %p48, %p49
      %p51 = scmp.ne.s32.totalorder %s42, %s43
      %p52 = scmp.eq.s32.totalorder %s16, 0
      %p53 = por %p51, %p52
      %p54 = scmp.ne.s32.totalorder %s42, %s43
      %p55 = scmp.eq.s32.totalorder %s17, 5
      %p56 = por %p54, %p55
      %p58 = scmp.ne.s32.totalorder %s43, %s57
      %p59 = scmp.eq.s32.totalorder %s17, 0
      %p60 = por %p58, %p59
      %s61 = ssub.s32 %s11, %s18
      %p62 = scmp.eq.s32.totalorder %s61, 0
      %s64 = sadd.s32 %s63, 1
      %s65 = scalar_select %p62, %s63, %s64
      %p68 = pneg %p62
      %p69 = scmp.eq.s32.totalorder %s11, 5
      %p70 = por %p68, %p69
      %p71 = scmp.ne.s32.totalorder %s63, %s66
      %p72 = scmp.eq.s32.totalorder %s11, 0
      %p73 = por %p71, %p72
      %p74 = scmp.ne.s32.totalorder %s63, %s66
      %p75 = scmp.eq.s32.totalorder %s16, 5
      %p76 = por %p74, %p75
      %p77 = scmp.ne.s32.totalorder %s66, %s67
      %p78 = scmp.eq.s32.totalorder %s16, 0
      %p79 = por %p77, %p78
      %p80 = scmp.ne.s32.totalorder %s66, %s67
      %p81 = scmp.eq.s32.totalorder %s17, 5
      %p82 = por %p80, %p81
      %p84 = scmp.ne.s32.totalorder %s67, %s83
      %p85 = scmp.eq.s32.totalorder %s17, 0
      %p86 = por %p84, %p85
      %s88 = sadd.s32 %s87, 1
      %p91 = scmp.eq.s32.totalorder %s11, 5
      %p92 = scmp.ne.s32.totalorder %s87, %s89
      %p93 = scmp.eq.s32.totalorder %s11, 0
      %p94 = por %p92, %p93
      %p95 = scmp.ne.s32.totalorder %s87, %s89
      %p96 = scmp.eq.s32.totalorder %s16, 5
      %p97 = por %p95, %p96
      %p98 = scmp.ne.s32.totalorder %s89, %s90
      %p99 = scmp.eq.s32.totalorder %s16, 0
      %p100 = por %p98, %p99
      %p101 = scmp.ne.s32.totalorder %s89, %s90
      %p102 = scmp.eq.s32.totalorder %s17, 5
      %p103 = por %p101, %p102
      %p105 = scmp.ne.s32.totalorder %s90, %s104
      %p106 = scmp.eq.s32.totalorder %s17, 0
      %p107 = por %p105, %p106
      %s108 = ssub.s32 %s11, %s18
      %p109 = scmp.eq.s32.totalorder %s108, 0
      %s111 = sadd.s32 %s110, 1
      %s112 = scalar_select %p109, %s110, %s111
      %p115 = pneg %p109
      %p116 = scmp.eq.s32.totalorder %s11, 5
      %p117 = por %p115, %p116
      %p118 = scmp.ne.s32.totalorder %s110, %s113
      %p119 = scmp.eq.s32.totalorder %s11, 0
      %p120 = por %p118, %p119
      %p121 = scmp.ne.s32.totalorder %s110, %s113
      %p122 = scmp.eq.s32.totalorder %s16, 5
      %p123 = por %p121, %p122
      %p124 = scmp.ne.s32.totalorder %s113, %s114
      %p125 = scmp.eq.s32.totalorder %s16, 0
      %p126 = por %p124, %p125
      %p127 = scmp.ne.s32.totalorder %s113, %s114
      %p128 = scmp.eq.s32.totalorder %s17, 5
      %p129 = por %p127, %p128
      %p131 = scmp.ne.s32.totalorder %s114, %s130
      %p132 = scmp.eq.s32.totalorder %s17, 0
      %p133 = por %p131, %p132
      %p134 = scmp.le.s32.totalorder 1, %s11
      %p135 = scmp.lt.s32.totalorder %s11, 7
      %p136 = pnand %p134, %p135
      %p137 = pneg %p136
      // Predicated region
      $region9: #{net_forward.11} parent=5 // pred_check
        _
      $region10: #{net_forward.11} parent=5 // pred_check_branch
        %139 = sbr.rel (%p136) target = $region12
      $region11: #{net_forward.11} parent=5 // pred_region
        %s140 = ssub.s32 %s11, 1
        // Predicated region
        $region13: #{net_forward.11} parent=11 // pred_check
          %p141 = pneg %p32
        $region14: #{net_forward.11} parent=11 // pred_check_branch
          %143 = sbr.rel (%p141) target = $region16
        $region15: #{net_forward.11} parent=11 // pred_region
          _
        $region16: #{net_forward.11} parent=11 // pred_fallthru
          _
        // Predicated region
        $region17: #{net_forward.11} parent=11 // pred_check
          %p144 = pneg %p53
        $region18: #{net_forward.11} parent=11 // pred_check_branch
          %146 = sbr.rel (%p144) target = $region20
        $region19: #{net_forward.11} parent=11 // pred_region
          _
        $region20: #{net_forward.11} parent=11 // pred_fallthru
          _
        // Predicated region
        $region21: #{net_forward.11} parent=11 // pred_check
          %p147 = pneg %p100
        $region22: #{net_forward.11} parent=11 // pred_check_branch
          %149 = sbr.rel (%p147) target = $region24
        $region23: #{net_forward.11} parent=11 // pred_region
          _
        $region24: #{net_forward.11} parent=11 // pred_fallthru
          _
      $region12: #{net_forward.11} parent=5 // pred_fallthru
        _
      %p150 = scmp.lt.s32.totalorder %s11, 6
      // Predicated region
      $region25: #{net_forward.11} parent=5 // pred_check
        %p151 = pneg %p150
      $region26: #{net_forward.11} parent=5 // pred_check_branch
        %153 = sbr.rel (%p151) target = $region28
      $region27: #{net_forward.11} parent=5 // pred_region
        // Predicated region
        $region29: #{net_forward.11} parent=27 // pred_check
          %p154 = pneg %p73
        $region30: #{net_forward.11} parent=27 // pred_check_branch
          %156 = sbr.rel (%p154) target = $region32
        $region31: #{net_forward.11} parent=27 // pred_region
          %s157 = sand.u32 %s63, 1
          %s158 = sand.u32 %s63, 1
          %s159 = smul.addr %s158, 128
          %s160 = scalar_lea.vmem [#allocation3], %s159
          %s161 = smul.u32 8, %s11
          %s162 = smul.addr %s161, 4
          %s163 = scalar_lea.vmem %s2, %s162
          // Predicated region
          $region33: #{net_forward.11} parent=31 // pred_check
            _
          $region34: #{net_forward.11} parent=31 // pred_check_branch
            %165 = sbr.rel (0) target = $region36
          $region35: #{net_forward.11} parent=31 // pred_region
            // Predicated region
            $region37: #{net_forward.11} parent=35 // pred_check
              _
            $region38: #{net_forward.11} parent=35 // pred_check_branch
              %167 = sbr.rel (0) target = $region40
            $region39: #{net_forward.11} parent=35 // pred_region
              loop: start=0, step=1, limit=1
              $region41: #{net_forward.11} parent=39 // loop_pre_header
                _
              $region42: #{net_forward.11} parent=39 // loop_header
                %s169 = sphi 0, %s173
                %p170 = scmp.ge.s32.totalorder %s169, 1
                %s174 = sphi %s163, %s163
                %s175 = sphi %s160, %s160
              $region43: #{net_forward.11} parent=39 // loop_header_branch
                %172 = sbr.rel (%p170) target = $region47
              $region44: #{net_forward.11} parent=39 // loop_body
                %v176 = vld [vmem:[%s174] sm:$0xff]
                %177 = vst [vmem:[%s175] sm:$0xff] %v176
                %v178 = vld [vmem:[%s174 + $0x8] sm:$0xff]
                %179 = vst [vmem:[%s175 + $0x8] sm:$0xff] %v178
                %v180 = vld [vmem:[%s174 + $0x10] sm:$0xff]
                %181 = vst [vmem:[%s175 + $0x10] sm:$0xff] %v180
                %v182 = vld [vmem:[%s174 + $0x18] sm:$0xff]
                %183 = vst [vmem:[%s175 + $0x18] sm:$0xff] %v182
                %v184 = vld [vmem:[%s174 + $0xc0] sm:$0xff]
                %185 = vst [vmem:[%s175 + $0x20] sm:$0xff] %v184
                %v186 = vld [vmem:[%s174 + $0xc8] sm:$0xff]
                %187 = vst [vmem:[%s175 + $0x28] sm:$0xff] %v186
                %v188 = vld [vmem:[%s174 + $0xd0] sm:$0xff]
                %189 = vst [vmem:[%s175 + $0x30] sm:$0xff] %v188
                %v190 = vld [vmem:[%s174 + $0xd8] sm:$0xff]
                %191 = vst [vmem:[%s175 + $0x38] sm:$0xff] %v190
                %v192 = vld [vmem:[%s174 + $0x180] sm:$0xff]
                %193 = vst [vmem:[%s175 + $0x40] sm:$0xff] %v192
                %v194 = vld [vmem:[%s174 + $0x188] sm:$0xff]
                %195 = vst [vmem:[%s175 + $0x48] sm:$0xff] %v194
                %v196 = vld [vmem:[%s174 + $0x190] sm:$0xff]
                %197 = vst [vmem:[%s175 + $0x50] sm:$0xff] %v196
                %v198 = vld [vmem:[%s174 + $0x198] sm:$0xff]
                %199 = vst [vmem:[%s175 + $0x58] sm:$0xff] %v198
                %v200 = vld [vmem:[%s174 + $0x240] sm:$0xff]
                %201 = vst [vmem:[%s175 + $0x60] sm:$0xff] %v200
                %v202 = vld [vmem:[%s174 + $0x248] sm:$0xff]
                %203 = vst [vmem:[%s175 + $0x68] sm:$0xff] %v202
                %v204 = vld [vmem:[%s174 + $0x250] sm:$0xff]
                %205 = vst [vmem:[%s175 + $0x70] sm:$0xff] %v204
                %v206 = vld [vmem:[%s174 + $0x258] sm:$0xff]
                %207 = vst [vmem:[%s175 + $0x78] sm:$0xff] %v206
              $region45: #{net_forward.11} parent=39 // loop_footer
                %s173 = sadd.s32 1, %s169
              $region46: #{net_forward.11} parent=39 // loop_footer_branch
                %168 = sbr.rel target = $region42
              $region47: #{net_forward.11} parent=39 // loop_exit
                _
            $region40: #{net_forward.11} parent=35 // pred_fallthru
              _
            // Predicated region
            $region48: #{net_forward.11} parent=35 // pred_check
              _
            $region49: #{net_forward.11} parent=35 // pred_check_branch
              %209 = sbr.rel target = $region51
            $region50: #{net_forward.11} parent=35 // pred_region
              _
            $region51: #{net_forward.11} parent=35 // pred_fallthru
              _
          $region36: #{net_forward.11} parent=31 // pred_fallthru
            _
          %210 = vnop
        $region32: #{net_forward.11} parent=27 // pred_fallthru
          _
      $region28: #{net_forward.11} parent=5 // pred_fallthru
        _
      %p211 = scmp.le.s32.totalorder 1, %s11
      %p212 = scmp.lt.s32.totalorder %s11, 7
      %p213 = pnand %p211, %p212
      %p214 = pneg %p213
      // Predicated region
      $region52: #{net_forward.11} parent=5 // pred_check
        _
      $region53: #{net_forward.11} parent=5 // pred_check_branch
        %216 = sbr.rel (%p213) target = $region55
      $region54: #{net_forward.11} parent=5 // pred_region
        %s217 = ssub.s32 %s11, 1
        %s218 = sand.u32 %s66, 1
        %s219 = sand.u32 %s66, 1
        %s220 = smul.addr %s219, 128
        %s221 = scalar_lea.vmem [#allocation3], %s220
        // Predicated region
        $region56: #{net_forward.11} parent=54 // pred_check
          %p222 = pneg %p79
        $region57: #{net_forward.11} parent=54 // pred_check_branch
          %224 = sbr.rel (%p222) target = $region59
        $region58: #{net_forward.11} parent=54 // pred_region
          _
        $region59: #{net_forward.11} parent=54 // pred_fallthru
          _
        %p225 = pneg %p32
        %p226 = pneg %p29
        %p227 = pneg %p53
        %p228 = pneg %p50
        %s229 = sand.u32 %s66, 1
        %s230 = sand.u32 %s66, 1
        %s231 = smul.addr %s230, 128
        %s232 = scalar_lea.vmem [#allocation3], %s231
        %p233 = pneg %p79
        %p234 = pneg %p76
        %p235 = pneg %p100
        %p236 = pneg %p97
        %p237 = pneg %p126
        %p238 = pneg %p123
        %s239 = smul.u32 8, %s16
        %p240 = scmp.lt.s32.totalorder %s239, 47
        %s241 = scalar_select %p240, %s239, 47
        %s242 = smul.addr %s241, 8
        %s243 = scalar_lea.vmem %s4, %s242
        %s244 = smul.u32 8, %s16
        %s245 = smul.u32 8, %s16
        %p246 = scmp.lt.s32.totalorder %s245, 47
        %s247 = scalar_select %p246, %s245, 47
        %s248 = smul.addr %s247, 8
        %s249 = scalar_lea.vmem %s4, %s248
        %s250 = smul.u32 8, %s16
        %v252 = vld [vmem:[%s1] sm:$0xf]
        %v253 = vld [vmem:[%s221] sm:$0xff]
        %v254 = vld [vmem:[%s221 + $0x8] sm:$0xff]
        %v255 = vld [vmem:[%s221 + $0x10] sm:$0xff]
        %v256 = vld [vmem:[%s221 + $0x18] sm:$0xff]
        %v257 = vld [vmem:[%s221 + $0x20] sm:$0xff]
        %v258 = vld [vmem:[%s221 + $0x28] sm:$0xff]
        %v259 = vld [vmem:[%s221 + $0x30] sm:$0xff]
        %v260 = vld [vmem:[%s221 + $0x38] sm:$0xff]
        %v261 = vld [vmem:[%s221 + $0x40] sm:$0xff]
        %v262 = vld [vmem:[%s221 + $0x48] sm:$0xff]
        %v263 = vld [vmem:[%s221 + $0x50] sm:$0xff]
        %v264 = vld [vmem:[%s221 + $0x58] sm:$0xff]
        %v265 = vld [vmem:[%s221 + $0x60] sm:$0xff]
        %v266 = vld [vmem:[%s221 + $0x68] sm:$0xff]
        %v267 = vld [vmem:[%s221 + $0x70] sm:$0xff]
        %v268 = vld [vmem:[%s221 + $0x78] sm:$0xff]
        %v269 = vld [vmem:[%s3] sm:$0xff]
        %271 = vset.pattern.permute.xlu0 0
        %272 = vperm.xlu0 %271, %v269
        %v273 = vpop.permute.xlu0 %272
        %v291 = vunpack.c.l.b16 %v253
        %v292 = vunpack.c.h.b16 %v253
        %v293 = vunpack.c.l.b16 %v254
        %v294 = vunpack.c.h.b16 %v254
        %v295 = vunpack.c.l.b16 %v255
        %v296 = vunpack.c.h.b16 %v255
        %v297 = vunpack.c.l.b16 %v256
        %v298 = vunpack.c.h.b16 %v256
        %v299 = vunpack.c.l.b16 %v257
        %v300 = vunpack.c.h.b16 %v257
        %v301 = vunpack.c.l.b16 %v258
        %v302 = vunpack.c.h.b16 %v258
        %v303 = vunpack.c.l.b16 %v259
        %v304 = vunpack.c.h.b16 %v259
        %v305 = vunpack.c.l.b16 %v260
        %v306 = vunpack.c.h.b16 %v260
        %v307 = vunpack.c.l.b16 %v261
        %v308 = vunpack.c.h.b16 %v261
        %v309 = vunpack.c.l.b16 %v262
        %v310 = vunpack.c.h.b16 %v262
        %v311 = vunpack.c.l.b16 %v263
        %v312 = vunpack.c.h.b16 %v263
        %v313 = vunpack.c.l.b16 %v264
        %v314 = vunpack.c.h.b16 %v264
        %v315 = vunpack.c.l.b16 %v265
        %v316 = vunpack.c.h.b16 %v265
        %v317 = vunpack.c.l.b16 %v266
        %v318 = vunpack.c.h.b16 %v266
        %v319 = vunpack.c.l.b16 %v267
        %v320 = vunpack.c.h.b16 %v267
        %v321 = vunpack.c.l.b16 %v268
        %v322 = vunpack.c.h.b16 %v268
        %v323 = vpack.c.b16 %v299, %v291
        %v324 = vpack.c.b16 %v300, %v292
        %v325 = vpack.c.b16 %v301, %v293
        %v326 = vpack.c.b16 %v302, %v294
        %v327 = vpack.c.b16 %v303, %v295
        %v328 = vpack.c.b16 %v304, %v296
        %v329 = vpack.c.b16 %v305, %v297
        %v330 = vpack.c.b16 %v306, %v298
        %v331 = vpack.c.b16 %v315, %v307
        %v332 = vpack.c.b16 %v316, %v308
        %v333 = vpack.c.b16 %v317, %v309
        %v334 = vpack.c.b16 %v318, %v310
        %v335 = vpack.c.b16 %v319, %v311
        %v336 = vpack.c.b16 %v320, %v312
        %v337 = vpack.c.b16 %v321, %v313
        %v338 = vpack.c.b16 %v322, %v314
        %vm355 = vcmask 261120
        %v357 = vsel %vm355, %v252, 0
        %359 = vmatprep.subr.bf16.mxu0 %v324
        %360 = vmatpush1.bf16.msra.mxu0 %v323
        %361 = vmatprep.subr.bf16.mxu0 %v332
        %362 = vmatpush1.bf16.msra.mxu0 %v331
        %363 = vmatprep.subr.bf16.mxu0 0
        %364 = vmatpush1.bf16.msra.mxu0 0
        %365 = vmatprep.subr.bf16.mxu0 0
        %366 = vmatpush1.bf16.msra.mxu0 0
        %367 = vmatprep.subr.bf16.mxu0 0
        %368 = vmatpush1.bf16.msra.mxu0 0
        %369 = vmatprep.subr.bf16.mxu0 0
        %370 = vmatpush1.bf16.msra.mxu0 0
        %371 = vmatprep.subr.bf16.mxu0 0
        %372 = vmatpush1.bf16.msra.mxu0 0
        %373 = vmatprep.subr.bf16.mxu0 0
        %374 = vmatpush1.bf16.msra.mxu0 0
        %375 = vmatprep.subr.bf16.mxu0 0
        %376 = vmatpush1.bf16.msra.mxu0 0
        %377 = vmatprep.subr.bf16.mxu0 0
        %378 = vmatpush1.bf16.msra.mxu0 0
        %379 = vmatprep.subr.bf16.mxu0 0
        %380 = vmatpush1.bf16.msra.mxu0 0
        %381 = vmatprep.subr.bf16.mxu0 0
        %382 = vmatpush1.bf16.msra.mxu0 0
        %383 = vmatprep.subr.bf16.mxu0 0
        %384 = vmatpush1.bf16.msra.mxu0 0
        %385 = vmatprep.subr.bf16.mxu0 0
        %386 = vmatpush1.bf16.msra.mxu0 0
        %387 = vmatprep.subr.bf16.mxu0 0
        %388 = vmatpush1.bf16.msra.mxu0 0
        %389 = vmatprep.subr.bf16.mxu0 0
        %390 = vmatpush1.bf16.msra.mxu0 0
        %391 = vmatprep.mubr.bf16.mxu0 0
        %392 = vmatmul.mubr.bf16.gmra.mrb[0].mxu0 %v357
        %v393 = vpop.f32.mrb[0].mxu0
        %v394 = vadd.f32 %v273, %v393
        %v395 = vpop.f32.mrb[0].mxu0
        %v396 = vadd.f32 %v273, %v395
        %v397 = vpop.f32.mrb[0].mxu0
        %v398 = vpop.f32.mrb[0].mxu0
        %399 = vdwg.mxu0
        %400 = vmatprep.subr.bf16.mxu0 %v326
        %401 = vmatpush1.bf16.msra.mxu0 %v325
        %402 = vmatprep.subr.bf16.mxu0 %v334
        %403 = vmatpush1.bf16.msra.mxu0 %v333
        %404 = vmatprep.subr.bf16.mxu0 0
        %405 = vmatpush1.bf16.msra.mxu0 0
        %406 = vmatprep.subr.bf16.mxu0 0
        %407 = vmatpush1.bf16.msra.mxu0 0
        %408 = vmatprep.subr.bf16.mxu0 0
        %409 = vmatpush1.bf16.msra.mxu0 0
        %410 = vmatprep.subr.bf16.mxu0 0
        %411 = vmatpush1.bf16.msra.mxu0 0
        %412 = vmatprep.subr.bf16.mxu0 0
        %413 = vmatpush1.bf16.msra.mxu0 0
        %414 = vmatprep.subr.bf16.mxu0 0
        %415 = vmatpush1.bf16.msra.mxu0 0
        %416 = vmatprep.subr.bf16.mxu0 0
        %417 = vmatpush1.bf16.msra.mxu0 0
        %418 = vmatprep.subr.bf16.mxu0 0
        %419 = vmatpush1.bf16.msra.mxu0 0
        %420 = vmatprep.subr.bf16.mxu0 0
        %421 = vmatpush1.bf16.msra.mxu0 0
        %422 = vmatprep.subr.bf16.mxu0 0
        %423 = vmatpush1.bf16.msra.mxu0 0
        %424 = vmatprep.subr.bf16.mxu0 0
        %425 = vmatpush1.bf16.msra.mxu0 0
        %426 = vmatprep.subr.bf16.mxu0 0
        %427 = vmatpush1.bf16.msra.mxu0 0
        %428 = vmatprep.subr.bf16.mxu0 0
        %429 = vmatpush1.bf16.msra.mxu0 0
        %430 = vmatprep.subr.bf16.mxu0 0
        %431 = vmatpush1.bf16.msra.mxu0 0
        %432 = vmatprep.mubr.bf16.mxu0 0
        %433 = vmatmul.mubr.bf16.gmra.mrb[0].mxu0 %v357
        %v434 = vpop.f32.mrb[0].mxu0
        %v435 = vadd.f32 %v273, %v434
        %v436 = vpop.f32.mrb[0].mxu0
        %v437 = vadd.f32 %v273, %v436
        %v438 = vpop.f32.mrb[0].mxu0
        %v439 = vpop.f32.mrb[0].mxu0
        %440 = vdwg.mxu0
        %441 = vmatprep.subr.bf16.mxu0 %v328
        %442 = vmatpush1.bf16.msra.mxu0 %v327
        %443 = vmatprep.subr.bf16.mxu0 %v336
        %444 = vmatpush1.bf16.msra.mxu0 %v335
        %445 = vmatprep.subr.bf16.mxu0 0
        %446 = vmatpush1.bf16.msra.mxu0 0
        %447 = vmatprep.subr.bf16.mxu0 0
        %448 = vmatpush1.bf16.msra.mxu0 0
        %449 = vmatprep.subr.bf16.mxu0 0
        %450 = vmatpush1.bf16.msra.mxu0 0
        %451 = vmatprep.subr.bf16.mxu0 0
        %452 = vmatpush1.bf16.msra.mxu0 0
        %453 = vmatprep.subr.bf16.mxu0 0
        %454 = vmatpush1.bf16.msra.mxu0 0
        %455 = vmatprep.subr.bf16.mxu0 0
        %456 = vmatpush1.bf16.msra.mxu0 0
        %457 = vmatprep.subr.bf16.mxu0 0
        %458 = vmatpush1.bf16.msra.mxu0 0
        %459 = vmatprep.subr.bf16.mxu0 0
        %460 = vmatpush1.bf16.msra.mxu0 0
        %461 = vmatprep.subr.bf16.mxu0 0
        %462 = vmatpush1.bf16.msra.mxu0 0
        %463 = vmatprep.subr.bf16.mxu0 0
        %464 = vmatpush1.bf16.msra.mxu0 0
        %465 = vmatprep.subr.bf16.mxu0 0
        %466 = vmatpush1.bf16.msra.mxu0 0
        %467 = vmatprep.subr.bf16.mxu0 0
        %468 = vmatpush1.bf16.msra.mxu0 0
        %469 = vmatprep.subr.bf16.mxu0 0
        %470 = vmatpush1.bf16.msra.mxu0 0
        %471 = vmatprep.subr.bf16.mxu0 0
        %472 = vmatpush1.bf16.msra.mxu0 0
        %473 = vmatprep.mubr.bf16.mxu0 0
        %474 = vmatmul.mubr.bf16.gmra.mrb[0].mxu0 %v357
        %v475 = vpop.f32.mrb[0].mxu0
        %v476 = vadd.f32 %v273, %v475
        %v477 = vpop.f32.mrb[0].mxu0
        %v478 = vadd.f32 %v273, %v477
        %v479 = vpop.f32.mrb[0].mxu0
        %v480 = vpop.f32.mrb[0].mxu0
        %481 = vdwg.mxu0
        %482 = vmatprep.subr.bf16.mxu0 %v330
        %483 = vmatpush1.bf16.msra.mxu0 %v329
        %484 = vmatprep.subr.bf16.mxu0 %v338
        %485 = vmatpush1.bf16.msra.mxu0 %v337
        %486 = vmatprep.subr.bf16.mxu0 0
        %487 = vmatpush1.bf16.msra.mxu0 0
        %488 = vmatprep.subr.bf16.mxu0 0
        %489 = vmatpush1.bf16.msra.mxu0 0
        %490 = vmatprep.subr.bf16.mxu0 0
        %491 = vmatpush1.bf16.msra.mxu0 0
        %492 = vmatprep.subr.bf16.mxu0 0
        %493 = vmatpush1.bf16.msra.mxu0 0
        %494 = vmatprep.subr.bf16.mxu0 0
        %495 = vmatpush1.bf16.msra.mxu0 0
        %496 = vmatprep.subr.bf16.mxu0 0
        %497 = vmatpush1.bf16.msra.mxu0 0
        %498 = vmatprep.subr.bf16.mxu0 0
        %499 = vmatpush1.bf16.msra.mxu0 0
        %500 = vmatprep.subr.bf16.mxu0 0
        %501 = vmatpush1.bf16.msra.mxu0 0
        %502 = vmatprep.subr.bf16.mxu0 0
        %503 = vmatpush1.bf16.msra.mxu0 0
        %504 = vmatprep.subr.bf16.mxu0 0
        %505 = vmatpush1.bf16.msra.mxu0 0
        %506 = vmatprep.subr.bf16.mxu0 0
        %507 = vmatpush1.bf16.msra.mxu0 0
        %508 = vmatprep.subr.bf16.mxu0 0
        %509 = vmatpush1.bf16.msra.mxu0 0
        %510 = vmatprep.subr.bf16.mxu0 0
        %511 = vmatpush1.bf16.msra.mxu0 0
        %512 = vmatprep.subr.bf16.mxu0 0
        %513 = vmatpush1.bf16.msra.mxu0 0
        %514 = vmatprep.mubr.bf16.mxu0 0
        %515 = vmatmul.mubr.bf16.gmra.mrb[0].mxu0 %v357
        %v516 = vpop.f32.mrb[0].mxu0
        %v517 = vadd.f32 %v273, %v516
        %v518 = vpop.f32.mrb[0].mxu0
        %v519 = vadd.f32 %v273, %v518
        %v520 = vpop.f32.mrb[0].mxu0
        %v521 = vpop.f32.mrb[0].mxu0
        %522 = vdwg.mxu0
        %s523 = sld [smem:[#allocation2]]
        %vm524 = vcmp.ge.f32.partialorder %v394, 0.0
        %vm525 = vcmp.ge.f32.partialorder %v396, 0.0
        %vm526 = vcmp.ge.f32.partialorder %v435, 0.0
        %vm527 = vcmp.ge.f32.partialorder %v437, 0.0
        %vm528 = vcmp.ge.f32.partialorder %v476, 0.0
        %vm529 = vcmp.ge.f32.partialorder %v478, 0.0
        %vm530 = vcmp.ge.f32.partialorder %v517, 0.0
        %vm531 = vcmp.ge.f32.partialorder %v519, 0.0
        %v532 = vstv %s523
        %v533 = vmul.f32 %v532, %v394
        %v534 = vmul.f32 %v532, %v396
        %v535 = vmul.f32 %v532, %v435
        %v536 = vmul.f32 %v532, %v437
        %v537 = vmul.f32 %v532, %v476
        %v538 = vmul.f32 %v532, %v478
        %v539 = vmul.f32 %v532, %v517
        %v540 = vmul.f32 %v532, %v519
        %v541 = vsel %vm524, %v394, %v533
        %v542 = vsel %vm525, %v396, %v534
        %v543 = vsel %vm526, %v435, %v535
        %v544 = vsel %vm527, %v437, %v536
        %v545 = vsel %vm528, %v476, %v537
        %v546 = vsel %vm529, %v478, %v538
        %v547 = vsel %vm530, %v517, %v539
        %v548 = vsel %vm531, %v519, %v540
        %549 = vst [vmem:[%s249] sm:$0xff] %v541
        %550 = vst [vmem:[%s249 + $0x8] sm:$0xff] %v542
        %551 = vst [vmem:[%s249 + $0x10] sm:$0xff] %v543
        %552 = vst [vmem:[%s249 + $0x18] sm:$0xff] %v544
        %553 = vst [vmem:[%s249 + $0x20] sm:$0xff] %v545
        %554 = vst [vmem:[%s249 + $0x28] sm:$0xff] %v546
        %555 = vst [vmem:[%s249 + $0x30] sm:$0xff] %v547
        %556 = vst [vmem:[%s249 + $0x38] sm:$0xff] %v548
        %s557 = smul.u32 8, %s16
        %p558 = scmp.lt.s32.totalorder %s557, 47
        %s559 = scalar_select %p558, %s557, 47
        %s560 = smul.addr %s559, 8
        %s561 = scalar_lea.vmem %s4, %s560
        // Predicated region
        $region60: #{net_forward.11} parent=54 // pred_check
          %p562 = pneg %p123
        $region61: #{net_forward.11} parent=54 // pred_check_branch
          %564 = sbr.rel (%p562) target = $region63
        $region62: #{net_forward.11} parent=54 // pred_region
          %s565 = smul.u32 8, %s16
        $region63: #{net_forward.11} parent=54 // pred_fallthru
          _
      $region55: #{net_forward.11} parent=5 // pred_fallthru
        _
      %p566 = scmp.le.s32.totalorder 2, %s11
      // Predicated region
      $region64: #{net_forward.11} parent=5 // pred_check
        %p567 = pneg %p566
      $region65: #{net_forward.11} parent=5 // pred_check_branch
        %569 = sbr.rel (%p567) target = $region67
      $region66: #{net_forward.11} parent=5 // pred_region
        %s570 = ssub.s32 %s11, 2
        // Predicated region
        $region68: #{net_forward.11} parent=66 // pred_check
          %p571 = pneg %p129
        $region69: #{net_forward.11} parent=66 // pred_check_branch
          %573 = sbr.rel (%p571) target = $region71
        $region70: #{net_forward.11} parent=66 // pred_region
          %s574 = smul.u32 8, %s17
          %p575 = scmp.lt.s32.totalorder %s574, 47
          %s576 = scalar_select %p575, %s574, 47
          %s577 = smul.addr %s576, 8
          %s578 = scalar_lea.vmem %s4, %s577
        $region71: #{net_forward.11} parent=66 // pred_fallthru
          _
      $region67: #{net_forward.11} parent=5 // pred_fallthru
        _
    $region6: #{net_forward.11} parent=1 // loop_footer
      %s15 = sadd.s32 1, %s11
    $region7: #{net_forward.11} parent=1 // loop_footer_branch
      %10 = sbr.rel target = $region3
    $region8: #{net_forward.11} parent=1 // loop_exit
      _

// kernel: net_forward.12
$region0: #{net_forward.12}
  #allocation0 [shape = 'u32[]', space=smem, size = 0x4, offset = 0x4, fixed_abs, tag = 'smem constant byte address 0x4 - core index']
  #allocation1 [shape = 'u32[144,128]{1,0:T(1,128)}', space=vmem, size = 0x12000, scoped, tag = 'internal scratch']
  %s0 = inlined_call_operand.vmem [shape: f32[2,2,16,729], index: 0, kind: input, shape index: {}]
  %s1 = inlined_call_operand.vmem [shape: f32[1,729], index: 1, kind: input, shape index: {}]
  %s2 = inlined_call_operand.vmem [shape: f32[16,729], index: 2, kind: output, shape index: {}]
  %s3 = sld [smem:[#allocation0]]
  $region18: #{net_forward.12} parent=0
    _
  %s5 = ssub.s32 1, %s3
  %s6 = scalar_select 0, %s5, %s3
  // Predicated region
  $region2: #{net_forward.12} parent=0 // pred_check
    _
  $region3: #{net_forward.12} parent=0 // pred_check_branch
    %8 = sbr.rel (0) target = $region5
  $region4: #{net_forward.12} parent=0 // pred_region
    _
  $region5: #{net_forward.12} parent=0 // pred_fallthru
    _
  // Predicated region
  $region6: #{net_forward.12} parent=0 // pred_check
    _
  $region7: #{net_forward.12} parent=0 // pred_check_branch
    %10 = sbr.rel (0) target = $region9
  $region8: #{net_forward.12} parent=0 // pred_region
    _
  $region9: #{net_forward.12} parent=0 // pred_fallthru
    _
  %v11 = vld [vmem:[%s0] sm:$0xff]
  %v12 = vld [vmem:[%s0 + $0x8] sm:$0xff]
  %v13 = vld [vmem:[%s0 + $0x10] sm:$0xff]
  %v14 = vld [vmem:[%s0 + $0x18] sm:$0xff]
  %v15 = vld [vmem:[%s0 + $0x20] sm:$0xff]
  %v16 = vld [vmem:[%s0 + $0x28] sm:$0xff]
  %v17 = vld [vmem:[%s0 + $0x30] sm:$0xff]
  %v18 = vld [vmem:[%s0 + $0x38] sm:$0xff]
  %v19 = vld [vmem:[%s0 + $0x40] sm:$0xff]
  %v20 = vld [vmem:[%s0 + $0x48] sm:$0xff]
  %v21 = vld [vmem:[%s0 + $0x50] sm:$0xff]
  %v22 = vld [vmem:[%s0 + $0x58] sm:$0xff]
  %s23 = scalar_lea.vmem %s0, 96
  %v24 = vld [vmem:[%s23] sm:$0xff]
  %v25 = vld [vmem:[%s23 + $0x8] sm:$0xff]
  %v26 = vld [vmem:[%s23 + $0x10] sm:$0xff]
  %v27 = vld [vmem:[%s23 + $0x18] sm:$0xff]
  %v28 = vld [vmem:[%s23 + $0x20] sm:$0xff]
  %v29 = vld [vmem:[%s23 + $0x28] sm:$0xff]
  %v30 = vld [vmem:[%s23 + $0x30] sm:$0xff]
  %v31 = vld [vmem:[%s23 + $0x38] sm:$0xff]
  %v32 = vld [vmem:[%s23 + $0x40] sm:$0xff]
  %v33 = vld [vmem:[%s23 + $0x48] sm:$0xff]
  %v34 = vld [vmem:[%s23 + $0x50] sm:$0xff]
  %v35 = vld [vmem:[%s23 + $0x58] sm:$0xff]
  %v36 = vadd.f32 %v11, %v24
  %v37 = vadd.f32 %v12, %v25
  %v38 = vadd.f32 %v13, %v26
  %v39 = vadd.f32 %v14, %v27
  %v40 = vadd.f32 %v15, %v28
  %v41 = vadd.f32 %v16, %v29
  %v42 = vadd.f32 %v17, %v30
  %v43 = vadd.f32 %v18, %v31
  %v44 = vadd.f32 %v19, %v32
  %v45 = vadd.f32 %v20, %v33
  %v46 = vadd.f32 %v21, %v34
  %v47 = vadd.f32 %v22, %v35
  %s48 = scalar_lea.vmem %s0, 192
  %v49 = vld [vmem:[%s48] sm:$0xff]
  %v50 = vld [vmem:[%s48 + $0x8] sm:$0xff]
  %v51 = vld [vmem:[%s48 + $0x10] sm:$0xff]
  %v52 = vld [vmem:[%s48 + $0x18] sm:$0xff]
  %v53 = vld [vmem:[%s48 + $0x20] sm:$0xff]
  %v54 = vld [vmem:[%s48 + $0x28] sm:$0xff]
  %v55 = vld [vmem:[%s48 + $0x30] sm:$0xff]
  %v56 = vld [vmem:[%s48 + $0x38] sm:$0xff]
  %v57 = vld [vmem:[%s48 + $0x40] sm:$0xff]
  %v58 = vld [vmem:[%s48 + $0x48] sm:$0xff]
  %v59 = vld [vmem:[%s48 + $0x50] sm:$0xff]
  %v60 = vld [vmem:[%s48 + $0x58] sm:$0xff]
  %v61 = vadd.f32 %v36, %v49
  %v62 = vadd.f32 %v37, %v50
  %v63 = vadd.f32 %v38, %v51
  %v64 = vadd.f32 %v39, %v52
  %v65 = vadd.f32 %v40, %v53
  %v66 = vadd.f32 %v41, %v54
  %v67 = vadd.f32 %v42, %v55
  %v68 = vadd.f32 %v43, %v56
  %v69 = vadd.f32 %v44, %v57
  %v70 = vadd.f32 %v45, %v58
  %v71 = vadd.f32 %v46, %v59
  %v72 = vadd.f32 %v47, %v60
  %s73 = scalar_lea.vmem %s0, 288
  %v74 = vld [vmem:[%s73] sm:$0xff]
  %v75 = vld [vmem:[%s73 + $0x8] sm:$0xff]
  %v76 = vld [vmem:[%s73 + $0x10] sm:$0xff]
  %v77 = vld [vmem:[%s73 + $0x18] sm:$0xff]
  %v78 = vld [vmem:[%s73 + $0x20] sm:$0xff]
  %v79 = vld [vmem:[%s73 + $0x28] sm:$0xff]
  %v80 = vld [vmem:[%s73 + $0x30] sm:$0xff]
  %v81 = vld [vmem:[%s73 + $0x38] sm:$0xff]
  %v82 = vld [vmem:[%s73 + $0x40] sm:$0xff]
  %v83 = vld [vmem:[%s73 + $0x48] sm:$0xff]
  %v84 = vld [vmem:[%s73 + $0x50] sm:$0xff]
  %v85 = vld [vmem:[%s73 + $0x58] sm:$0xff]
  %v86 = vadd.f32 %v61, %v74
  %v87 = vadd.f32 %v62, %v75
  %v88 = vadd.f32 %v63, %v76
  %v89 = vadd.f32 %v64, %v77
  %v90 = vadd.f32 %v65, %v78
  %v91 = vadd.f32 %v66, %v79
  %v92 = vadd.f32 %v67, %v80
  %v93 = vadd.f32 %v68, %v81
  %v94 = vadd.f32 %v69, %v82
  %v95 = vadd.f32 %v70, %v83
  %v96 = vadd.f32 %v71, %v84
  %v97 = vadd.f32 %v72, %v85
  %v98 = vld [vmem:[%s1] sm:$0x3f]
  %v100 = vlaneseq
  %v101 = vshrl.u32 %v100, 7
  %v102 = vsub.s32 0, %v101
  %v103 = vrot.slane %v98, %v102
  %v104 = vlaneseq
  %v105 = vshrl.u32 %v104, 7
  %v106 = vsub.s32 1, %v105
  %v107 = vrot.slane %v98, %v106
  %v108 = vlaneseq
  %v109 = vshrl.u32 %v108, 7
  %v110 = vsub.s32 2, %v109
  %v111 = vrot.slane %v98, %v110
  %v112 = vlaneseq
  %v113 = vshrl.u32 %v112, 7
  %v114 = vsub.s32 3, %v113
  %v115 = vrot.slane %v98, %v114
  %v116 = vlaneseq
  %v117 = vshrl.u32 %v116, 7
  %v118 = vsub.s32 4, %v117
  %v119 = vrot.slane %v98, %v118
  %v120 = vlaneseq
  %v121 = vshrl.u32 %v120, 7
  %v122 = vsub.s32 5, %v121
  %v123 = vrot.slane %v98, %v122
  %v130 = vmul.f32 %v86, %v103
  %v131 = vmul.f32 %v87, %v107
  %v132 = vmul.f32 %v88, %v111
  %v133 = vmul.f32 %v89, %v115
  %v134 = vmul.f32 %v90, %v119
  %v135 = vmul.f32 %v91, %v123
  %v136 = vmul.f32 %v92, %v103
  %v137 = vmul.f32 %v93, %v107
  %v138 = vmul.f32 %v94, %v111
  %v139 = vmul.f32 %v95, %v115
  %v140 = vmul.f32 %v96, %v119
  %v141 = vmul.f32 %v97, %v123
  %142 = vst [vmem:[%s2] sm:$0xff] %v130
  %143 = vst [vmem:[%s2 + $0x8] sm:$0xff] %v131
  %144 = vst [vmem:[%s2 + $0x10] sm:$0xff] %v132
  %145 = vst [vmem:[%s2 + $0x18] sm:$0xff] %v133
  %146 = vst [vmem:[%s2 + $0x20] sm:$0xff] %v134
  %vm147 = vcmask 728064
  %148 = vst.msk [vmem:[%s2 + $0x28] sm:$0xff] %vm147, %v135
  %149 = vst [vmem:[%s2 + $0x30] sm:$0xff] %v136
  %150 = vst [vmem:[%s2 + $0x38] sm:$0xff] %v137
  %151 = vst [vmem:[%s2 + $0x40] sm:$0xff] %v138
  %152 = vst [vmem:[%s2 + $0x48] sm:$0xff] %v139
  %153 = vst [vmem:[%s2 + $0x50] sm:$0xff] %v140
  %154 = vst.msk [vmem:[%s2 + $0x58] sm:$0xff] %vm147, %v141
  // Predicated region
  $region10: #{net_forward.12} parent=0 // pred_check
    _
  $region11: #{net_forward.12} parent=0 // pred_check_branch
    %156 = sbr.rel (0) target = $region13
  $region12: #{net_forward.12} parent=0 // pred_region
    _
  $region13: #{net_forward.12} parent=0 // pred_fallthru
    _
  // Predicated region
  $region14: #{net_forward.12} parent=0 // pred_check
    _
  $region15: #{net_forward.12} parent=0 // pred_check_branch
    %158 = sbr.rel (0) target = $region17
  $region16: #{net_forward.12} parent=0 // pred_region
    _
  $region17: #{net_forward.12} parent=0 // pred_fallthru
    _

// kernel: net_forward.13
$region0: #{net_forward.13}
  #allocation0 [shape = 'u32[]', space=smem, size = 0x4, offset = 0x4, fixed_abs, tag = 'smem constant byte address 0x4 - core index']
  #allocation1 [shape = 'u32[144,128]{1,0:T(1,128)}', space=vmem, size = 0x12000, scoped, tag = 'internal scratch']
  #allocation2 [shape = 'f32[1]{0:T(128)S(6)}', space=smem, size = 0x200, scoped, tag = 'scoped memory for net_forward.13']
  %s0 = inlined_call_operand.<no memory space> [shape: f32[1], index: 0, kind: input, shape index: {}]
  %s1 = inlined_call_operand.vmem [shape: bf16[16,72], index: 1, kind: input, shape index: {}]
  %s2 = inlined_call_operand.vmem [shape: bf16[72,1536], index: 2, kind: input, shape index: {}]
  %s3 = inlined_call_operand.vmem [shape: f32[16,1], index: 3, kind: input, shape index: {}]
  %s4 = inlined_call_operand.vmem [shape: f32[16,1536], index: 4, kind: output, shape index: {}]
  %s5 = sld [smem:[#allocation0]]
  $region91: #{net_forward.13} parent=0
    _
  %s7 = ssub.s32 1, %s5
  %s8 = scalar_select 0, %s7, %s5
  %9 = sst [smem:[#allocation2]] %s0
  $region1: #{net_forward.13} parent=0
    #allocation3 [shape = 'u8[147456]{0}', space=vmem, size = 0x24000, scoped, tag = 'input window, operand 2']
    #allocation4 [shape = 'u8[65536]{0}', space=vmem, size = 0x10000, scoped, tag = 'output window, operand 0']
    loop: start=0, step=1, limit=5
    $region2: #{net_forward.13} parent=1 // loop_pre_header
      _
    $region3: #{net_forward.13} parent=1 // loop_header
      %s11 = sphi 0, %s15
      %p12 = scmp.ge.s32.totalorder %s11, 5
      %s19 = sphi 0, %s19
      %s21 = sphi 0, %s19
      %s22 = sphi 0, %s21
      %s36 = sphi 0, %s22
      %s40 = sphi 0, %s40
      %s42 = sphi 0, %s40
      %s43 = sphi 0, %s42
      %s57 = sphi 0, %s43
      %s63 = sphi 0, %s65
      %s66 = sphi 0, %s63
      %s67 = sphi 0, %s66
      %s83 = sphi 0, %s67
      %s87 = sphi 0, %s87
      %s89 = sphi 0, %s87
      %s90 = sphi 0, %s89
      %s104 = sphi 0, %s90
      %s110 = sphi 0, %s112
      %s113 = sphi 0, %s110
      %s114 = sphi 0, %s113
      %s130 = sphi 0, %s114
    $region4: #{net_forward.13} parent=1 // loop_header_branch
      %14 = sbr.rel (%p12) target = $region8
    $region5: #{net_forward.13} parent=1 // loop_body
      %s16 = ssub.s32 %s11, 1
      %s17 = ssub.s32 %s11, 2
      %s18 = sadd.s32 %s11, 1
      %s20 = sadd.s32 %s19, 1
      %p23 = scmp.eq.s32.totalorder %s11, 2
      %p24 = scmp.ne.s32.totalorder %s19, %s21
      %p25 = scmp.eq.s32.totalorder %s11, 0
      %p26 = por %p24, %p25
      %p27 = scmp.ne.s32.totalorder %s19, %s21
      %p28 = scmp.eq.s32.totalorder %s16, 2
      %p29 = por %p27, %p28
      %p30 = scmp.ne.s32.totalorder %s21, %s22
      %p31 = scmp.eq.s32.totalorder %s16, 0
      %p32 = por %p30, %p31
      %p33 = scmp.ne.s32.totalorder %s21, %s22
      %p34 = scmp.eq.s32.totalorder %s17, 2
      %p35 = por %p33, %p34
      %p37 = scmp.ne.s32.totalorder %s22, %s36
      %p38 = scmp.eq.s32.totalorder %s17, 0
      %p39 = por %p37, %p38
      %s41 = sadd.s32 %s40, 1
      %p44 = scmp.eq.s32.totalorder %s11, 2
      %p45 = scmp.ne.s32.totalorder %s40, %s42
      %p46 = scmp.eq.s32.totalorder %s11, 0
      %p47 = por %p45, %p46
      %p48 = scmp.ne.s32.totalorder %s40, %s42
      %p49 = scmp.eq.s32.totalorder %s16, 2
      %p50 = por %p48, %p49
      %p51 = scmp.ne.s32.totalorder %s42, %s43
      %p52 = scmp.eq.s32.totalorder %s16, 0
      %p53 = por %p51, %p52
      %p54 = scmp.ne.s32.totalorder %s42, %s43
      %p55 = scmp.eq.s32.totalorder %s17, 2
      %p56 = por %p54, %p55
      %p58 = scmp.ne.s32.totalorder %s43, %s57
      %p59 = scmp.eq.s32.totalorder %s17, 0
      %p60 = por %p58, %p59
      %s61 = ssub.s32 %s11, %s18
      %p62 = scmp.eq.s32.totalorder %s61, 0
      %s64 = sadd.s32 %s63, 1
      %s65 = scalar_select %p62, %s63, %s64
      %p68 = pneg %p62
      %p69 = scmp.eq.s32.totalorder %s11, 2
      %p70 = por %p68, %p69
      %p71 = scmp.ne.s32.totalorder %s63, %s66
      %p72 = scmp.eq.s32.totalorder %s11, 0
      %p73 = por %p71, %p72
      %p74 = scmp.ne.s32.totalorder %s63, %s66
      %p75 = scmp.eq.s32.totalorder %s16, 2
      %p76 = por %p74, %p75
      %p77 = scmp.ne.s32.totalorder %s66, %s67
      %p78 = scmp.eq.s32.totalorder %s16, 0
      %p79 = por %p77, %p78
      %p80 = scmp.ne.s32.totalorder %s66, %s67
      %p81 = scmp.eq.s32.totalorder %s17, 2
      %p82 = por %p80, %p81
      %p84 = scmp.ne.s32.totalorder %s67, %s83
      %p85 = scmp.eq.s32.totalorder %s17, 0
      %p86 = por %p84, %p85
      %s88 = sadd.s32 %s87, 1
      %p91 = scmp.eq.s32.totalorder %s11, 2
      %p92 = scmp.ne.s32.totalorder %s87, %s89
      %p93 = scmp.eq.s32.totalorder %s11, 0
      %p94 = por %p92, %p93
      %p95 = scmp.ne.s32.totalorder %s87, %s89
      %p96 = scmp.eq.s32.totalorder %s16, 2
      %p97 = por %p95, %p96
      %p98 = scmp.ne.s32.totalorder %s89, %s90
      %p99 = scmp.eq.s32.totalorder %s16, 0
      %p100 = por %p98, %p99
      %p101 = scmp.ne.s32.totalorder %s89, %s90
      %p102 = scmp.eq.s32.totalorder %s17, 2
      %p103 = por %p101, %p102
      %p105 = scmp.ne.s32.totalorder %s90, %s104
      %p106 = scmp.eq.s32.totalorder %s17, 0
      %p107 = por %p105, %p106
      %s108 = ssub.s32 %s11, %s18
      %p109 = scmp.eq.s32.totalorder %s108, 0
      %s111 = sadd.s32 %s110, 1
      %s112 = scalar_select %p109, %s110, %s111
      %p115 = pneg %p109
      %p116 = scmp.eq.s32.totalorder %s11, 2
      %p117 = por %p115, %p116
      %p118 = scmp.ne.s32.totalorder %s110, %s113
      %p119 = scmp.eq.s32.totalorder %s11, 0
      %p120 = por %p118, %p119
      %p121 = scmp.ne.s32.totalorder %s110, %s113
      %p122 = scmp.eq.s32.totalorder %s16, 2
      %p123 = por %p121, %p122
      %p124 = scmp.ne.s32.totalorder %s113, %s114
      %p125 = scmp.eq.s32.totalorder %s16, 0
      %p126 = por %p124, %p125
      %p127 = scmp.ne.s32.totalorder %s113, %s114
      %p128 = scmp.eq.s32.totalorder %s17, 2
      %p129 = por %p127, %p128
      %p131 = scmp.ne.s32.totalorder %s114, %s130
      %p132 = scmp.eq.s32.totalorder %s17, 0
      %p133 = por %p131, %p132
      %p134 = scmp.le.s32.totalorder 1, %s11
      %p135 = scmp.lt.s32.totalorder %s11, 4
      %p136 = pnand %p134, %p135
      %p137 = pneg %p136
      // Predicated region
      $region9: #{net_forward.13} parent=5 // pred_check
        _
      $region10: #{net_forward.13} parent=5 // pred_check_branch
        %139 = sbr.rel (%p136) target = $region12
      $region11: #{net_forward.13} parent=5 // pred_region
        %s140 = ssub.s32 %s11, 1
        // Predicated region
        $region13: #{net_forward.13} parent=11 // pred_check
          %p141 = pneg %p32
        $region14: #{net_forward.13} parent=11 // pred_check_branch
          %143 = sbr.rel (%p141) target = $region16
        $region15: #{net_forward.13} parent=11 // pred_region
          _
        $region16: #{net_forward.13} parent=11 // pred_fallthru
          _
        // Predicated region
        $region17: #{net_forward.13} parent=11 // pred_check
          %p144 = pneg %p53
        $region18: #{net_forward.13} parent=11 // pred_check_branch
          %146 = sbr.rel (%p144) target = $region20
        $region19: #{net_forward.13} parent=11 // pred_region
          _
        $region20: #{net_forward.13} parent=11 // pred_fallthru
          _
        // Predicated region
        $region21: #{net_forward.13} parent=11 // pred_check
          %p147 = pneg %p100
        $region22: #{net_forward.13} parent=11 // pred_check_branch
          %149 = sbr.rel (%p147) target = $region24
        $region23: #{net_forward.13} parent=11 // pred_region
          _
        $region24: #{net_forward.13} parent=11 // pred_fallthru
          _
      $region12: #{net_forward.13} parent=5 // pred_fallthru
        _
      %p150 = scmp.lt.s32.totalorder %s11, 3
      // Predicated region
      $region25: #{net_forward.13} parent=5 // pred_check
        %p151 = pneg %p150
      $region26: #{net_forward.13} parent=5 // pred_check_branch
        %153 = sbr.rel (%p151) target = $region28
      $region27: #{net_forward.13} parent=5 // pred_region
        // Predicated region
        $region29: #{net_forward.13} parent=27 // pred_check
          %p154 = pneg %p73
        $region30: #{net_forward.13} parent=27 // pred_check_branch
          %156 = sbr.rel (%p154) target = $region32
        $region31: #{net_forward.13} parent=27 // pred_region
          %s157 = sand.u32 %s63, 1
          %s158 = sand.u32 %s63, 1
          %s159 = smul.addr %s158, 144
          %s160 = scalar_lea.vmem [#allocation3], %s159
          %s161 = smul.u32 4, %s11
          %s162 = smul.addr %s161, 4
          %s163 = scalar_lea.vmem %s2, %s162
          // Predicated region
          $region33: #{net_forward.13} parent=31 // pred_check
            _
          $region34: #{net_forward.13} parent=31 // pred_check_branch
            %165 = sbr.rel (0) target = $region36
          $region35: #{net_forward.13} parent=31 // pred_region
            // Predicated region
            $region37: #{net_forward.13} parent=35 // pred_check
              _
            $region38: #{net_forward.13} parent=35 // pred_check_branch
              %167 = sbr.rel (0) target = $region40
            $region39: #{net_forward.13} parent=35 // pred_region
              loop: start=0, step=1, limit=1
              $region41: #{net_forward.13} parent=39 // loop_pre_header
                _
              $region42: #{net_forward.13} parent=39 // loop_header
                %s169 = sphi 0, %s173
                %p170 = scmp.ge.s32.totalorder %s169, 1
                %s174 = sphi %s163, %s163
                %s175 = sphi %s160, %s160
              $region43: #{net_forward.13} parent=39 // loop_header_branch
                %172 = sbr.rel (%p170) target = $region47
              $region44: #{net_forward.13} parent=39 // loop_body
                %v176 = vld [vmem:[%s174] sm:$0xff]
                %177 = vst [vmem:[%s175] sm:$0xff] %v176
                %v178 = vld [vmem:[%s174 + $0x8] sm:$0xff]
                %179 = vst [vmem:[%s175 + $0x8] sm:$0xff] %v178
                %v180 = vld [vmem:[%s174 + $0x30] sm:$0xff]
                %181 = vst [vmem:[%s175 + $0x10] sm:$0xff] %v180
                %v182 = vld [vmem:[%s174 + $0x38] sm:$0xff]
                %183 = vst [vmem:[%s175 + $0x18] sm:$0xff] %v182
                %v184 = vld [vmem:[%s174 + $0x60] sm:$0xff]
                %185 = vst [vmem:[%s175 + $0x20] sm:$0xff] %v184
                %v186 = vld [vmem:[%s174 + $0x68] sm:$0xff]
                %187 = vst [vmem:[%s175 + $0x28] sm:$0xff] %v186
                %v188 = vld [vmem:[%s174 + $0x90] sm:$0xff]
                %189 = vst [vmem:[%s175 + $0x30] sm:$0xff] %v188
                %v190 = vld [vmem:[%s174 + $0x98] sm:$0xff]
                %191 = vst [vmem:[%s175 + $0x38] sm:$0xff] %v190
                %v192 = vld [vmem:[%s174 + $0xc0] sm:$0xff]
                %193 = vst [vmem:[%s175 + $0x40] sm:$0xff] %v192
                %v194 = vld [vmem:[%s174 + $0xc8] sm:$0xff]
                %195 = vst [vmem:[%s175 + $0x48] sm:$0xff] %v194
                %v196 = vld [vmem:[%s174 + $0xf0] sm:$0xff]
                %197 = vst [vmem:[%s175 + $0x50] sm:$0xff] %v196
                %v198 = vld [vmem:[%s174 + $0xf8] sm:$0xff]
                %199 = vst [vmem:[%s175 + $0x58] sm:$0xff] %v198
                %v200 = vld [vmem:[%s174 + $0x120] sm:$0xff]
                %201 = vst [vmem:[%s175 + $0x60] sm:$0xff] %v200
                %v202 = vld [vmem:[%s174 + $0x128] sm:$0xff]
                %203 = vst [vmem:[%s175 + $0x68] sm:$0xff] %v202
                %v204 = vld [vmem:[%s174 + $0x150] sm:$0xff]
                %205 = vst [vmem:[%s175 + $0x70] sm:$0xff] %v204
                %v206 = vld [vmem:[%s174 + $0x158] sm:$0xff]
                %207 = vst [vmem:[%s175 + $0x78] sm:$0xff] %v206
                %v208 = vld [vmem:[%s174 + $0x180] sm:$0xff]
                %209 = vst [vmem:[%s175 + $0x80] sm:$0xff] %v208
                %v210 = vld [vmem:[%s174 + $0x188] sm:$0xff]
                %211 = vst [vmem:[%s175 + $0x88] sm:$0xff] %v210
              $region45: #{net_forward.13} parent=39 // loop_footer
                %s173 = sadd.s32 1, %s169
              $region46: #{net_forward.13} parent=39 // loop_footer_branch
                %168 = sbr.rel target = $region42
              $region47: #{net_forward.13} parent=39 // loop_exit
                _
            $region40: #{net_forward.13} parent=35 // pred_fallthru
              _
            // Predicated region
            $region48: #{net_forward.13} parent=35 // pred_check
              _
            $region49: #{net_forward.13} parent=35 // pred_check_branch
              %213 = sbr.rel target = $region51
            $region50: #{net_forward.13} parent=35 // pred_region
              _
            $region51: #{net_forward.13} parent=35 // pred_fallthru
              _
          $region36: #{net_forward.13} parent=31 // pred_fallthru
            _
          %214 = vnop
        $region32: #{net_forward.13} parent=27 // pred_fallthru
          _
      $region28: #{net_forward.13} parent=5 // pred_fallthru
        _
      %p215 = scmp.le.s32.totalorder 1, %s11
      %p216 = scmp.lt.s32.totalorder %s11, 4
      %p217 = pnand %p215, %p216
      %p218 = pneg %p217
      // Predicated region
      $region52: #{net_forward.13} parent=5 // pred_check
        _
      $region53: #{net_forward.13} parent=5 // pred_check_branch
        %220 = sbr.rel (%p217) target = $region55
      $region54: #{net_forward.13} parent=5 // pred_region
        %s221 = ssub.s32 %s11, 1
        %s222 = sand.u32 %s66, 1
        %s223 = sand.u32 %s66, 1
        %s224 = smul.addr %s223, 144
        %s225 = scalar_lea.vmem [#allocation3], %s224
        // Predicated region
        $region56: #{net_forward.13} parent=54 // pred_check
          %p226 = pneg %p79
        $region57: #{net_forward.13} parent=54 // pred_check_branch
          %228 = sbr.rel (%p226) target = $region59
        $region58: #{net_forward.13} parent=54 // pred_region
          _
        $region59: #{net_forward.13} parent=54 // pred_fallthru
          _
        %p229 = pneg %p32
        %p230 = pneg %p29
        %p231 = pneg %p53
        %p232 = pneg %p50
        %s233 = sand.u32 %s66, 1
        %s234 = sand.u32 %s66, 1
        %s235 = smul.addr %s234, 144
        %s236 = scalar_lea.vmem [#allocation3], %s235
        %p237 = pneg %p79
        %p238 = pneg %p76
        %p239 = pneg %p100
        %p240 = pneg %p97
        %p241 = pneg %p126
        %p242 = pneg %p123
        %s243 = sand.u32 %s113, 1
        %s244 = sand.u32 %s113, 1
        %s245 = smul.addr %s244, 64
        %s246 = scalar_lea.vmem [#allocation4], %s245
        %s247 = smul.u32 4, %s16
        %s248 = smul.u32 4, %s16
        %v250 = vld [vmem:[%s1] sm:$0xf]
        %v251 = vld [vmem:[%s1 + $0x4] sm:$0xf]
        %v252 = vld [vmem:[%s225] sm:$0xff]
        %v253 = vld [vmem:[%s225 + $0x8] sm:$0xff]
        %v254 = vld [vmem:[%s225 + $0x10] sm:$0xff]
        %v255 = vld [vmem:[%s225 + $0x18] sm:$0xff]
        %v256 = vld [vmem:[%s225 + $0x20] sm:$0xff]
        %v257 = vld [vmem:[%s225 + $0x28] sm:$0xff]
        %v258 = vld [vmem:[%s225 + $0x30] sm:$0xff]
        %v259 = vld [vmem:[%s225 + $0x38] sm:$0xff]
        %v260 = vld [vmem:[%s225 + $0x40] sm:$0xff]
        %v261 = vld [vmem:[%s225 + $0x48] sm:$0xff]
        %v262 = vld [vmem:[%s225 + $0x50] sm:$0xff]
        %v263 = vld [vmem:[%s225 + $0x58] sm:$0xff]
        %v264 = vld [vmem:[%s225 + $0x60] sm:$0xff]
        %v265 = vld [vmem:[%s225 + $0x68] sm:$0xff]
        %v266 = vld [vmem:[%s225 + $0x70] sm:$0xff]
        %v267 = vld [vmem:[%s225 + $0x78] sm:$0xff]
        %v268 = vld [vmem:[%s225 + $0x80] sm:$0xff]
        %v269 = vld [vmem:[%s225 + $0x88] sm:$0xff]
        %v270 = vld [vmem:[%s3] sm:$0xff]
        %v271 = vld [vmem:[%s3 + $0x8] sm:$0xff]
        %273 = vset.pattern.permute.xlu0 0
        %274 = vperm.xlu0 %273, %v270
        %v275 = vpop.permute.xlu0 %274
        %278 = vset.pattern.permute.xlu0 0
        %279 = vperm.xlu0 %278, %v271
        %v280 = vpop.permute.xlu0 %279
        %v284 = vunpack.c.l.b16 %v250
        %v285 = vunpack.c.l.b16 %v251
        %v286 = vpack.c.b16 %v285, %v284
        %v305 = vunpack.c.l.b16 %v252
        %v306 = vunpack.c.h.b16 %v252
        %v307 = vunpack.c.l.b16 %v253
        %v308 = vunpack.c.h.b16 %v253
        %v309 = vunpack.c.l.b16 %v254
        %v310 = vunpack.c.h.b16 %v254
        %v311 = vunpack.c.l.b16 %v255
        %v312 = vunpack.c.h.b16 %v255
        %v313 = vunpack.c.l.b16 %v256
        %v314 = vunpack.c.h.b16 %v256
        %v315 = vunpack.c.l.b16 %v257
        %v316 = vunpack.c.h.b16 %v257
        %v317 = vunpack.c.l.b16 %v258
        %v318 = vunpack.c.h.b16 %v258
        %v319 = vunpack.c.l.b16 %v259
        %v320 = vunpack.c.h.b16 %v259
        %v321 = vunpack.c.l.b16 %v260
        %v322 = vunpack.c.h.b16 %v260
        %v323 = vunpack.c.l.b16 %v261
        %v324 = vunpack.c.h.b16 %v261
        %v325 = vunpack.c.l.b16 %v262
        %v326 = vunpack.c.h.b16 %v262
        %v327 = vunpack.c.l.b16 %v263
        %v328 = vunpack.c.h.b16 %v263
        %v329 = vunpack.c.l.b16 %v264
        %v330 = vunpack.c.h.b16 %v264
        %v331 = vunpack.c.l.b16 %v265
        %v332 = vunpack.c.h.b16 %v265
        %v333 = vunpack.c.l.b16 %v266
        %v334 = vunpack.c.h.b16 %v266
        %v335 = vunpack.c.l.b16 %v267
        %v336 = vunpack.c.h.b16 %v267
        %v337 = vunpack.c.l.b16 %v268
        %v338 = vunpack.c.h.b16 %v268
        %v339 = vunpack.c.l.b16 %v269
        %v340 = vunpack.c.h.b16 %v269
        %v341 = vpack.c.b16 %v309, %v305
        %v342 = vpack.c.b16 %v310, %v306
        %v343 = vpack.c.b16 %v311, %v307
        %v344 = vpack.c.b16 %v312, %v308
        %v345 = vpack.c.b16 %v317, %v313
        %v346 = vpack.c.b16 %v318, %v314
        %v347 = vpack.c.b16 %v319, %v315
        %v348 = vpack.c.b16 %v320, %v316
        %v349 = vpack.c.b16 %v325, %v321
        %v350 = vpack.c.b16 %v326, %v322
        %v351 = vpack.c.b16 %v327, %v323
        %v352 = vpack.c.b16 %v328, %v324
        %v353 = vpack.c.b16 %v333, %v329
        %v354 = vpack.c.b16 %v334, %v330
        %v355 = vpack.c.b16 %v335, %v331
        %v356 = vpack.c.b16 %v336, %v332
        %v357 = vpack.c.b16 %v337, %v337
        %v358 = vpack.c.b16 %v338, %v338
        %v359 = vpack.c.b16 %v339, %v339
        %v360 = vpack.c.b16 %v340, %v340
        %vm377 = vcmask 588800
        %v379 = vsel %vm377, %v286, 0
        %vm381 = vcmask 1043456
        %v383 = vsel %vm381, %v357, 0
        %v386 = vsel %vm381, %v358, 0
        %v389 = vsel %vm381, %v359, 0
        %v392 = vsel %vm381, %v360, 0
        %394 = vmatprep.subr.bf16.mxu0 %v342
        %395 = vmatpush1.bf16.msra.mxu0 %v341
        %396 = vmatprep.subr.bf16.mxu0 %v346
        %397 = vmatpush1.bf16.msra.mxu0 %v345
        %398 = vmatprep.subr.bf16.mxu0 %v350
        %399 = vmatpush1.bf16.msra.mxu0 %v349
        %400 = vmatprep.subr.bf16.mxu0 %v354
        %401 = vmatpush1.bf16.msra.mxu0 %v353
        %402 = vmatprep.subr.bf16.mxu0 %v386
        %403 = vmatpush1.bf16.msra.mxu0 %v383
        %404 = vmatprep.subr.bf16.mxu0 0
        %405 = vmatpush1.bf16.msra.mxu0 0
        %406 = vmatprep.subr.bf16.mxu0 0
        %407 = vmatpush1.bf16.msra.mxu0 0
        %408 = vmatprep.subr.bf16.mxu0 0
        %409 = vmatpush1.bf16.msra.mxu0 0
        %410 = vmatprep.subr.bf16.mxu0 0
        %411 = vmatpush1.bf16.msra.mxu0 0
        %412 = vmatprep.subr.bf16.mxu0 0
        %413 = vmatpush1.bf16.msra.mxu0 0
        %414 = vmatprep.subr.bf16.mxu0 0
        %415 = vmatpush1.bf16.msra.mxu0 0
        %416 = vmatprep.subr.bf16.mxu0 0
        %417 = vmatpush1.bf16.msra.mxu0 0
        %418 = vmatprep.subr.bf16.mxu0 0
        %419 = vmatpush1.bf16.msra.mxu0 0
        %420 = vmatprep.subr.bf16.mxu0 0
        %421 = vmatpush1.bf16.msra.mxu0 0
        %422 = vmatprep.subr.bf16.mxu0 0
        %423 = vmatpush1.bf16.msra.mxu0 0
        %424 = vmatprep.subr.bf16.mxu0 0
        %425 = vmatpush1.bf16.msra.mxu0 0
        %426 = vmatprep.mubr.bf16.mxu0 0
        %427 = vmatmul.mubr.bf16.gmra.mrb[0].mxu0 %v379
        %v428 = vpop.f32.mrb[0].mxu0
        %v429 = vadd.f32 %v275, %v428
        %v430 = vpop.f32.mrb[0].mxu0
        %v431 = vadd.f32 %v275, %v430
        %v432 = vpop.f32.mrb[0].mxu0
        %v433 = vadd.f32 %v280, %v432
        %v434 = vpop.f32.mrb[0].mxu0
        %v435 = vadd.f32 %v280, %v434
        %436 = vdwg.mxu0
        %437 = vmatprep.subr.bf16.mxu0 %v344
        %438 = vmatpush1.bf16.msra.mxu0 %v343
        %439 = vmatprep.subr.bf16.mxu0 %v348
        %440 = vmatpush1.bf16.msra.mxu0 %v347
        %441 = vmatprep.subr.bf16.mxu0 %v352
        %442 = vmatpush1.bf16.msra.mxu0 %v351
        %443 = vmatprep.subr.bf16.mxu0 %v356
        %444 = vmatpush1.bf16.msra.mxu0 %v355
        %445 = vmatprep.subr.bf16.mxu0 %v392
        %446 = vmatpush1.bf16.msra.mxu0 %v389
        %447 = vmatprep.subr.bf16.mxu0 0
        %448 = vmatpush1.bf16.msra.mxu0 0
        %449 = vmatprep.subr.bf16.mxu0 0
        %450 = vmatpush1.bf16.msra.mxu0 0
        %451 = vmatprep.subr.bf16.mxu0 0
        %452 = vmatpush1.bf16.msra.mxu0 0
        %453 = vmatprep.subr.bf16.mxu0 0
        %454 = vmatpush1.bf16.msra.mxu0 0
        %455 = vmatprep.subr.bf16.mxu0 0
        %456 = vmatpush1.bf16.msra.mxu0 0
        %457 = vmatprep.subr.bf16.mxu0 0
        %458 = vmatpush1.bf16.msra.mxu0 0
        %459 = vmatprep.subr.bf16.mxu0 0
        %460 = vmatpush1.bf16.msra.mxu0 0
        %461 = vmatprep.subr.bf16.mxu0 0
        %462 = vmatpush1.bf16.msra.mxu0 0
        %463 = vmatprep.subr.bf16.mxu0 0
        %464 = vmatpush1.bf16.msra.mxu0 0
        %465 = vmatprep.subr.bf16.mxu0 0
        %466 = vmatpush1.bf16.msra.mxu0 0
        %467 = vmatprep.subr.bf16.mxu0 0
        %468 = vmatpush1.bf16.msra.mxu0 0
        %469 = vmatprep.mubr.bf16.mxu0 0
        %470 = vmatmul.mubr.bf16.gmra.mrb[0].mxu0 %v379
        %v471 = vpop.f32.mrb[0].mxu0
        %v472 = vadd.f32 %v275, %v471
        %v473 = vpop.f32.mrb[0].mxu0
        %v474 = vadd.f32 %v275, %v473
        %v475 = vpop.f32.mrb[0].mxu0
        %v476 = vadd.f32 %v280, %v475
        %v477 = vpop.f32.mrb[0].mxu0
        %v478 = vadd.f32 %v280, %v477
        %479 = vdwg.mxu0
        %s480 = sld [smem:[#allocation2]]
        %vm481 = vcmp.ge.f32.partialorder %v429, 0.0
        %vm482 = vcmp.ge.f32.partialorder %v431, 0.0
        %vm483 = vcmp.ge.f32.partialorder %v472, 0.0
        %vm484 = vcmp.ge.f32.partialorder %v474, 0.0
        %vm485 = vcmp.ge.f32.partialorder %v433, 0.0
        %vm486 = vcmp.ge.f32.partialorder %v435, 0.0
        %vm487 = vcmp.ge.f32.partialorder %v476, 0.0
        %vm488 = vcmp.ge.f32.partialorder %v478, 0.0
        %v489 = vstv %s480
        %v490 = vmul.f32 %v489, %v429
        %v491 = vmul.f32 %v489, %v431
        %v492 = vmul.f32 %v489, %v472
        %v493 = vmul.f32 %v489, %v474
        %v494 = vmul.f32 %v489, %v433
        %v495 = vmul.f32 %v489, %v435
        %v496 = vmul.f32 %v489, %v476
        %v497 = vmul.f32 %v489, %v478
        %v498 = vsel %vm481, %v429, %v490
        %v499 = vsel %vm482, %v431, %v491
        %v500 = vsel %vm483, %v472, %v492
        %v501 = vsel %vm484, %v474, %v493
        %v502 = vsel %vm485, %v433, %v494
        %v503 = vsel %vm486, %v435, %v495
        %v504 = vsel %vm487, %v476, %v496
        %v505 = vsel %vm488, %v478, %v497
        %506 = vst [vmem:[%s246] sm:$0xff] %v498
        %507 = vst [vmem:[%s246 + $0x8] sm:$0xff] %v499
        %508 = vst [vmem:[%s246 + $0x10] sm:$0xff] %v500
        %509 = vst [vmem:[%s246 + $0x18] sm:$0xff] %v501
        %510 = vst [vmem:[%s246 + $0x20] sm:$0xff] %v502
        %511 = vst [vmem:[%s246 + $0x28] sm:$0xff] %v503
        %512 = vst [vmem:[%s246 + $0x30] sm:$0xff] %v504
        %513 = vst [vmem:[%s246 + $0x38] sm:$0xff] %v505
        %s514 = sand.u32 %s113, 1
        %s515 = sand.u32 %s113, 1
        %s516 = smul.addr %s515, 64
        %s517 = scalar_lea.vmem [#allocation4], %s516
        // Predicated region
        $region60: #{net_forward.13} parent=54 // pred_check
          %p518 = pneg %p123
        $region61: #{net_forward.13} parent=54 // pred_check_branch
          %520 = sbr.rel (%p518) target = $region63
        $region62: #{net_forward.13} parent=54 // pred_region
          %s521 = smul.u32 4, %s16
          %s522 = smul.addr %s521, 8
          %s523 = scalar_lea.vmem %s4, %s522
          // Predicated region
          $region64: #{net_forward.13} parent=62 // pred_check
            _
          $region65: #{net_forward.13} parent=62 // pred_check_branch
            %525 = sbr.rel (0) target = $region67
          $region66: #{net_forward.13} parent=62 // pred_region
            // Predicated region
            $region68: #{net_forward.13} parent=66 // pred_check
              _
            $region69: #{net_forward.13} parent=66 // pred_check_branch
              %527 = sbr.rel (0) target = $region71
            $region70: #{net_forward.13} parent=66 // pred_region
              loop: start=0, step=1, limit=1
              $region72: #{net_forward.13} parent=70 // loop_pre_header
                _
              $region73: #{net_forward.13} parent=70 // loop_header
                %s529 = sphi 0, %s533
                %p530 = scmp.ge.s32.totalorder %s529, 1
                %s534 = sphi %s517, %s517
                %s535 = sphi %s523, %s523
              $region74: #{net_forward.13} parent=70 // loop_header_branch
                %532 = sbr.rel (%p530) target = $region78
              $region75: #{net_forward.13} parent=70 // loop_body
                %v536 = vld [vmem:[%s534] sm:$0xff]
                %537 = vst [vmem:[%s535] sm:$0xff] %v536
                %v538 = vld [vmem:[%s534 + $0x8] sm:$0xff]
                %539 = vst [vmem:[%s535 + $0x8] sm:$0xff] %v538
                %v540 = vld [vmem:[%s534 + $0x10] sm:$0xff]
                %541 = vst [vmem:[%s535 + $0x10] sm:$0xff] %v540
                %v542 = vld [vmem:[%s534 + $0x18] sm:$0xff]
                %543 = vst [vmem:[%s535 + $0x18] sm:$0xff] %v542
                %v544 = vld [vmem:[%s534 + $0x20] sm:$0xff]
                %545 = vst [vmem:[%s535 + $0x60] sm:$0xff] %v544
                %v546 = vld [vmem:[%s534 + $0x28] sm:$0xff]
                %547 = vst [vmem:[%s535 + $0x68] sm:$0xff] %v546
                %v548 = vld [vmem:[%s534 + $0x30] sm:$0xff]
                %549 = vst [vmem:[%s535 + $0x70] sm:$0xff] %v548
                %v550 = vld [vmem:[%s534 + $0x38] sm:$0xff]
                %551 = vst [vmem:[%s535 + $0x78] sm:$0xff] %v550
              $region76: #{net_forward.13} parent=70 // loop_footer
                %s533 = sadd.s32 1, %s529
              $region77: #{net_forward.13} parent=70 // loop_footer_branch
                %528 = sbr.rel target = $region73
              $region78: #{net_forward.13} parent=70 // loop_exit
                _
            $region71: #{net_forward.13} parent=66 // pred_fallthru
              _
            // Predicated region
            $region79: #{net_forward.13} parent=66 // pred_check
              _
            $region80: #{net_forward.13} parent=66 // pred_check_branch
              %553 = sbr.rel target = $region82
            $region81: #{net_forward.13} parent=66 // pred_region
              _
            $region82: #{net_forward.13} parent=66 // pred_fallthru
              _
          $region67: #{net_forward.13} parent=62 // pred_fallthru
            _
          %554 = vnop
        $region63: #{net_forward.13} parent=54 // pred_fallthru
          _
      $region55: #{net_forward.13} parent=5 // pred_fallthru
        _
      %p555 = scmp.le.s32.totalorder 2, %s11
      // Predicated region
      $region83: #{net_forward.13} parent=5 // pred_check
        %p556 = pneg %p555
      $region84: #{net_forward.13} parent=5 // pred_check_branch
        %558 = sbr.rel (%p556) target = $region86
      $region85: #{net_forward.13} parent=5 // pred_region
        %s559 = ssub.s32 %s11, 2
        // Predicated region
        $region87: #{net_forward.13} parent=85 // pred_check
          %p560 = pneg %p129
        $region88: #{net_forward.13} parent=85 // pred_check_branch
          %562 = sbr.rel (%p560) target = $region90
        $region89: #{net_forward.13} parent=85 // pred_region
          %s563 = sand.u32 %s114, 1
          %s564 = sand.u32 %s114, 1
          %s565 = smul.addr %s564, 64
          %s566 = scalar_lea.vmem [#allocation4], %s565
        $region90: #{net_forward.13} parent=85 // pred_fallthru
          _
      $region86: #{net_forward.13} parent=5 // pred_fallthru
        _
    $region6: #{net_forward.13} parent=1 // loop_footer
      %s15 = sadd.s32 1, %s11
    $region7: #{net_forward.13} parent=1 // loop_footer_branch
      %10 = sbr.rel target = $region3
    $region8: #{net_forward.13} parent=1 // loop_exit
      _

// kernel: net_forward.14
$region0: #{net_forward.14}
  #allocation0 [shape = 'u32[]', space=smem, size = 0x4, offset = 0x4, fixed_abs, tag = 'smem constant byte address 0x4 - core index']
  #allocation1 [shape = 'u32[144,128]{1,0:T(1,128)}', space=vmem, size = 0x12000, scoped, tag = 'internal scratch']
  #allocation2 [shape = 'f32[1]{0:T(128)S(6)}', space=smem, size = 0x200, scoped, tag = 'scoped memory for net_forward.14']
  %s0 = inlined_call_operand.<no memory space> [shape: f32[1], index: 0, kind: input, shape index: {}]
  %s1 = inlined_call_operand.vmem [shape: bf16[16,144], index: 1, kind: input, shape index: {}]
  %s2 = inlined_call_operand.vmem [shape: bf16[144,1536], index: 2, kind: input, shape index: {}]
  %s3 = inlined_call_operand.vmem [shape: f32[16,1], index: 3, kind: input, shape index: {}]
  %s4 = inlined_call_operand.vmem [shape: f32[16,1536], index: 4, kind: output, shape index: {}]
  %s5 = sld [smem:[#allocation0]]
  $region91: #{net_forward.14} parent=0
    _
  %s7 = ssub.s32 1, %s5
  %s8 = scalar_select 0, %s7, %s5
  %9 = sst [smem:[#allocation2]] %s0
  $region1: #{net_forward.14} parent=0
    #allocation3 [shape = 'u8[294912]{0}', space=vmem, size = 0x48000, scoped, tag = 'input window, operand 2']
    #allocation4 [shape = 'u8[65536]{0}', space=vmem, size = 0x10000, scoped, tag = 'output window, operand 0']
    loop: start=0, step=1, limit=5
    $region2: #{net_forward.14} parent=1 // loop_pre_header
      _
    $region3: #{net_forward.14} parent=1 // loop_header
      %s11 = sphi 0, %s15
      %p12 = scmp.ge.s32.totalorder %s11, 5
      %s19 = sphi 0, %s19
      %s21 = sphi 0, %s19
      %s22 = sphi 0, %s21
      %s36 = sphi 0, %s22
      %s40 = sphi 0, %s40
      %s42 = sphi 0, %s40
      %s43 = sphi 0, %s42
      %s57 = sphi 0, %s43
      %s63 = sphi 0, %s65
      %s66 = sphi 0, %s63
      %s67 = sphi 0, %s66
      %s83 = sphi 0, %s67
      %s87 = sphi 0, %s87
      %s89 = sphi 0, %s87
      %s90 = sphi 0, %s89
      %s104 = sphi 0, %s90
      %s110 = sphi 0, %s112
      %s113 = sphi 0, %s110
      %s114 = sphi 0, %s113
      %s130 = sphi 0, %s114
    $region4: #{net_forward.14} parent=1 // loop_header_branch
      %14 = sbr.rel (%p12) target = $region8
    $region5: #{net_forward.14} parent=1 // loop_body
      %s16 = ssub.s32 %s11, 1
      %s17 = ssub.s32 %s11, 2
      %s18 = sadd.s32 %s11, 1
      %s20 = sadd.s32 %s19, 1
      %p23 = scmp.eq.s32.totalorder %s11, 2
      %p24 = scmp.ne.s32.totalorder %s19, %s21
      %p25 = scmp.eq.s32.totalorder %s11, 0
      %p26 = por %p24, %p25
      %p27 = scmp.ne.s32.totalorder %s19, %s21
      %p28 = scmp.eq.s32.totalorder %s16, 2
      %p29 = por %p27, %p28
      %p30 = scmp.ne.s32.totalorder %s21, %s22
      %p31 = scmp.eq.s32.totalorder %s16, 0
      %p32 = por %p30, %p31
      %p33 = scmp.ne.s32.totalorder %s21, %s22
      %p34 = scmp.eq.s32.totalorder %s17, 2
      %p35 = por %p33, %p34
      %p37 = scmp.ne.s32.totalorder %s22, %s36
      %p38 = scmp.eq.s32.totalorder %s17, 0
      %p39 = por %p37, %p38
      %s41 = sadd.s32 %s40, 1
      %p44 = scmp.eq.s32.totalorder %s11, 2
      %p45 = scmp.ne.s32.totalorder %s40, %s42
      %p46 = scmp.eq.s32.totalorder %s11, 0
      %p47 = por %p45, %p46
      %p48 = scmp.ne.s32.totalorder %s40, %s42
      %p49 = scmp.eq.s32.totalorder %s16, 2
      %p50 = por %p48, %p49
      %p51 = scmp.ne.s32.totalorder %s42, %s43
      %p52 = scmp.eq.s32.totalorder %s16, 0
      %p53 = por %p51, %p52
      %p54 = scmp.ne.s32.totalorder %s42, %s43
      %p55 = scmp.eq.s32.totalorder %s17, 2
      %p56 = por %p54, %p55
      %p58 = scmp.ne.s32.totalorder %s43, %s57
      %p59 = scmp.eq.s32.totalorder %s17, 0
      %p60 = por %p58, %p59
      %s61 = ssub.s32 %s11, %s18
      %p62 = scmp.eq.s32.totalorder %s61, 0
      %s64 = sadd.s32 %s63, 1
      %s65 = scalar_select %p62, %s63, %s64
      %p68 = pneg %p62
      %p69 = scmp.eq.s32.totalorder %s11, 2
      %p70 = por %p68, %p69
      %p71 = scmp.ne.s32.totalorder %s63, %s66
      %p72 = scmp.eq.s32.totalorder %s11, 0
      %p73 = por %p71, %p72
      %p74 = scmp.ne.s32.totalorder %s63, %s66
      %p75 = scmp.eq.s32.totalorder %s16, 2
      %p76 = por %p74, %p75
      %p77 = scmp.ne.s32.totalorder %s66, %s67
      %p78 = scmp.eq.s32.totalorder %s16, 0
      %p79 = por %p77, %p78
      %p80 = scmp.ne.s32.totalorder %s66, %s67
      %p81 = scmp.eq.s32.totalorder %s17, 2
      %p82 = por %p80, %p81
      %p84 = scmp.ne.s32.totalorder %s67, %s83
      %p85 = scmp.eq.s32.totalorder %s17, 0
      %p86 = por %p84, %p85
      %s88 = sadd.s32 %s87, 1
      %p91 = scmp.eq.s32.totalorder %s11, 2
      %p92 = scmp.ne.s32.totalorder %s87, %s89
      %p93 = scmp.eq.s32.totalorder %s11, 0
      %p94 = por %p92, %p93
      %p95 = scmp.ne.s32.totalorder %s87, %s89
      %p96 = scmp.eq.s32.totalorder %s16, 2
      %p97 = por %p95, %p96
      %p98 = scmp.ne.s32.totalorder %s89, %s90
      %p99 = scmp.eq.s32.totalorder %s16, 0
      %p100 = por %p98, %p99
      %p101 = scmp.ne.s32.totalorder %s89, %s90
      %p102 = scmp.eq.s32.totalorder %s17, 2
      %p103 = por %p101, %p102
      %p105 = scmp.ne.s32.totalorder %s90, %s104
      %p106 = scmp.eq.s32.totalorder %s17, 0
      %p107 = por %p105, %p106
      %s108 = ssub.s32 %s11, %s18
      %p109 = scmp.eq.s32.totalorder %s108, 0
      %s111 = sadd.s32 %s110, 1
      %s112 = scalar_select %p109, %s110, %s111
      %p115 = pneg %p109
      %p116 = scmp.eq.s32.totalorder %s11, 2
      %p117 = por %p115, %p116
      %p118 = scmp.ne.s32.totalorder %s110, %s113
      %p119 = scmp.eq.s32.totalorder %s11, 0
      %p120 = por %p118, %p119
      %p121 = scmp.ne.s32.totalorder %s110, %s113
      %p122 = scmp.eq.s32.totalorder %s16, 2
      %p123 = por %p121, %p122
      %p124 = scmp.ne.s32.totalorder %s113, %s114
      %p125 = scmp.eq.s32.totalorder %s16, 0
      %p126 = por %p124, %p125
      %p127 = scmp.ne.s32.totalorder %s113, %s114
      %p128 = scmp.eq.s32.totalorder %s17, 2
      %p129 = por %p127, %p128
      %p131 = scmp.ne.s32.totalorder %s114, %s130
      %p132 = scmp.eq.s32.totalorder %s17, 0
      %p133 = por %p131, %p132
      %p134 = scmp.le.s32.totalorder 1, %s11
      %p135 = scmp.lt.s32.totalorder %s11, 4
      %p136 = pnand %p134, %p135
      %p137 = pneg %p136
      // Predicated region
      $region9: #{net_forward.14} parent=5 // pred_check
        _
      $region10: #{net_forward.14} parent=5 // pred_check_branch
        %139 = sbr.rel (%p136) target = $region12
      $region11: #{net_forward.14} parent=5 // pred_region
        %s140 = ssub.s32 %s11, 1
        // Predicated region
        $region13: #{net_forward.14} parent=11 // pred_check
          %p141 = pneg %p32
        $region14: #{net_forward.14} parent=11 // pred_check_branch
          %143 = sbr.rel (%p141) target = $region16
        $region15: #{net_forward.14} parent=11 // pred_region
          _
        $region16: #{net_forward.14} parent=11 // pred_fallthru
          _
        // Predicated region
        $region17: #{net_forward.14} parent=11 // pred_check
          %p144 = pneg %p53
        $region18: #{net_forward.14} parent=11 // pred_check_branch
          %146 = sbr.rel (%p144) target = $region20
        $region19: #{net_forward.14} parent=11 // pred_region
          _
        $region20: #{net_forward.14} parent=11 // pred_fallthru
          _
        // Predicated region
        $region21: #{net_forward.14} parent=11 // pred_check
          %p147 = pneg %p100
        $region22: #{net_forward.14} parent=11 // pred_check_branch
          %149 = sbr.rel (%p147) target = $region24
        $region23: #{net_forward.14} parent=11 // pred_region
          _
        $region24: #{net_forward.14} parent=11 // pred_fallthru
          _
      $region12: #{net_forward.14} parent=5 // pred_fallthru
        _
      %p150 = scmp.lt.s32.totalorder %s11, 3
      // Predicated region
      $region25: #{net_forward.14} parent=5 // pred_check
        %p151 = pneg %p150
      $region26: #{net_forward.14} parent=5 // pred_check_branch
        %153 = sbr.rel (%p151) target = $region28
      $region27: #{net_forward.14} parent=5 // pred_region
        // Predicated region
        $region29: #{net_forward.14} parent=27 // pred_check
          %p154 = pneg %p73
        $region30: #{net_forward.14} parent=27 // pred_check_branch
          %156 = sbr.rel (%p154) target = $region32
        $region31: #{net_forward.14} parent=27 // pred_region
          %s157 = sand.u32 %s63, 1
          %s158 = sand.u32 %s63, 1
          %s159 = smul.addr %s158, 288
          %s160 = scalar_lea.vmem [#allocation3], %s159
          %s161 = smul.u32 4, %s11
          %s162 = smul.addr %s161, 4
          %s163 = scalar_lea.vmem %s2, %s162
          // Predicated region
          $region33: #{net_forward.14} parent=31 // pred_check
            _
          $region34: #{net_forward.14} parent=31 // pred_check_branch
            %165 = sbr.rel (0) target = $region36
          $region35: #{net_forward.14} parent=31 // pred_region
            // Predicated region
            $region37: #{net_forward.14} parent=35 // pred_check
              _
            $region38: #{net_forward.14} parent=35 // pred_check_branch
              %167 = sbr.rel (0) target = $region40
            $region39: #{net_forward.14} parent=35 // pred_region
              loop: start=0, step=1, limit=1
              $region41: #{net_forward.14} parent=39 // loop_pre_header
                _
              $region42: #{net_forward.14} parent=39 // loop_header
                %s169 = sphi 0, %s173
                %p170 = scmp.ge.s32.totalorder %s169, 1
                %s174 = sphi %s163, %s163
                %s175 = sphi %s160, %s160
              $region43: #{net_forward.14} parent=39 // loop_header_branch
                %172 = sbr.rel (%p170) target = $region47
              $region44: #{net_forward.14} parent=39 // loop_body
                %v176 = vld [vmem:[%s174] sm:$0xff]
                %177 = vst [vmem:[%s175] sm:$0xff] %v176
                %v178 = vld [vmem:[%s174 + $0x8] sm:$0xff]
                %179 = vst [vmem:[%s175 + $0x8] sm:$0xff] %v178
                %v180 = vld [vmem:[%s174 + $0x30] sm:$0xff]
                %181 = vst [vmem:[%s175 + $0x10] sm:$0xff] %v180
                %v182 = vld [vmem:[%s174 + $0x38] sm:$0xff]
                %183 = vst [vmem:[%s175 + $0x18] sm:$0xff] %v182
                %v184 = vld [vmem:[%s174 + $0x60] sm:$0xff]
                %185 = vst [vmem:[%s175 + $0x20] sm:$0xff] %v184
                %v186 = vld [vmem:[%s174 + $0x68] sm:$0xff]
                %187 = vst [vmem:[%s175 + $0x28] sm:$0xff] %v186
                %v188 = vld [vmem:[%s174 + $0x90] sm:$0xff]
                %189 = vst [vmem:[%s175 + $0x30] sm:$0xff] %v188
                %v190 = vld [vmem:[%s174 + $0x98] sm:$0xff]
                %191 = vst [vmem:[%s175 + $0x38] sm:$0xff] %v190
                %v192 = vld [vmem:[%s174 + $0xc0] sm:$0xff]
                %193 = vst [vmem:[%s175 + $0x40] sm:$0xff] %v192
                %v194 = vld [vmem:[%s174 + $0xc8] sm:$0xff]
                %195 = vst [vmem:[%s175 + $0x48] sm:$0xff] %v194
                %v196 = vld [vmem:[%s174 + $0xf0] sm:$0xff]
                %197 = vst [vmem:[%s175 + $0x50] sm:$0xff] %v196
                %v198 = vld [vmem:[%s174 + $0xf8] sm:$0xff]
                %199 = vst [vmem:[%s175 + $0x58] sm:$0xff] %v198
                %v200 = vld [vmem:[%s174 + $0x120] sm:$0xff]
                %201 = vst [vmem:[%s175 + $0x60] sm:$0xff] %v200
                %v202 = vld [vmem:[%s174 + $0x128] sm:$0xff]
                %203 = vst [vmem:[%s175 + $0x68] sm:$0xff] %v202
                %v204 = vld [vmem:[%s174 + $0x150] sm:$0xff]
                %205 = vst [vmem:[%s175 + $0x70] sm:$0xff] %v204
                %v206 = vld [vmem:[%s174 + $0x158] sm:$0xff]
                %207 = vst [vmem:[%s175 + $0x78] sm:$0xff] %v206
                %v208 = vld [vmem:[%s174 + $0x180] sm:$0xff]
                %209 = vst [vmem:[%s175 + $0x80] sm:$0xff] %v208
                %v210 = vld [vmem:[%s174 + $0x188] sm:$0xff]
                %211 = vst [vmem:[%s175 + $0x88] sm:$0xff] %v210
                %v212 = vld [vmem:[%s174 + $0x1b0] sm:$0xff]
                %213 = vst [vmem:[%s175 + $0x90] sm:$0xff] %v212
                %v214 = vld [vmem:[%s174 + $0x1b8] sm:$0xff]
                %215 = vst [vmem:[%s175 + $0x98] sm:$0xff] %v214
                %v216 = vld [vmem:[%s174 + $0x1e0] sm:$0xff]
                %217 = vst [vmem:[%s175 + $0xa0] sm:$0xff] %v216
                %v218 = vld [vmem:[%s174 + $0x1e8] sm:$0xff]
                %219 = vst [vmem:[%s175 + $0xa8] sm:$0xff] %v218
                %v220 = vld [vmem:[%s174 + $0x210] sm:$0xff]
                %221 = vst [vmem:[%s175 + $0xb0] sm:$0xff] %v220
                %v222 = vld [vmem:[%s174 + $0x218] sm:$0xff]
                %223 = vst [vmem:[%s175 + $0xb8] sm:$0xff] %v222
                %v224 = vld [vmem:[%s174 + $0x240] sm:$0xff]
                %225 = vst [vmem:[%s175 + $0xc0] sm:$0xff] %v224
                %v226 = vld [vmem:[%s174 + $0x248] sm:$0xff]
                %227 = vst [vmem:[%s175 + $0xc8] sm:$0xff] %v226
                %v228 = vld [vmem:[%s174 + $0x270] sm:$0xff]
                %229 = vst [vmem:[%s175 + $0xd0] sm:$0xff] %v228
                %v230 = vld [vmem:[%s174 + $0x278] sm:$0xff]
                %231 = vst [vmem:[%s175 + $0xd8] sm:$0xff] %v230
                %v232 = vld [vmem:[%s174 + $0x2a0] sm:$0xff]
                %233 = vst [vmem:[%s175 + $0xe0] sm:$0xff] %v232
                %v234 = vld [vmem:[%s174 + $0x2a8] sm:$0xff]
                %235 = vst [vmem:[%s175 + $0xe8] sm:$0xff] %v234
                %v236 = vld [vmem:[%s174 + $0x2d0] sm:$0xff]
                %237 = vst [vmem:[%s175 + $0xf0] sm:$0xff] %v236
                %v238 = vld [vmem:[%s174 + $0x2d8] sm:$0xff]
                %239 = vst [vmem:[%s175 + $0xf8] sm:$0xff] %v238
                %v240 = vld [vmem:[%s174 + $0x300] sm:$0xff]
                %241 = vst [vmem:[%s175 + $0x100] sm:$0xff] %v240
                %v242 = vld [vmem:[%s174 + $0x308] sm:$0xff]
                %243 = vst [vmem:[%s175 + $0x108] sm:$0xff] %v242
                %v244 = vld [vmem:[%s174 + $0x330] sm:$0xff]
                %245 = vst [vmem:[%s175 + $0x110] sm:$0xff] %v244
                %v246 = vld [vmem:[%s174 + $0x338] sm:$0xff]
                %247 = vst [vmem:[%s175 + $0x118] sm:$0xff] %v246
              $region45: #{net_forward.14} parent=39 // loop_footer
                %s173 = sadd.s32 1, %s169
              $region46: #{net_forward.14} parent=39 // loop_footer_branch
                %168 = sbr.rel target = $region42
              $region47: #{net_forward.14} parent=39 // loop_exit
                _
            $region40: #{net_forward.14} parent=35 // pred_fallthru
              _
            // Predicated region
            $region48: #{net_forward.14} parent=35 // pred_check
              _
            $region49: #{net_forward.14} parent=35 // pred_check_branch
              %249 = sbr.rel target = $region51
            $region50: #{net_forward.14} parent=35 // pred_region
              _
            $region51: #{net_forward.14} parent=35 // pred_fallthru
              _
          $region36: #{net_forward.14} parent=31 // pred_fallthru
            _
          %250 = vnop
        $region32: #{net_forward.14} parent=27 // pred_fallthru
          _
      $region28: #{net_forward.14} parent=5 // pred_fallthru
        _
      %p251 = scmp.le.s32.totalorder 1, %s11
      %p252 = scmp.lt.s32.totalorder %s11, 4
      %p253 = pnand %p251, %p252
      %p254 = pneg %p253
      // Predicated region
      $region52: #{net_forward.14} parent=5 // pred_check
        _
      $region53: #{net_forward.14} parent=5 // pred_check_branch
        %256 = sbr.rel (%p253) target = $region55
      $region54: #{net_forward.14} parent=5 // pred_region
        %s257 = ssub.s32 %s11, 1
        %s258 = sand.u32 %s66, 1
        %s259 = sand.u32 %s66, 1
        %s260 = smul.addr %s259, 288
        %s261 = scalar_lea.vmem [#allocation3], %s260
        // Predicated region
        $region56: #{net_forward.14} parent=54 // pred_check
          %p262 = pneg %p79
        $region57: #{net_forward.14} parent=54 // pred_check_branch
          %264 = sbr.rel (%p262) target = $region59
        $region58: #{net_forward.14} parent=54 // pred_region
          _
        $region59: #{net_forward.14} parent=54 // pred_fallthru
          _
        %p265 = pneg %p32
        %p266 = pneg %p29
        %p267 = pneg %p53
        %p268 = pneg %p50
        %s269 = sand.u32 %s66, 1
        %s270 = sand.u32 %s66, 1
        %s271 = smul.addr %s270, 288
        %s272 = scalar_lea.vmem [#allocation3], %s271
        %p273 = pneg %p79
        %p274 = pneg %p76
        %p275 = pneg %p100
        %p276 = pneg %p97
        %p277 = pneg %p126
        %p278 = pneg %p123
        %s279 = sand.u32 %s113, 1
        %s280 = sand.u32 %s113, 1
        %s281 = smul.addr %s280, 64
        %s282 = scalar_lea.vmem [#allocation4], %s281
        %s283 = smul.u32 4, %s16
        %s284 = smul.u32 4, %s16
        %v286 = vld [vmem:[%s1] sm:$0xff]
        %v287 = vld [vmem:[%s1 + $0x8] sm:$0xff]
        %v288 = vld [vmem:[%s261] sm:$0xff]
        %v289 = vld [vmem:[%s261 + $0x8] sm:$0xff]
        %v290 = vld [vmem:[%s261 + $0x10] sm:$0xff]
        %v291 = vld [vmem:[%s261 + $0x18] sm:$0xff]
        %v292 = vld [vmem:[%s261 + $0x20] sm:$0xff]
        %v293 = vld [vmem:[%s261 + $0x28] sm:$0xff]
        %v294 = vld [vmem:[%s261 + $0x30] sm:$0xff]
        %v295 = vld [vmem:[%s261 + $0x38] sm:$0xff]
        %v296 = vld [vmem:[%s261 + $0x40] sm:$0xff]
        %v297 = vld [vmem:[%s261 + $0x48] sm:$0xff]
        %v298 = vld [vmem:[%s261 + $0x50] sm:$0xff]
        %v299 = vld [vmem:[%s261 + $0x58] sm:$0xff]
        %v300 = vld [vmem:[%s261 + $0x60] sm:$0xff]
        %v301 = vld [vmem:[%s261 + $0x68] sm:$0xff]
        %v302 = vld [vmem:[%s261 + $0x70] sm:$0xff]
        %v303 = vld [vmem:[%s261 + $0x78] sm:$0xff]
        %v304 = vld [vmem:[%s261 + $0x80] sm:$0xff]
        %v305 = vld [vmem:[%s261 + $0x88] sm:$0xff]
        %v306 = vld [vmem:[%s261 + $0x90] sm:$0xff]
        %v307 = vld [vmem:[%s261 + $0x98] sm:$0xff]
        %v308 = vld [vmem:[%s261 + $0xa0] sm:$0xff]
        %v309 = vld [vmem:[%s261 + $0xa8] sm:$0xff]
        %v310 = vld [vmem:[%s261 + $0xb0] sm:$0xff]
        %v311 = vld [vmem:[%s261 + $0xb8] sm:$0xff]
        %v312 = vld [vmem:[%s261 + $0xc0] sm:$0xff]
        %v313 = vld [vmem:[%s261 + $0xc8] sm:$0xff]
        %v314 = vld [vmem:[%s261 + $0xd0] sm:$0xff]
        %v315 = vld [vmem:[%s261 + $0xd8] sm:$0xff]
        %v316 = vld [vmem:[%s261 + $0xe0] sm:$0xff]
        %v317 = vld [vmem:[%s261 + $0xe8] sm:$0xff]
        %v318 = vld [vmem:[%s261 + $0xf0] sm:$0xff]
        %v319 = vld [vmem:[%s261 + $0xf8] sm:$0xff]
        %v320 = vld [vmem:[%s261 + $0x100] sm:$0xff]
        %v321 = vld [vmem:[%s261 + $0x108] sm:$0xff]
        %v322 = vld [vmem:[%s261 + $0x110] sm:$0xff]
        %v323 = vld [vmem:[%s261 + $0x118] sm:$0xff]
        %v324 = vld [vmem:[%s3] sm:$0xff]
        %v325 = vld [vmem:[%s3 + $0x8] sm:$0xff]
        %327 = vset.pattern.permute.xlu0 0
        %328 = vperm.xlu0 %327, %v324
        %v329 = vpop.permute.xlu0 %328
        %332 = vset.pattern.permute.xlu0 0
        %333 = vperm.xlu0 %332, %v325
        %v334 = vpop.permute.xlu0 %333
        %v338 = vunpack.c.l.b16 %v286
        %v339 = vunpack.c.h.b16 %v286
        %v340 = vunpack.c.l.b16 %v287
        %v341 = vunpack.c.h.b16 %v287
        %v342 = vpack.c.b16 %v340, %v338
        %v343 = vpack.c.b16 %v341, %v339
        %v381 = vunpack.c.l.b16 %v288
        %v382 = vunpack.c.h.b16 %v288
        %v383 = vunpack.c.l.b16 %v289
        %v384 = vunpack.c.h.b16 %v289
        %v385 = vunpack.c.l.b16 %v290
        %v386 = vunpack.c.h.b16 %v290
        %v387 = vunpack.c.l.b16 %v291
        %v388 = vunpack.c.h.b16 %v291
        %v389 = vunpack.c.l.b16 %v292
        %v390 = vunpack.c.h.b16 %v292
        %v391 = vunpack.c.l.b16 %v293
        %v392 = vunpack.c.h.b16 %v293
        %v393 = vunpack.c.l.b16 %v294
        %v394 = vunpack.c.h.b16 %v294
        %v395 = vunpack.c.l.b16 %v295
        %v396 = vunpack.c.h.b16 %v295
        %v397 = vunpack.c.l.b16 %v296
        %v398 = vunpack.c.h.b16 %v296
        %v399 = vunpack.c.l.b16 %v297
        %v400 = vunpack.c.h.b16 %v297
        %v401 = vunpack.c.l.b16 %v298
        %v402 = vunpack.c.h.b16 %v298
        %v403 = vunpack.c.l.b16 %v299
        %v404 = vunpack.c.h.b16 %v299
        %v405 = vunpack.c.l.b16 %v300
        %v406 = vunpack.c.h.b16 %v300
        %v407 = vunpack.c.l.b16 %v301
        %v408 = vunpack.c.h.b16 %v301
        %v409 = vunpack.c.l.b16 %v302
        %v410 = vunpack.c.h.b16 %v302
        %v411 = vunpack.c.l.b16 %v303
        %v412 = vunpack.c.h.b16 %v303
        %v413 = vunpack.c.l.b16 %v304
        %v414 = vunpack.c.h.b16 %v304
        %v415 = vunpack.c.l.b16 %v305
        %v416 = vunpack.c.h.b16 %v305
        %v417 = vunpack.c.l.b16 %v306
        %v418 = vunpack.c.h.b16 %v306
        %v419 = vunpack.c.l.b16 %v307
        %v420 = vunpack.c.h.b16 %v307
        %v421 = vunpack.c.l.b16 %v308
        %v422 = vunpack.c.h.b16 %v308
        %v423 = vunpack.c.l.b16 %v309
        %v424 = vunpack.c.h.b16 %v309
        %v425 = vunpack.c.l.b16 %v310
        %v426 = vunpack.c.h.b16 %v310
        %v427 = vunpack.c.l.b16 %v311
        %v428 = vunpack.c.h.b16 %v311
        %v429 = vunpack.c.l.b16 %v312
        %v430 = vunpack.c.h.b16 %v312
        %v431 = vunpack.c.l.b16 %v313
        %v432 = vunpack.c.h.b16 %v313
        %v433 = vunpack.c.l.b16 %v314
        %v434 = vunpack.c.h.b16 %v314
        %v435 = vunpack.c.l.b16 %v315
        %v436 = vunpack.c.h.b16 %v315
        %v437 = vunpack.c.l.b16 %v316
        %v438 = vunpack.c.h.b16 %v316
        %v439 = vunpack.c.l.b16 %v317
        %v440 = vunpack.c.h.b16 %v317
        %v441 = vunpack.c.l.b16 %v318
        %v442 = vunpack.c.h.b16 %v318
        %v443 = vunpack.c.l.b16 %v319
        %v444 = vunpack.c.h.b16 %v319
        %v445 = vunpack.c.l.b16 %v320
        %v446 = vunpack.c.h.b16 %v320
        %v447 = vunpack.c.l.b16 %v321
        %v448 = vunpack.c.h.b16 %v321
        %v449 = vunpack.c.l.b16 %v322
        %v450 = vunpack.c.h.b16 %v322
        %v451 = vunpack.c.l.b16 %v323
        %v452 = vunpack.c.h.b16 %v323
        %v453 = vpack.c.b16 %v385, %v381
        %v454 = vpack.c.b16 %v386, %v382
        %v455 = vpack.c.b16 %v387, %v383
        %v456 = vpack.c.b16 %v388, %v384
        %v457 = vpack.c.b16 %v393, %v389
        %v458 = vpack.c.b16 %v394, %v390
        %v459 = vpack.c.b16 %v395, %v391
        %v460 = vpack.c.b16 %v396, %v392
        %v461 = vpack.c.b16 %v401, %v397
        %v462 = vpack.c.b16 %v402, %v398
        %v463 = vpack.c.b16 %v403, %v399
        %v464 = vpack.c.b16 %v404, %v400
        %v465 = vpack.c.b16 %v409, %v405
        %v466 = vpack.c.b16 %v410, %v406
        %v467 = vpack.c.b16 %v411, %v407
        %v468 = vpack.c.b16 %v412, %v408
        %v469 = vpack.c.b16 %v417, %v413
        %v470 = vpack.c.b16 %v418, %v414
        %v471 = vpack.c.b16 %v419, %v415
        %v472 = vpack.c.b16 %v420, %v416
        %v473 = vpack.c.b16 %v425, %v421
        %v474 = vpack.c.b16 %v426, %v422
        %v475 = vpack.c.b16 %v427, %v423
        %v476 = vpack.c.b16 %v428, %v424
        %v477 = vpack.c.b16 %v433, %v429
        %v478 = vpack.c.b16 %v434, %v430
        %v479 = vpack.c.b16 %v435, %v431
        %v480 = vpack.c.b16 %v436, %v432
        %v481 = vpack.c.b16 %v441, %v437
        %v482 = vpack.c.b16 %v442, %v438
        %v483 = vpack.c.b16 %v443, %v439
        %v484 = vpack.c.b16 %v444, %v440
        %v485 = vpack.c.b16 %v449, %v445
        %v486 = vpack.c.b16 %v450, %v446
        %v487 = vpack.c.b16 %v451, %v447
        %v488 = vpack.c.b16 %v452, %v448
        %vm525 = vcmask 130048
        %v527 = vsel %vm525, %v343, 0
        %529 = vmatprep.subr.bf16.mxu0 %v454
        %530 = vmatpush1.bf16.msra.mxu0 %v453
        %531 = vmatprep.subr.bf16.mxu0 %v458
        %532 = vmatpush1.bf16.msra.mxu0 %v457
        %533 = vmatprep.subr.bf16.mxu0 %v462
        %534 = vmatpush1.bf16.msra.mxu0 %v461
        %535 = vmatprep.subr.bf16.mxu0 %v466
        %536 = vmatpush1.bf16.msra.mxu0 %v465
        %537 = vmatprep.subr.bf16.mxu0 %v470
        %538 = vmatpush1.bf16.msra.mxu0 %v469
        %539 = vmatprep.subr.bf16.mxu0 %v474
        %540 = vmatpush1.bf16.msra.mxu0 %v473
        %541 = vmatprep.subr.bf16.mxu0 %v478
        %542 = vmatpush1.bf16.msra.mxu0 %v477
        %543 = vmatprep.subr.bf16.mxu0 %v482
        %544 = vmatpush1.bf16.msra.mxu0 %v481
        %545 = vmatprep.subr.bf16.mxu0 %v486
        %546 = vmatpush1.bf16.msra.mxu0 %v485
        %547 = vmatprep.subr.bf16.mxu0 0
        %548 = vmatpush1.bf16.msra.mxu0 0
        %549 = vmatprep.subr.bf16.mxu0 0
        %550 = vmatpush1.bf16.msra.mxu0 0
        %551 = vmatprep.subr.bf16.mxu0 0
        %552 = vmatpush1.bf16.msra.mxu0 0
        %553 = vmatprep.subr.bf16.mxu0 0
        %554 = vmatpush1.bf16.msra.mxu0 0
        %555 = vmatprep.subr.bf16.mxu0 0
        %556 = vmatpush1.bf16.msra.mxu0 0
        %557 = vmatprep.subr.bf16.mxu0 0
        %558 = vmatpush1.bf16.msra.mxu0 0
        %559 = vmatprep.subr.bf16.mxu0 0
        %560 = vmatpush1.bf16.msra.mxu0 0
        %561 = vmatprep.mubr.bf16.mxu0 %v527
        %562 = vmatmul.mubr.bf16.gmra.mrb[0].mxu0 %v342
        %v563 = vpop.f32.mrb[0].mxu0
        %v564 = vadd.f32 %v329, %v563
        %v565 = vpop.f32.mrb[0].mxu0
        %v566 = vadd.f32 %v329, %v565
        %v567 = vpop.f32.mrb[0].mxu0
        %v568 = vadd.f32 %v334, %v567
        %v569 = vpop.f32.mrb[0].mxu0
        %v570 = vadd.f32 %v334, %v569
        %571 = vdwg.mxu0
        %572 = vmatprep.subr.bf16.mxu0 %v456
        %573 = vmatpush1.bf16.msra.mxu0 %v455
        %574 = vmatprep.subr.bf16.mxu0 %v460
        %575 = vmatpush1.bf16.msra.mxu0 %v459
        %576 = vmatprep.subr.bf16.mxu0 %v464
        %577 = vmatpush1.bf16.msra.mxu0 %v463
        %578 = vmatprep.subr.bf16.mxu0 %v468
        %579 = vmatpush1.bf16.msra.mxu0 %v467
        %580 = vmatprep.subr.bf16.mxu0 %v472
        %581 = vmatpush1.bf16.msra.mxu0 %v471
        %582 = vmatprep.subr.bf16.mxu0 %v476
        %583 = vmatpush1.bf16.msra.mxu0 %v475
        %584 = vmatprep.subr.bf16.mxu0 %v480
        %585 = vmatpush1.bf16.msra.mxu0 %v479
        %586 = vmatprep.subr.bf16.mxu0 %v484
        %587 = vmatpush1.bf16.msra.mxu0 %v483
        %588 = vmatprep.subr.bf16.mxu0 %v488
        %589 = vmatpush1.bf16.msra.mxu0 %v487
        %590 = vmatprep.subr.bf16.mxu0 0
        %591 = vmatpush1.bf16.msra.mxu0 0
        %592 = vmatprep.subr.bf16.mxu0 0
        %593 = vmatpush1.bf16.msra.mxu0 0
        %594 = vmatprep.subr.bf16.mxu0 0
        %595 = vmatpush1.bf16.msra.mxu0 0
        %596 = vmatprep.subr.bf16.mxu0 0
        %597 = vmatpush1.bf16.msra.mxu0 0
        %598 = vmatprep.subr.bf16.mxu0 0
        %599 = vmatpush1.bf16.msra.mxu0 0
        %600 = vmatprep.subr.bf16.mxu0 0
        %601 = vmatpush1.bf16.msra.mxu0 0
        %602 = vmatprep.subr.bf16.mxu0 0
        %603 = vmatpush1.bf16.msra.mxu0 0
        %604 = vmatprep.mubr.bf16.mxu0 %v527
        %605 = vmatmul.mubr.bf16.gmra.mrb[0].mxu0 %v342
        %v606 = vpop.f32.mrb[0].mxu0
        %v607 = vadd.f32 %v329, %v606
        %v608 = vpop.f32.mrb[0].mxu0
        %v609 = vadd.f32 %v329, %v608
        %v610 = vpop.f32.mrb[0].mxu0
        %v611 = vadd.f32 %v334, %v610
        %v612 = vpop.f32.mrb[0].mxu0
        %v613 = vadd.f32 %v334, %v612
        %614 = vdwg.mxu0
        %s615 = sld [smem:[#allocation2]]
        %vm616 = vcmp.ge.f32.partialorder %v564, 0.0
        %vm617 = vcmp.ge.f32.partialorder %v566, 0.0
        %vm618 = vcmp.ge.f32.partialorder %v607, 0.0
        %vm619 = vcmp.ge.f32.partialorder %v609, 0.0
        %vm620 = vcmp.ge.f32.partialorder %v568, 0.0
        %vm621 = vcmp.ge.f32.partialorder %v570, 0.0
        %vm622 = vcmp.ge.f32.partialorder %v611, 0.0
        %vm623 = vcmp.ge.f32.partialorder %v613, 0.0
        %v624 = vstv %s615
        %v625 = vmul.f32 %v624, %v564
        %v626 = vmul.f32 %v624, %v566
        %v627 = vmul.f32 %v624, %v607
        %v628 = vmul.f32 %v624, %v609
        %v629 = vmul.f32 %v624, %v568
        %v630 = vmul.f32 %v624, %v570
        %v631 = vmul.f32 %v624, %v611
        %v632 = vmul.f32 %v624, %v613
        %v633 = vsel %vm616, %v564, %v625
        %v634 = vsel %vm617, %v566, %v626
        %v635 = vsel %vm618, %v607, %v627
        %v636 = vsel %vm619, %v609, %v628
        %v637 = vsel %vm620, %v568, %v629
        %v638 = vsel %vm621, %v570, %v630
        %v639 = vsel %vm622, %v611, %v631
        %v640 = vsel %vm623, %v613, %v632
        %641 = vst [vmem:[%s282] sm:$0xff] %v633
        %642 = vst [vmem:[%s282 + $0x8] sm:$0xff] %v634
        %643 = vst [vmem:[%s282 + $0x10] sm:$0xff] %v635
        %644 = vst [vmem:[%s282 + $0x18] sm:$0xff] %v636
        %645 = vst [vmem:[%s282 + $0x20] sm:$0xff] %v637
        %646 = vst [vmem:[%s282 + $0x28] sm:$0xff] %v638
        %647 = vst [vmem:[%s282 + $0x30] sm:$0xff] %v639
        %648 = vst [vmem:[%s282 + $0x38] sm:$0xff] %v640
        %s649 = sand.u32 %s113, 1
        %s650 = sand.u32 %s113, 1
        %s651 = smul.addr %s650, 64
        %s652 = scalar_lea.vmem [#allocation4], %s651
        // Predicated region
        $region60: #{net_forward.14} parent=54 // pred_check
          %p653 = pneg %p123
        $region61: #{net_forward.14} parent=54 // pred_check_branch
          %655 = sbr.rel (%p653) target = $region63
        $region62: #{net_forward.14} parent=54 // pred_region
          %s656 = smul.u32 4, %s16
          %s657 = smul.addr %s656, 8
          %s658 = scalar_lea.vmem %s4, %s657
          // Predicated region
          $region64: #{net_forward.14} parent=62 // pred_check
            _
          $region65: #{net_forward.14} parent=62 // pred_check_branch
            %660 = sbr.rel (0) target = $region67
          $region66: #{net_forward.14} parent=62 // pred_region
            // Predicated region
            $region68: #{net_forward.14} parent=66 // pred_check
              _
            $region69: #{net_forward.14} parent=66 // pred_check_branch
              %662 = sbr.rel (0) target = $region71
            $region70: #{net_forward.14} parent=66 // pred_region
              loop: start=0, step=1, limit=1
              $region72: #{net_forward.14} parent=70 // loop_pre_header
                _
              $region73: #{net_forward.14} parent=70 // loop_header
                %s664 = sphi 0, %s668
                %p665 = scmp.ge.s32.totalorder %s664, 1
                %s669 = sphi %s652, %s652
                %s670 = sphi %s658, %s658
              $region74: #{net_forward.14} parent=70 // loop_header_branch
                %667 = sbr.rel (%p665) target = $region78
              $region75: #{net_forward.14} parent=70 // loop_body
                %v671 = vld [vmem:[%s669] sm:$0xff]
                %672 = vst [vmem:[%s670] sm:$0xff] %v671
                %v673 = vld [vmem:[%s669 + $0x8] sm:$0xff]
                %674 = vst [vmem:[%s670 + $0x8] sm:$0xff] %v673
                %v675 = vld [vmem:[%s669 + $0x10] sm:$0xff]
                %676 = vst [vmem:[%s670 + $0x10] sm:$0xff] %v675
                %v677 = vld [vmem:[%s669 + $0x18] sm:$0xff]
                %678 = vst [vmem:[%s670 + $0x18] sm:$0xff] %v677
                %v679 = vld [vmem:[%s669 + $0x20] sm:$0xff]
                %680 = vst [vmem:[%s670 + $0x60] sm:$0xff] %v679
                %v681 = vld [vmem:[%s669 + $0x28] sm:$0xff]
                %682 = vst [vmem:[%s670 + $0x68] sm:$0xff] %v681
                %v683 = vld [vmem:[%s669 + $0x30] sm:$0xff]
                %684 = vst [vmem:[%s670 + $0x70] sm:$0xff] %v683
                %v685 = vld [vmem:[%s669 + $0x38] sm:$0xff]
                %686 = vst [vmem:[%s670 + $0x78] sm:$0xff] %v685
              $region76: #{net_forward.14} parent=70 // loop_footer
                %s668 = sadd.s32 1, %s664
              $region77: #{net_forward.14} parent=70 // loop_footer_branch
                %663 = sbr.rel target = $region73
              $region78: #{net_forward.14} parent=70 // loop_exit
                _
            $region71: #{net_forward.14} parent=66 // pred_fallthru
              _
            // Predicated region
            $region79: #{net_forward.14} parent=66 // pred_check
              _
            $region80: #{net_forward.14} parent=66 // pred_check_branch
              %688 = sbr.rel target = $region82
            $region81: #{net_forward.14} parent=66 // pred_region
              _
            $region82: #{net_forward.14} parent=66 // pred_fallthru
              _
          $region67: #{net_forward.14} parent=62 // pred_fallthru
            _
          %689 = vnop
        $region63: #{net_forward.14} parent=54 // pred_fallthru
          _
      $region55: #{net_forward.14} parent=5 // pred_fallthru
        _
      %p690 = scmp.le.s32.totalorder 2, %s11
      // Predicated region
      $region83: #{net_forward.14} parent=5 // pred_check
        %p691 = pneg %p690
      $region84: #{net_forward.14} parent=5 // pred_check_branch
        %693 = sbr.rel (%p691) target = $region86
      $region85: #{net_forward.14} parent=5 // pred_region
        %s694 = ssub.s32 %s11, 2
        // Predicated region
        $region87: #{net_forward.14} parent=85 // pred_check
          %p695 = pneg %p129
        $region88: #{net_forward.14} parent=85 // pred_check_branch
          %697 = sbr.rel (%p695) target = $region90
        $region89: #{net_forward.14} parent=85 // pred_region
          %s698 = sand.u32 %s114, 1
          %s699 = sand.u32 %s114, 1
          %s700 = smul.addr %s699, 64
          %s701 = scalar_lea.vmem [#allocation4], %s700
        $region90: #{net_forward.14} parent=85 // pred_fallthru
          _
      $region86: #{net_forward.14} parent=5 // pred_fallthru
        _
    $region6: #{net_forward.14} parent=1 // loop_footer
      %s15 = sadd.s32 1, %s11
    $region7: #{net_forward.14} parent=1 // loop_footer_branch
      %10 = sbr.rel target = $region3
    $region8: #{net_forward.14} parent=1 // loop_exit
      _

// kernel: net_forward.15
$region0: #{net_forward.15}
  #allocation0 [shape = 'u32[]', space=smem, size = 0x4, offset = 0x4, fixed_abs, tag = 'smem constant byte address 0x4 - core index']
  #allocation1 [shape = 'u32[144,128]{1,0:T(1,128)}', space=vmem, size = 0x12000, scoped, tag = 'internal scratch']
  %s0 = inlined_call_operand.vmem [shape: f32[2,2,32,144], index: 0, kind: input, shape index: {}]
  %s1 = inlined_call_operand.vmem [shape: f32[1,144], index: 1, kind: input, shape index: {}]
  %s2 = inlined_call_operand.vmem [shape: f32[32,144], index: 2, kind: output, shape index: {}]
  %s3 = sld [smem:[#allocation0]]
  $region18: #{net_forward.15} parent=0
    _
  %s5 = ssub.s32 1, %s3
  %s6 = scalar_select 0, %s5, %s3
  // Predicated region
  $region2: #{net_forward.15} parent=0 // pred_check
    _
  $region3: #{net_forward.15} parent=0 // pred_check_branch
    %8 = sbr.rel (0) target = $region5
  $region4: #{net_forward.15} parent=0 // pred_region
    _
  $region5: #{net_forward.15} parent=0 // pred_fallthru
    _
  // Predicated region
  $region6: #{net_forward.15} parent=0 // pred_check
    _
  $region7: #{net_forward.15} parent=0 // pred_check_branch
    %10 = sbr.rel (0) target = $region9
  $region8: #{net_forward.15} parent=0 // pred_region
    _
  $region9: #{net_forward.15} parent=0 // pred_fallthru
    _
  %v11 = vld [vmem:[%s0] sm:$0xff]
  %v12 = vld [vmem:[%s0 + $0x8] sm:$0xff]
  %v13 = vld [vmem:[%s0 + $0x10] sm:$0xff]
  %v14 = vld [vmem:[%s0 + $0x18] sm:$0xff]
  %v15 = vld [vmem:[%s0 + $0x20] sm:$0xff]
  %v16 = vld [vmem:[%s0 + $0x28] sm:$0xff]
  %v17 = vld [vmem:[%s0 + $0x30] sm:$0xff]
  %v18 = vld [vmem:[%s0 + $0x38] sm:$0xff]
  %s19 = scalar_lea.vmem %s0, 64
  %v20 = vld [vmem:[%s19] sm:$0xff]
  %v21 = vld [vmem:[%s19 + $0x8] sm:$0xff]
  %v22 = vld [vmem:[%s19 + $0x10] sm:$0xff]
  %v23 = vld [vmem:[%s19 + $0x18] sm:$0xff]
  %v24 = vld [vmem:[%s19 + $0x20] sm:$0xff]
  %v25 = vld [vmem:[%s19 + $0x28] sm:$0xff]
  %v26 = vld [vmem:[%s19 + $0x30] sm:$0xff]
  %v27 = vld [vmem:[%s19 + $0x38] sm:$0xff]
  %v28 = vadd.f32 %v11, %v20
  %v29 = vadd.f32 %v12, %v21
  %v30 = vadd.f32 %v13, %v22
  %v31 = vadd.f32 %v14, %v23
  %v32 = vadd.f32 %v15, %v24
  %v33 = vadd.f32 %v16, %v25
  %v34 = vadd.f32 %v17, %v26
  %v35 = vadd.f32 %v18, %v27
  %s36 = scalar_lea.vmem %s0, 128
  %v37 = vld [vmem:[%s36] sm:$0xff]
  %v38 = vld [vmem:[%s36 + $0x8] sm:$0xff]
  %v39 = vld [vmem:[%s36 + $0x10] sm:$0xff]
  %v40 = vld [vmem:[%s36 + $0x18] sm:$0xff]
  %v41 = vld [vmem:[%s36 + $0x20] sm:$0xff]
  %v42 = vld [vmem:[%s36 + $0x28] sm:$0xff]
  %v43 = vld [vmem:[%s36 + $0x30] sm:$0xff]
  %v44 = vld [vmem:[%s36 + $0x38] sm:$0xff]
  %v45 = vadd.f32 %v28, %v37
  %v46 = vadd.f32 %v29, %v38
  %v47 = vadd.f32 %v30, %v39
  %v48 = vadd.f32 %v31, %v40
  %v49 = vadd.f32 %v32, %v41
  %v50 = vadd.f32 %v33, %v42
  %v51 = vadd.f32 %v34, %v43
  %v52 = vadd.f32 %v35, %v44
  %s53 = scalar_lea.vmem %s0, 192
  %v54 = vld [vmem:[%s53] sm:$0xff]
  %v55 = vld [vmem:[%s53 + $0x8] sm:$0xff]
  %v56 = vld [vmem:[%s53 + $0x10] sm:$0xff]
  %v57 = vld [vmem:[%s53 + $0x18] sm:$0xff]
  %v58 = vld [vmem:[%s53 + $0x20] sm:$0xff]
  %v59 = vld [vmem:[%s53 + $0x28] sm:$0xff]
  %v60 = vld [vmem:[%s53 + $0x30] sm:$0xff]
  %v61 = vld [vmem:[%s53 + $0x38] sm:$0xff]
  %v62 = vadd.f32 %v45, %v54
  %v63 = vadd.f32 %v46, %v55
  %v64 = vadd.f32 %v47, %v56
  %v65 = vadd.f32 %v48, %v57
  %v66 = vadd.f32 %v49, %v58
  %v67 = vadd.f32 %v50, %v59
  %v68 = vadd.f32 %v51, %v60
  %v69 = vadd.f32 %v52, %v61
  %v70 = vld [vmem:[%s1] sm:$0x3]
  %v72 = vlaneseq
  %v73 = vshrl.u32 %v72, 7
  %v74 = vsub.s32 0, %v73
  %v75 = vrot.slane %v70, %v74
  %v76 = vlaneseq
  %v77 = vshrl.u32 %v76, 7
  %v78 = vsub.s32 1, %v77
  %v79 = vrot.slane %v70, %v78
  %v82 = vmul.f32 %v62, %v75
  %v83 = vmul.f32 %v63, %v79
  %v84 = vmul.f32 %v64, %v75
  %v85 = vmul.f32 %v65, %v79
  %v86 = vmul.f32 %v66, %v75
  %v87 = vmul.f32 %v67, %v79
  %v88 = vmul.f32 %v68, %v75
  %v89 = vmul.f32 %v69, %v79
  %90 = vst [vmem:[%s2] sm:$0xff] %v82
  %vm91 = vcmask 130048
  %92 = vst.msk [vmem:[%s2 + $0x8] sm:$0xff] %vm91, %v83
  %93 = vst [vmem:[%s2 + $0x10] sm:$0xff] %v84
  %94 = vst.msk [vmem:[%s2 + $0x18] sm:$0xff] %vm91, %v85
  %95 = vst [vmem:[%s2 + $0x20] sm:$0xff] %v86
  %96 = vst.msk [vmem:[%s2 + $0x28] sm:$0xff] %vm91, %v87
  %97 = vst [vmem:[%s2 + $0x30] sm:$0xff] %v88
  %98 = vst.msk [vmem:[%s2 + $0x38] sm:$0xff] %vm91, %v89
  // Predicated region
  $region10: #{net_forward.15} parent=0 // pred_check
    _
  $region11: #{net_forward.15} parent=0 // pred_check_branch
    %100 = sbr.rel (0) target = $region13
  $region12: #{net_forward.15} parent=0 // pred_region
    _
  $region13: #{net_forward.15} parent=0 // pred_fallthru
    _
  // Predicated region
  $region14: #{net_forward.15} parent=0 // pred_check
    _
  $region15: #{net_forward.15} parent=0 // pred_check_branch
    %102 = sbr.rel (0) target = $region17
  $region16: #{net_forward.15} parent=0 // pred_region
    _
  $region17: #{net_forward.15} parent=0 // pred_fallthru
    _

// kernel: net_forward.16
$region0: #{net_forward.16}
  #allocation0 [shape = 'u32[]', space=smem, size = 0x4, offset = 0x4, fixed_abs, tag = 'smem constant byte address 0x4 - core index']
  #allocation1 [shape = 'u32[144,128]{1,0:T(1,128)}', space=vmem, size = 0x12000, scoped, tag = 'internal scratch']
  #allocation2 [shape = 'f32[1]{0:T(128)S(6)}', space=smem, size = 0x200, scoped, tag = 'scoped memory for net_forward.16']
  %s0 = inlined_call_operand.<no memory space> [shape: f32[1], index: 0, kind: input, shape index: {}]
  %s1 = inlined_call_operand.vmem [shape: bf16[24,144], index: 1, kind: input, shape index: {}]
  %s2 = inlined_call_operand.vmem [shape: bf16[144,256], index: 2, kind: input, shape index: {}]
  %s3 = inlined_call_operand.vmem [shape: f32[24,1], index: 3, kind: input, shape index: {}]
  %s4 = inlined_call_operand.vmem [shape: f32[24,256], index: 4, kind: output, shape index: {}]
  %s5 = sld [smem:[#allocation0]]
  $region26: #{net_forward.16} parent=0
    _
  %s7 = ssub.s32 1, %s5
  %s8 = scalar_select 0, %s7, %s5
  %9 = sst [smem:[#allocation2]] %s0
  // Predicated region
  $region2: #{net_forward.16} parent=0 // pred_check
    _
  $region3: #{net_forward.16} parent=0 // pred_check_branch
    %11 = sbr.rel (0) target = $region5
  $region4: #{net_forward.16} parent=0 // pred_region
    _
  $region5: #{net_forward.16} parent=0 // pred_fallthru
    _
  // Predicated region
  $region6: #{net_forward.16} parent=0 // pred_check
    _
  $region7: #{net_forward.16} parent=0 // pred_check_branch
    %13 = sbr.rel (0) target = $region9
  $region8: #{net_forward.16} parent=0 // pred_region
    _
  $region9: #{net_forward.16} parent=0 // pred_fallthru
    _
  // Predicated region
  $region10: #{net_forward.16} parent=0 // pred_check
    _
  $region11: #{net_forward.16} parent=0 // pred_check_branch
    %15 = sbr.rel (0) target = $region13
  $region12: #{net_forward.16} parent=0 // pred_region
    _
  $region13: #{net_forward.16} parent=0 // pred_fallthru
    _
  // Predicated region
  $region14: #{net_forward.16} parent=0 // pred_check
    _
  $region15: #{net_forward.16} parent=0 // pred_check_branch
    %17 = sbr.rel (0) target = $region17
  $region16: #{net_forward.16} parent=0 // pred_region
    _
  $region17: #{net_forward.16} parent=0 // pred_fallthru
    _
  %v19 = vld [vmem:[%s1] sm:$0xff]
  %v20 = vld [vmem:[%s1 + $0x8] sm:$0xff]
  %v21 = vld [vmem:[%s1 + $0x10] sm:$0xff]
  %v22 = vld [vmem:[%s2] sm:$0xff]
  %v23 = vld [vmem:[%s2 + $0x8] sm:$0xff]
  %v24 = vld [vmem:[%s2 + $0x10] sm:$0xff]
  %v25 = vld [vmem:[%s2 + $0x18] sm:$0xff]
  %v26 = vld [vmem:[%s2 + $0x20] sm:$0xff]
  %v27 = vld [vmem:[%s2 + $0x28] sm:$0xff]
  %v28 = vld [vmem:[%s2 + $0x30] sm:$0xff]
  %v29 = vld [vmem:[%s2 + $0x38] sm:$0xff]
  %v30 = vld [vmem:[%s2 + $0x40] sm:$0xff]
  %v31 = vld [vmem:[%s2 + $0x48] sm:$0xff]
  %v32 = vld [vmem:[%s2 + $0x50] sm:$0xff]
  %v33 = vld [vmem:[%s2 + $0x58] sm:$0xff]
  %v34 = vld [vmem:[%s2 + $0x60] sm:$0xff]
  %v35 = vld [vmem:[%s2 + $0x68] sm:$0xff]
  %v36 = vld [vmem:[%s2 + $0x70] sm:$0xff]
  %v37 = vld [vmem:[%s2 + $0x78] sm:$0xff]
  %v38 = vld [vmem:[%s2 + $0x80] sm:$0xff]
  %v39 = vld [vmem:[%s2 + $0x88] sm:$0xff]
  %v40 = vld [vmem:[%s3] sm:$0xff]
  %v41 = vld [vmem:[%s3 + $0x8] sm:$0xff]
  %v42 = vld [vmem:[%s3 + $0x10] sm:$0xff]
  %44 = vset.pattern.permute.xlu0 0
  %45 = vperm.xlu0 %44, %v40
  %v46 = vpop.permute.xlu0 %45
  %49 = vset.pattern.permute.xlu0 0
  %50 = vperm.xlu0 %49, %v41
  %v51 = vpop.permute.xlu0 %50
  %54 = vset.pattern.permute.xlu0 0
  %55 = vperm.xlu0 %54, %v42
  %v56 = vpop.permute.xlu0 %55
  %v61 = vunpack.c.l.b16 %v19
  %v62 = vunpack.c.h.b16 %v19
  %v63 = vunpack.c.l.b16 %v20
  %v64 = vunpack.c.h.b16 %v20
  %v65 = vunpack.c.l.b16 %v21
  %v66 = vunpack.c.h.b16 %v21
  %v67 = vpack.c.b16 %v63, %v61
  %v68 = vpack.c.b16 %v64, %v62
  %v69 = vpack.c.b16 %v65, %v65
  %v70 = vpack.c.b16 %v66, %v66
  %v91 = vunpack.c.l.b16 %v22
  %v92 = vunpack.c.h.b16 %v22
  %v93 = vunpack.c.l.b16 %v23
  %v94 = vunpack.c.h.b16 %v23
  %v95 = vunpack.c.l.b16 %v24
  %v96 = vunpack.c.h.b16 %v24
  %v97 = vunpack.c.l.b16 %v25
  %v98 = vunpack.c.h.b16 %v25
  %v99 = vunpack.c.l.b16 %v26
  %v100 = vunpack.c.h.b16 %v26
  %v101 = vunpack.c.l.b16 %v27
  %v102 = vunpack.c.h.b16 %v27
  %v103 = vunpack.c.l.b16 %v28
  %v104 = vunpack.c.h.b16 %v28
  %v105 = vunpack.c.l.b16 %v29
  %v106 = vunpack.c.h.b16 %v29
  %v107 = vunpack.c.l.b16 %v30
  %v108 = vunpack.c.h.b16 %v30
  %v109 = vunpack.c.l.b16 %v31
  %v110 = vunpack.c.h.b16 %v31
  %v111 = vunpack.c.l.b16 %v32
  %v112 = vunpack.c.h.b16 %v32
  %v113 = vunpack.c.l.b16 %v33
  %v114 = vunpack.c.h.b16 %v33
  %v115 = vunpack.c.l.b16 %v34
  %v116 = vunpack.c.h.b16 %v34
  %v117 = vunpack.c.l.b16 %v35
  %v118 = vunpack.c.h.b16 %v35
  %v119 = vunpack.c.l.b16 %v36
  %v120 = vunpack.c.h.b16 %v36
  %v121 = vunpack.c.l.b16 %v37
  %v122 = vunpack.c.h.b16 %v37
  %v123 = vunpack.c.l.b16 %v38
  %v124 = vunpack.c.h.b16 %v38
  %v125 = vunpack.c.l.b16 %v39
  %v126 = vunpack.c.h.b16 %v39
  %v127 = vpack.c.b16 %v93, %v91
  %v128 = vpack.c.b16 %v94, %v92
  %v129 = vpack.c.b16 %v97, %v95
  %v130 = vpack.c.b16 %v98, %v96
  %v131 = vpack.c.b16 %v101, %v99
  %v132 = vpack.c.b16 %v102, %v100
  %v133 = vpack.c.b16 %v105, %v103
  %v134 = vpack.c.b16 %v106, %v104
  %v135 = vpack.c.b16 %v109, %v107
  %v136 = vpack.c.b16 %v110, %v108
  %v137 = vpack.c.b16 %v113, %v111
  %v138 = vpack.c.b16 %v114, %v112
  %v139 = vpack.c.b16 %v117, %v115
  %v140 = vpack.c.b16 %v118, %v116
  %v141 = vpack.c.b16 %v121, %v119
  %v142 = vpack.c.b16 %v122, %v120
  %v143 = vpack.c.b16 %v125, %v123
  %v144 = vpack.c.b16 %v126, %v124
  %vm163 = vcmask 130048
  %v165 = vsel %vm163, %v68, 0
  %v168 = vsel %vm163, %v70, 0
  %170 = vmatprep.subr.bf16.mxu0 %v128
  %171 = vmatpush1.bf16.msra.mxu0 %v127
  %172 = vmatprep.subr.bf16.mxu0 %v130
  %173 = vmatpush1.bf16.msra.mxu0 %v129
  %174 = vmatprep.subr.bf16.mxu0 %v132
  %175 = vmatpush1.bf16.msra.mxu0 %v131
  %176 = vmatprep.subr.bf16.mxu0 %v134
  %177 = vmatpush1.bf16.msra.mxu0 %v133
  %178 = vmatprep.subr.bf16.mxu0 %v136
  %179 = vmatpush1.bf16.msra.mxu0 %v135
  %180 = vmatprep.subr.bf16.mxu0 %v138
  %181 = vmatpush1.bf16.msra.mxu0 %v137
  %182 = vmatprep.subr.bf16.mxu0 %v140
  %183 = vmatpush1.bf16.msra.mxu0 %v139
  %184 = vmatprep.subr.bf16.mxu0 %v142
  %185 = vmatpush1.bf16.msra.mxu0 %v141
  %186 = vmatprep.subr.bf16.mxu0 %v144
  %187 = vmatpush1.bf16.msra.mxu0 %v143
  %188 = vmatprep.subr.bf16.mxu0 0
  %189 = vmatpush1.bf16.msra.mxu0 0
  %190 = vmatprep.subr.bf16.mxu0 0
  %191 = vmatpush1.bf16.msra.mxu0 0
  %192 = vmatprep.subr.bf16.mxu0 0
  %193 = vmatpush1.bf16.msra.mxu0 0
  %194 = vmatprep.subr.bf16.mxu0 0
  %195 = vmatpush1.bf16.msra.mxu0 0
  %196 = vmatprep.subr.bf16.mxu0 0
  %197 = vmatpush1.bf16.msra.mxu0 0
  %198 = vmatprep.subr.bf16.mxu0 0
  %199 = vmatpush1.bf16.msra.mxu0 0
  %200 = vmatprep.subr.bf16.mxu0 0
  %201 = vmatpush1.bf16.msra.mxu0 0
  %202 = vmatprep.mubr.bf16.mxu0 %v165
  %203 = vmatmul.mubr.bf16.gmra.mrb[0].mxu0 %v67
  %v204 = vpop.f32.mrb[0].mxu0
  %v205 = vadd.f32 %v46, %v204
  %v206 = vpop.f32.mrb[0].mxu0
  %v207 = vadd.f32 %v46, %v206
  %v208 = vpop.f32.mrb[0].mxu0
  %v209 = vadd.f32 %v51, %v208
  %v210 = vpop.f32.mrb[0].mxu0
  %v211 = vadd.f32 %v51, %v210
  %212 = vmatprep.mubr.bf16.mxu0 %v168
  %213 = vmatmul.mubr.bf16.gmra.mrb[0].mxu0 %v69
  %v214 = vpop.f32.mrb[0].mxu0
  %v215 = vadd.f32 %v56, %v214
  %v216 = vpop.f32.mrb[0].mxu0
  %v217 = vadd.f32 %v56, %v216
  %v218 = vpop.f32.mrb[0].mxu0
  %v219 = vpop.f32.mrb[0].mxu0
  %220 = vdwg.mxu0
  %s221 = sld [smem:[#allocation2]]
  %vm222 = vcmp.ge.f32.partialorder %v205, 0.0
  %vm223 = vcmp.ge.f32.partialorder %v207, 0.0
  %vm224 = vcmp.ge.f32.partialorder %v209, 0.0
  %vm225 = vcmp.ge.f32.partialorder %v211, 0.0
  %vm226 = vcmp.ge.f32.partialorder %v215, 0.0
  %vm227 = vcmp.ge.f32.partialorder %v217, 0.0
  %v228 = vstv %s221
  %v229 = vmul.f32 %v228, %v205
  %v230 = vmul.f32 %v228, %v207
  %v231 = vmul.f32 %v228, %v209
  %v232 = vmul.f32 %v228, %v211
  %v233 = vmul.f32 %v228, %v215
  %v234 = vmul.f32 %v228, %v217
  %v235 = vsel %vm222, %v205, %v229
  %v236 = vsel %vm223, %v207, %v230
  %v237 = vsel %vm224, %v209, %v231
  %v238 = vsel %vm225, %v211, %v232
  %v239 = vsel %vm226, %v215, %v233
  %v240 = vsel %vm227, %v217, %v234
  %241 = vst [vmem:[%s4] sm:$0xff] %v235
  %242 = vst [vmem:[%s4 + $0x8] sm:$0xff] %v236
  %243 = vst [vmem:[%s4 + $0x10] sm:$0xff] %v237
  %244 = vst [vmem:[%s4 + $0x18] sm:$0xff] %v238
  %245 = vst [vmem:[%s4 + $0x20] sm:$0xff] %v239
  %246 = vst [vmem:[%s4 + $0x28] sm:$0xff] %v240
  // Predicated region
  $region18: #{net_forward.16} parent=0 // pred_check
    _
  $region19: #{net_forward.16} parent=0 // pred_check_branch
    %248 = sbr.rel (0) target = $region21
  $region20: #{net_forward.16} parent=0 // pred_region
    _
  $region21: #{net_forward.16} parent=0 // pred_fallthru
    _
  // Predicated region
  $region22: #{net_forward.16} parent=0 // pred_check
    _
  $region23: #{net_forward.16} parent=0 // pred_check_branch
    %250 = sbr.rel (0) target = $region25
  $region24: #{net_forward.16} parent=0 // pred_region
    _
  $region25: #{net_forward.16} parent=0 // pred_fallthru
    _

// kernel: net_forward.17
$region0: #{net_forward.17}
  #allocation0 [shape = 'u32[]', space=smem, size = 0x4, offset = 0x4, fixed_abs, tag = 'smem constant byte address 0x4 - core index']
  #allocation1 [shape = 'u32[144,128]{1,0:T(1,128)}', space=vmem, size = 0x12000, scoped, tag = 'internal scratch']
  #allocation2 [shape = 'f32[1]{0:T(128)S(6)}', space=smem, size = 0x200, scoped, tag = 'scoped memory for net_forward.17']
  %s0 = inlined_call_operand.<no memory space> [shape: f32[1], index: 0, kind: input, shape index: {}]
  %s1 = inlined_call_operand.vmem [shape: bf16[24,216], index: 1, kind: input, shape index: {}]
  %s2 = inlined_call_operand.vmem [shape: bf16[216,128], index: 2, kind: input, shape index: {}]
  %s3 = inlined_call_operand.vmem [shape: f32[24,1], index: 3, kind: input, shape index: {}]
  %s4 = inlined_call_operand.vmem [shape: f32[24,128], index: 4, kind: output, shape index: {}]
  %s5 = sld [smem:[#allocation0]]
  $region26: #{net_forward.17} parent=0
    _
  %s7 = ssub.s32 1, %s5
  %s8 = scalar_select 0, %s7, %s5
  %9 = sst [smem:[#allocation2]] %s0
  // Predicated region
  $region2: #{net_forward.17} parent=0 // pred_check
    _
  $region3: #{net_forward.17} parent=0 // pred_check_branch
    %11 = sbr.rel (0) target = $region5
  $region4: #{net_forward.17} parent=0 // pred_region
    _
  $region5: #{net_forward.17} parent=0 // pred_fallthru
    _
  // Predicated region
  $region6: #{net_forward.17} parent=0 // pred_check
    _
  $region7: #{net_forward.17} parent=0 // pred_check_branch
    %13 = sbr.rel (0) target = $region9
  $region8: #{net_forward.17} parent=0 // pred_region
    _
  $region9: #{net_forward.17} parent=0 // pred_fallthru
    _
  // Predicated region
  $region10: #{net_forward.17} parent=0 // pred_check
    _
  $region11: #{net_forward.17} parent=0 // pred_check_branch
    %15 = sbr.rel (0) target = $region13
  $region12: #{net_forward.17} parent=0 // pred_region
    _
  $region13: #{net_forward.17} parent=0 // pred_fallthru
    _
  // Predicated region
  $region14: #{net_forward.17} parent=0 // pred_check
    _
  $region15: #{net_forward.17} parent=0 // pred_check_branch
    %17 = sbr.rel (0) target = $region17
  $region16: #{net_forward.17} parent=0 // pred_region
    _
  $region17: #{net_forward.17} parent=0 // pred_fallthru
    _
  %v19 = vld [vmem:[%s1] sm:$0xff]
  %v20 = vld [vmem:[%s1 + $0x8] sm:$0xff]
  %v21 = vld [vmem:[%s1 + $0x10] sm:$0xff]
  %v22 = vld [vmem:[%s2] sm:$0xf]
  %v23 = vld [vmem:[%s2 + $0x4] sm:$0xf]
  %v24 = vld [vmem:[%s2 + $0x8] sm:$0xf]
  %v25 = vld [vmem:[%s2 + $0xc] sm:$0xf]
  %v26 = vld [vmem:[%s2 + $0x10] sm:$0xf]
  %v27 = vld [vmem:[%s2 + $0x14] sm:$0xf]
  %v28 = vld [vmem:[%s2 + $0x18] sm:$0xf]
  %v29 = vld [vmem:[%s2 + $0x1c] sm:$0xf]
  %v30 = vld [vmem:[%s2 + $0x20] sm:$0xf]
  %v31 = vld [vmem:[%s2 + $0x24] sm:$0xf]
  %v32 = vld [vmem:[%s2 + $0x28] sm:$0xf]
  %v33 = vld [vmem:[%s2 + $0x2c] sm:$0xf]
  %v34 = vld [vmem:[%s2 + $0x30] sm:$0xf]
  %v35 = vld [vmem:[%s2 + $0x34] sm:$0xf]
  %v36 = vld [vmem:[%s2 + $0x38] sm:$0xf]
  %v37 = vld [vmem:[%s2 + $0x3c] sm:$0xf]
  %v38 = vld [vmem:[%s2 + $0x40] sm:$0xf]
  %v39 = vld [vmem:[%s2 + $0x44] sm:$0xf]
  %v40 = vld [vmem:[%s2 + $0x48] sm:$0xf]
  %v41 = vld [vmem:[%s2 + $0x4c] sm:$0xf]
  %v42 = vld [vmem:[%s2 + $0x50] sm:$0xf]
  %v43 = vld [vmem:[%s2 + $0x54] sm:$0xf]
  %v44 = vld [vmem:[%s2 + $0x58] sm:$0xf]
  %v45 = vld [vmem:[%s2 + $0x5c] sm:$0xf]
  %v46 = vld [vmem:[%s2 + $0x60] sm:$0xf]
  %v47 = vld [vmem:[%s2 + $0x64] sm:$0xf]
  %v48 = vld [vmem:[%s2 + $0x68] sm:$0xf]
  %v49 = vld [vmem:[%s3] sm:$0xff]
  %v50 = vld [vmem:[%s3 + $0x8] sm:$0xff]
  %v51 = vld [vmem:[%s3 + $0x10] sm:$0xff]
  %53 = vset.pattern.permute.xlu0 0
  %54 = vperm.xlu0 %53, %v49
  %v55 = vpop.permute.xlu0 %54
  %58 = vset.pattern.permute.xlu0 0
  %59 = vperm.xlu0 %58, %v50
  %v60 = vpop.permute.xlu0 %59
  %63 = vset.pattern.permute.xlu0 0
  %64 = vperm.xlu0 %63, %v51
  %v65 = vpop.permute.xlu0 %64
  %v70 = vunpack.c.l.b16 %v19
  %v71 = vunpack.c.h.b16 %v19
  %v72 = vunpack.c.l.b16 %v20
  %v73 = vunpack.c.h.b16 %v20
  %v74 = vunpack.c.l.b16 %v21
  %v75 = vunpack.c.h.b16 %v21
  %v76 = vpack.c.b16 %v72, %v70
  %v77 = vpack.c.b16 %v73, %v71
  %v78 = vpack.c.b16 %v74, %v74
  %v79 = vpack.c.b16 %v75, %v75
  %v109 = vunpack.c.l.b16 %v22
  %v110 = vunpack.c.l.b16 %v23
  %v111 = vunpack.c.l.b16 %v24
  %v112 = vunpack.c.l.b16 %v25
  %v113 = vunpack.c.l.b16 %v26
  %v114 = vunpack.c.l.b16 %v27
  %v115 = vunpack.c.l.b16 %v28
  %v116 = vunpack.c.l.b16 %v29
  %v117 = vunpack.c.l.b16 %v30
  %v118 = vunpack.c.l.b16 %v31
  %v119 = vunpack.c.l.b16 %v32
  %v120 = vunpack.c.l.b16 %v33
  %v121 = vunpack.c.l.b16 %v34
  %v122 = vunpack.c.l.b16 %v35
  %v123 = vunpack.c.l.b16 %v36
  %v124 = vunpack.c.l.b16 %v37
  %v125 = vunpack.c.l.b16 %v38
  %v126 = vunpack.c.l.b16 %v39
  %v127 = vunpack.c.l.b16 %v40
  %v128 = vunpack.c.l.b16 %v41
  %v129 = vunpack.c.l.b16 %v42
  %v130 = vunpack.c.l.b16 %v43
  %v131 = vunpack.c.l.b16 %v44
  %v132 = vunpack.c.l.b16 %v45
  %v133 = vunpack.c.l.b16 %v46
  %v134 = vunpack.c.l.b16 %v47
  %v135 = vunpack.c.l.b16 %v48
  %v136 = vpack.c.b16 %v110, %v109
  %v137 = vpack.c.b16 %v112, %v111
  %v138 = vpack.c.b16 %v114, %v113
  %v139 = vpack.c.b16 %v116, %v115
  %v140 = vpack.c.b16 %v118, %v117
  %v141 = vpack.c.b16 %v120, %v119
  %v142 = vpack.c.b16 %v122, %v121
  %v143 = vpack.c.b16 %v124, %v123
  %v144 = vpack.c.b16 %v126, %v125
  %v145 = vpack.c.b16 %v128, %v127
  %v146 = vpack.c.b16 %v130, %v129
  %v147 = vpack.c.b16 %v132, %v131
  %v148 = vpack.c.b16 %v134, %v133
  %v149 = vpack.c.b16 %v135, %v135
  %vm163 = vcmask 719872
  %v165 = vsel %vm163, %v77, 0
  %v168 = vsel %vm163, %v79, 0
  %vm170 = vcmask 1043456
  %v172 = vsel %vm170, %v149, 0
  %174 = vmatprep.subr.bf16.mxu0 0
  %175 = vmatpush1.bf16.msra.mxu0 %v136
  %176 = vmatprep.subr.bf16.mxu0 0
  %177 = vmatpush1.bf16.msra.mxu0 %v137
  %178 = vmatprep.subr.bf16.mxu0 0
  %179 = vmatpush1.bf16.msra.mxu0 %v138
  %180 = vmatprep.subr.bf16.mxu0 0
  %181 = vmatpush1.bf16.msra.mxu0 %v139
  %182 = vmatprep.subr.bf16.mxu0 0
  %183 = vmatpush1.bf16.msra.mxu0 %v140
  %184 = vmatprep.subr.bf16.mxu0 0
  %185 = vmatpush1.bf16.msra.mxu0 %v141
  %186 = vmatprep.subr.bf16.mxu0 0
  %187 = vmatpush1.bf16.msra.mxu0 %v142
  %188 = vmatprep.subr.bf16.mxu0 0
  %189 = vmatpush1.bf16.msra.mxu0 %v143
  %190 = vmatprep.subr.bf16.mxu0 0
  %191 = vmatpush1.bf16.msra.mxu0 %v144
  %192 = vmatprep.subr.bf16.mxu0 0
  %193 = vmatpush1.bf16.msra.mxu0 %v145
  %194 = vmatprep.subr.bf16.mxu0 0
  %195 = vmatpush1.bf16.msra.mxu0 %v146
  %196 = vmatprep.subr.bf16.mxu0 0
  %197 = vmatpush1.bf16.msra.mxu0 %v147
  %198 = vmatprep.subr.bf16.mxu0 0
  %199 = vmatpush1.bf16.msra.mxu0 %v148
  %200 = vmatprep.subr.bf16.mxu0 0
  %201 = vmatpush1.bf16.msra.mxu0 %v172
  %202 = vmatprep.subr.bf16.mxu0 0
  %203 = vmatpush1.bf16.msra.mxu0 0
  %204 = vmatprep.subr.bf16.mxu0 0
  %205 = vmatpush1.bf16.msra.mxu0 0
  %206 = vmatprep.mubr.bf16.mxu0 %v165
  %207 = vmatmul.mubr.bf16.gmra.mrb[0].mxu0 %v76
  %v208 = vpop.f32.mrb[0].mxu0
  %v209 = vadd.f32 %v55, %v208
  %v210 = vpop.f32.mrb[0].mxu0
  %v211 = vpop.f32.mrb[0].mxu0
  %v212 = vadd.f32 %v60, %v211
  %v213 = vpop.f32.mrb[0].mxu0
  %214 = vmatprep.mubr.bf16.mxu0 %v168
  %215 = vmatmul.mubr.bf16.gmra.mrb[0].mxu0 %v78
  %v216 = vpop.f32.mrb[0].mxu0
  %v217 = vadd.f32 %v65, %v216
  %v218 = vpop.f32.mrb[0].mxu0
  %v219 = vpop.f32.mrb[0].mxu0
  %v220 = vpop.f32.mrb[0].mxu0
  %221 = vdwg.mxu0
  %s222 = sld [smem:[#allocation2]]
  %vm223 = vcmp.ge.f32.partialorder %v209, 0.0
  %vm224 = vcmp.ge.f32.partialorder %v212, 0.0
  %vm225 = vcmp.ge.f32.partialorder %v217, 0.0
  %v226 = vstv %s222
  %v227 = vmul.f32 %v226, %v209
  %v228 = vmul.f32 %v226, %v212
  %v229 = vmul.f32 %v226, %v217
  %v230 = vsel %vm223, %v209, %v227
  %v231 = vsel %vm224, %v212, %v228
  %v232 = vsel %vm225, %v217, %v229
  %233 = vst [vmem:[%s4] sm:$0xff] %v230
  %234 = vst [vmem:[%s4 + $0x8] sm:$0xff] %v231
  %235 = vst [vmem:[%s4 + $0x10] sm:$0xff] %v232
  // Predicated region
  $region18: #{net_forward.17} parent=0 // pred_check
    _
  $region19: #{net_forward.17} parent=0 // pred_check_branch
    %237 = sbr.rel (0) target = $region21
  $region20: #{net_forward.17} parent=0 // pred_region
    _
  $region21: #{net_forward.17} parent=0 // pred_fallthru
    _
  // Predicated region
  $region22: #{net_forward.17} parent=0 // pred_check
    _
  $region23: #{net_forward.17} parent=0 // pred_check_branch
    %239 = sbr.rel (0) target = $region25
  $region24: #{net_forward.17} parent=0 // pred_region
    _
  $region25: #{net_forward.17} parent=0 // pred_fallthru
    _

// kernel: net_forward.18
$region0: #{net_forward.18}
  #allocation0 [shape = 'u32[]', space=smem, size = 0x4, offset = 0x4, fixed_abs, tag = 'smem constant byte address 0x4 - core index']
  #allocation1 [shape = 'u32[144,128]{1,0:T(1,128)}', space=vmem, size = 0x12000, scoped, tag = 'internal scratch']
  %s0 = inlined_call_operand.vmem [shape: f32[2,2,48,16], index: 0, kind: input, shape index: {}]
  %s1 = inlined_call_operand.vmem [shape: f32[1,16], index: 1, kind: input, shape index: {}]
  %s2 = inlined_call_operand.vmem [shape: f32[48,16], index: 2, kind: output, shape index: {}]
  %s3 = sld [smem:[#allocation0]]
  $region18: #{net_forward.18} parent=0
    _
  %s5 = ssub.s32 1, %s3
  %s6 = scalar_select 0, %s5, %s3
  // Predicated region
  $region2: #{net_forward.18} parent=0 // pred_check
    _
  $region3: #{net_forward.18} parent=0 // pred_check_branch
    %8 = sbr.rel (0) target = $region5
  $region4: #{net_forward.18} parent=0 // pred_region
    _
  $region5: #{net_forward.18} parent=0 // pred_fallthru
    _
  // Predicated region
  $region6: #{net_forward.18} parent=0 // pred_check
    _
  $region7: #{net_forward.18} parent=0 // pred_check_branch
    %10 = sbr.rel (0) target = $region9
  $region8: #{net_forward.18} parent=0 // pred_region
    _
  $region9: #{net_forward.18} parent=0 // pred_fallthru
    _
  %v11 = vld [vmem:[%s0] sm:$0xff]
  %v12 = vld [vmem:[%s0 + $0x8] sm:$0xff]
  %v13 = vld [vmem:[%s0 + $0x10] sm:$0xff]
  %v14 = vld [vmem:[%s0 + $0x18] sm:$0xff]
  %v15 = vld [vmem:[%s0 + $0x20] sm:$0xff]
  %v16 = vld [vmem:[%s0 + $0x28] sm:$0xff]
  %s17 = scalar_lea.vmem %s0, 48
  %v18 = vld [vmem:[%s17] sm:$0xff]
  %v19 = vld [vmem:[%s17 + $0x8] sm:$0xff]
  %v20 = vld [vmem:[%s17 + $0x10] sm:$0xff]
  %v21 = vld [vmem:[%s17 + $0x18] sm:$0xff]
  %v22 = vld [vmem:[%s17 + $0x20] sm:$0xff]
  %v23 = vld [vmem:[%s17 + $0x28] sm:$0xff]
  %v24 = vadd.f32 %v11, %v18
  %v25 = vadd.f32 %v12, %v19
  %v26 = vadd.f32 %v13, %v20
  %v27 = vadd.f32 %v14, %v21
  %v28 = vadd.f32 %v15, %v22
  %v29 = vadd.f32 %v16, %v23
  %s30 = scalar_lea.vmem %s0, 96
  %v31 = vld [vmem:[%s30] sm:$0xff]
  %v32 = vld [vmem:[%s30 + $0x8] sm:$0xff]
  %v33 = vld [vmem:[%s30 + $0x10] sm:$0xff]
  %v34 = vld [vmem:[%s30 + $0x18] sm:$0xff]
  %v35 = vld [vmem:[%s30 + $0x20] sm:$0xff]
  %v36 = vld [vmem:[%s30 + $0x28] sm:$0xff]
  %v37 = vadd.f32 %v24, %v31
  %v38 = vadd.f32 %v25, %v32
  %v39 = vadd.f32 %v26, %v33
  %v40 = vadd.f32 %v27, %v34
  %v41 = vadd.f32 %v28, %v35
  %v42 = vadd.f32 %v29, %v36
  %s43 = scalar_lea.vmem %s0, 144
  %v44 = vld [vmem:[%s43] sm:$0xff]
  %v45 = vld [vmem:[%s43 + $0x8] sm:$0xff]
  %v46 = vld [vmem:[%s43 + $0x10] sm:$0xff]
  %v47 = vld [vmem:[%s43 + $0x18] sm:$0xff]
  %v48 = vld [vmem:[%s43 + $0x20] sm:$0xff]
  %v49 = vld [vmem:[%s43 + $0x28] sm:$0xff]
  %v50 = vadd.f32 %v37, %v44
  %v51 = vadd.f32 %v38, %v45
  %v52 = vadd.f32 %v39, %v46
  %v53 = vadd.f32 %v40, %v47
  %v54 = vadd.f32 %v41, %v48
  %v55 = vadd.f32 %v42, %v49
  %v56 = vld [vmem:[%s1] sm:$0x1]
  %v58 = vlaneseq
  %v59 = vshrl.u32 %v58, 7
  %v60 = vsub.s32 0, %v59
  %v61 = vrot.slane %v56, %v60
  %v63 = vmul.f32 %v50, %v61
  %v64 = vmul.f32 %v51, %v61
  %v65 = vmul.f32 %v52, %v61
  %v66 = vmul.f32 %v53, %v61
  %v67 = vmul.f32 %v54, %v61
  %v68 = vmul.f32 %v55, %v61
  %vm69 = vcmask 130048
  %70 = vst.msk [vmem:[%s2] sm:$0xff] %vm69, %v63
  %71 = vst.msk [vmem:[%s2 + $0x8] sm:$0xff] %vm69, %v64
  %72 = vst.msk [vmem:[%s2 + $0x10] sm:$0xff] %vm69, %v65
  %73 = vst.msk [vmem:[%s2 + $0x18] sm:$0xff] %vm69, %v66
  %74 = vst.msk [vmem:[%s2 + $0x20] sm:$0xff] %vm69, %v67
  %75 = vst.msk [vmem:[%s2 + $0x28] sm:$0xff] %vm69, %v68
  // Predicated region
  $region10: #{net_forward.18} parent=0 // pred_check
    _
  $region11: #{net_forward.18} parent=0 // pred_check_branch
    %77 = sbr.rel (0) target = $region13
  $region12: #{net_forward.18} parent=0 // pred_region
    _
  $region13: #{net_forward.18} parent=0 // pred_fallthru
    _
  // Predicated region
  $region14: #{net_forward.18} parent=0 // pred_check
    _
  $region15: #{net_forward.18} parent=0 // pred_check_branch
    %79 = sbr.rel (0) target = $region17
  $region16: #{net_forward.18} parent=0 // pred_region
    _
  $region17: #{net_forward.18} parent=0 // pred_fallthru
    _

// kernel: net_forward.19
$region0: #{net_forward.19}
  #allocation0 [shape = 'u32[]', space=smem, size = 0x4, offset = 0x4, fixed_abs, tag = 'smem constant byte address 0x4 - core index']
  #allocation1 [shape = 'u32[144,128]{1,0:T(1,128)}', space=vmem, size = 0x12000, scoped, tag = 'internal scratch']
  #allocation2 [shape = 'f32[1]{0:T(128)S(6)}', space=smem, size = 0x200, scoped, tag = 'scoped memory for net_forward.19']
  %s0 = inlined_call_operand.<no memory space> [shape: f32[1], index: 0, kind: input, shape index: {}]
  %s1 = inlined_call_operand.vmem [shape: bf16[40,216], index: 1, kind: input, shape index: {}]
  %s2 = inlined_call_operand.vmem [shape: bf16[216,128], index: 2, kind: input, shape index: {}]
  %s3 = inlined_call_operand.vmem [shape: f32[40,1], index: 3, kind: input, shape index: {}]
  %s4 = inlined_call_operand.vmem [shape: f32[40,128], index: 4, kind: output, shape index: {}]
  %s5 = sld [smem:[#allocation0]]
  $region26: #{net_forward.19} parent=0
    _
  %s7 = ssub.s32 1, %s5
  %s8 = scalar_select 0, %s7, %s5
  %9 = sst [smem:[#allocation2]] %s0
  // Predicated region
  $region2: #{net_forward.19} parent=0 // pred_check
    _
  $region3: #{net_forward.19} parent=0 // pred_check_branch
    %11 = sbr.rel (0) target = $region5
  $region4: #{net_forward.19} parent=0 // pred_region
    _
  $region5: #{net_forward.19} parent=0 // pred_fallthru
    _
  // Predicated region
  $region6: #{net_forward.19} parent=0 // pred_check
    _
  $region7: #{net_forward.19} parent=0 // pred_check_branch
    %13 = sbr.rel (0) target = $region9
  $region8: #{net_forward.19} parent=0 // pred_region
    _
  $region9: #{net_forward.19} parent=0 // pred_fallthru
    _
  // Predicated region
  $region10: #{net_forward.19} parent=0 // pred_check
    _
  $region11: #{net_forward.19} parent=0 // pred_check_branch
    %15 = sbr.rel (0) target = $region13
  $region12: #{net_forward.19} parent=0 // pred_region
    _
  $region13: #{net_forward.19} parent=0 // pred_fallthru
    _
  // Predicated region
  $region14: #{net_forward.19} parent=0 // pred_check
    _
  $region15: #{net_forward.19} parent=0 // pred_check_branch
    %17 = sbr.rel (0) target = $region17
  $region16: #{net_forward.19} parent=0 // pred_region
    _
  $region17: #{net_forward.19} parent=0 // pred_fallthru
    _
  %v19 = vld [vmem:[%s1] sm:$0xff]
  %v20 = vld [vmem:[%s1 + $0x8] sm:$0xff]
  %v21 = vld [vmem:[%s1 + $0x10] sm:$0xff]
  %v22 = vld [vmem:[%s1 + $0x18] sm:$0xff]
  %v23 = vld [vmem:[%s1 + $0x20] sm:$0xff]
  %v24 = vld [vmem:[%s2] sm:$0xf]
  %v25 = vld [vmem:[%s2 + $0x4] sm:$0xf]
  %v26 = vld [vmem:[%s2 + $0x8] sm:$0xf]
  %v27 = vld [vmem:[%s2 + $0xc] sm:$0xf]
  %v28 = vld [vmem:[%s2 + $0x10] sm:$0xf]
  %v29 = vld [vmem:[%s2 + $0x14] sm:$0xf]
  %v30 = vld [vmem:[%s2 + $0x18] sm:$0xf]
  %v31 = vld [vmem:[%s2 + $0x1c] sm:$0xf]
  %v32 = vld [vmem:[%s2 + $0x20] sm:$0xf]
  %v33 = vld [vmem:[%s2 + $0x24] sm:$0xf]
  %v34 = vld [vmem:[%s2 + $0x28] sm:$0xf]
  %v35 = vld [vmem:[%s2 + $0x2c] sm:$0xf]
  %v36 = vld [vmem:[%s2 + $0x30] sm:$0xf]
  %v37 = vld [vmem:[%s2 + $0x34] sm:$0xf]
  %v38 = vld [vmem:[%s2 + $0x38] sm:$0xf]
  %v39 = vld [vmem:[%s2 + $0x3c] sm:$0xf]
  %v40 = vld [vmem:[%s2 + $0x40] sm:$0xf]
  %v41 = vld [vmem:[%s2 + $0x44] sm:$0xf]
  %v42 = vld [vmem:[%s2 + $0x48] sm:$0xf]
  %v43 = vld [vmem:[%s2 + $0x4c] sm:$0xf]
  %v44 = vld [vmem:[%s2 + $0x50] sm:$0xf]
  %v45 = vld [vmem:[%s2 + $0x54] sm:$0xf]
  %v46 = vld [vmem:[%s2 + $0x58] sm:$0xf]
  %v47 = vld [vmem:[%s2 + $0x5c] sm:$0xf]
  %v48 = vld [vmem:[%s2 + $0x60] sm:$0xf]
  %v49 = vld [vmem:[%s2 + $0x64] sm:$0xf]
  %v50 = vld [vmem:[%s2 + $0x68] sm:$0xf]
  %v51 = vld [vmem:[%s3] sm:$0xff]
  %v52 = vld [vmem:[%s3 + $0x8] sm:$0xff]
  %v53 = vld [vmem:[%s3 + $0x10] sm:$0xff]
  %v54 = vld [vmem:[%s3 + $0x18] sm:$0xff]
  %v55 = vld [vmem:[%s3 + $0x20] sm:$0xff]
  %57 = vset.pattern.permute.xlu0 0
  %58 = vperm.xlu0 %57, %v51
  %v59 = vpop.permute.xlu0 %58
  %62 = vset.pattern.permute.xlu0 0
  %63 = vperm.xlu0 %62, %v52
  %v64 = vpop.permute.xlu0 %63
  %67 = vset.pattern.permute.xlu0 0
  %68 = vperm.xlu0 %67, %v53
  %v69 = vpop.permute.xlu0 %68
  %72 = vset.pattern.permute.xlu0 0
  %73 = vperm.xlu0 %72, %v54
  %v74 = vpop.permute.xlu0 %73
  %77 = vset.pattern.permute.xlu0 0
  %78 = vperm.xlu0 %77, %v55
  %v79 = vpop.permute.xlu0 %78
  %v86 = vunpack.c.l.b16 %v19
  %v87 = vunpack.c.h.b16 %v19
  %v88 = vunpack.c.l.b16 %v20
  %v89 = vunpack.c.h.b16 %v20
  %v90 = vunpack.c.l.b16 %v21
  %v91 = vunpack.c.h.b16 %v21
  %v92 = vunpack.c.l.b16 %v22
  %v93 = vunpack.c.h.b16 %v22
  %v94 = vunpack.c.l.b16 %v23
  %v95 = vunpack.c.h.b16 %v23
  %v96 = vpack.c.b16 %v88, %v86
  %v97 = vpack.c.b16 %v89, %v87
  %v98 = vpack.c.b16 %v92, %v90
  %v99 = vpack.c.b16 %v93, %v91
  %v100 = vpack.c.b16 %v94, %v94
  %v101 = vpack.c.b16 %v95, %v95
  %v132 = vunpack.c.l.b16 %v24
  %v133 = vunpack.c.l.b16 %v25
  %v134 = vunpack.c.l.b16 %v26
  %v135 = vunpack.c.l.b16 %v27
  %v136 = vunpack.c.l.b16 %v28
  %v137 = vunpack.c.l.b16 %v29
  %v138 = vunpack.c.l.b16 %v30
  %v139 = vunpack.c.l.b16 %v31
  %v140 = vunpack.c.l.b16 %v32
  %v141 = vunpack.c.l.b16 %v33
  %v142 = vunpack.c.l.b16 %v34
  %v143 = vunpack.c.l.b16 %v35
  %v144 = vunpack.c.l.b16 %v36
  %v145 = vunpack.c.l.b16 %v37
  %v146 = vunpack.c.l.b16 %v38
  %v147 = vunpack.c.l.b16 %v39
  %v148 = vunpack.c.l.b16 %v40
  %v149 = vunpack.c.l.b16 %v41
  %v150 = vunpack.c.l.b16 %v42
  %v151 = vunpack.c.l.b16 %v43
  %v152 = vunpack.c.l.b16 %v44
  %v153 = vunpack.c.l.b16 %v45
  %v154 = vunpack.c.l.b16 %v46
  %v155 = vunpack.c.l.b16 %v47
  %v156 = vunpack.c.l.b16 %v48
  %v157 = vunpack.c.l.b16 %v49
  %v158 = vunpack.c.l.b16 %v50
  %v159 = vpack.c.b16 %v133, %v132
  %v160 = vpack.c.b16 %v135, %v134
  %v161 = vpack.c.b16 %v137, %v136
  %v162 = vpack.c.b16 %v139, %v138
  %v163 = vpack.c.b16 %v141, %v140
  %v164 = vpack.c.b16 %v143, %v142
  %v165 = vpack.c.b16 %v145, %v144
  %v166 = vpack.c.b16 %v147, %v146
  %v167 = vpack.c.b16 %v149, %v148
  %v168 = vpack.c.b16 %v151, %v150
  %v169 = vpack.c.b16 %v153, %v152
  %v170 = vpack.c.b16 %v155, %v154
  %v171 = vpack.c.b16 %v157, %v156
  %v172 = vpack.c.b16 %v158, %v158
  %vm186 = vcmask 719872
  %v188 = vsel %vm186, %v97, 0
  %v191 = vsel %vm186, %v99, 0
  %v194 = vsel %vm186, %v101, 0
  %vm196 = vcmask 1043456
  %v198 = vsel %vm196, %v172, 0
  %200 = vmatprep.subr.bf16.mxu0 0
  %201 = vmatpush1.bf16.msra.mxu0 %v159
  %202 = vmatprep.subr.bf16.mxu0 0
  %203 = vmatpush1.bf16.msra.mxu0 %v160
  %204 = vmatprep.subr.bf16.mxu0 0
  %205 = vmatpush1.bf16.msra.mxu0 %v161
  %206 = vmatprep.subr.bf16.mxu0 0
  %207 = vmatpush1.bf16.msra.mxu0 %v162
  %208 = vmatprep.subr.bf16.mxu0 0
  %209 = vmatpush1.bf16.msra.mxu0 %v163
  %210 = vmatprep.subr.bf16.mxu0 0
  %211 = vmatpush1.bf16.msra.mxu0 %v164
  %212 = vmatprep.subr.bf16.mxu0 0
  %213 = vmatpush1.bf16.msra.mxu0 %v165
  %214 = vmatprep.subr.bf16.mxu0 0
  %215 = vmatpush1.bf16.msra.mxu0 %v166
  %216 = vmatprep.subr.bf16.mxu0 0
  %217 = vmatpush1.bf16.msra.mxu0 %v167
  %218 = vmatprep.subr.bf16.mxu0 0
  %219 = vmatpush1.bf16.msra.mxu0 %v168
  %220 = vmatprep.subr.bf16.mxu0 0
  %221 = vmatpush1.bf16.msra.mxu0 %v169
  %222 = vmatprep.subr.bf16.mxu0 0
  %223 = vmatpush1.bf16.msra.mxu0 %v170
  %224 = vmatprep.subr.bf16.mxu0 0
  %225 = vmatpush1.bf16.msra.mxu0 %v171
  %226 = vmatprep.subr.bf16.mxu0 0
  %227 = vmatpush1.bf16.msra.mxu0 %v198
  %228 = vmatprep.subr.bf16.mxu0 0
  %229 = vmatpush1.bf16.msra.mxu0 0
  %230 = vmatprep.subr.bf16.mxu0 0
  %231 = vmatpush1.bf16.msra.mxu0 0
  %232 = vmatprep.mubr.bf16.mxu0 %v188
  %233 = vmatmul.mubr.bf16.gmra.mrb[0].mxu0 %v96
  %v234 = vpop.f32.mrb[0].mxu0
  %v235 = vadd.f32 %v59, %v234
  %v236 = vpop.f32.mrb[0].mxu0
  %v237 = vpop.f32.mrb[0].mxu0
  %v238 = vadd.f32 %v64, %v237
  %v239 = vpop.f32.mrb[0].mxu0
  %240 = vmatprep.mubr.bf16.mxu0 %v191
  %241 = vmatmul.mubr.bf16.gmra.mrb[0].mxu0 %v98
  %v242 = vpop.f32.mrb[0].mxu0
  %v243 = vadd.f32 %v69, %v242
  %v244 = vpop.f32.mrb[0].mxu0
  %v245 = vpop.f32.mrb[0].mxu0
  %v246 = vadd.f32 %v74, %v245
  %v247 = vpop.f32.mrb[0].mxu0
  %248 = vmatprep.mubr.bf16.mxu0 %v194
  %249 = vmatmul.mubr.bf16.gmra.mrb[0].mxu0 %v100
  %v250 = vpop.f32.mrb[0].mxu0
  %v251 = vadd.f32 %v79, %v250
  %v252 = vpop.f32.mrb[0].mxu0
  %v253 = vpop.f32.mrb[0].mxu0
  %v254 = vpop.f32.mrb[0].mxu0
  %255 = vdwg.mxu0
  %s256 = sld [smem:[#allocation2]]
  %vm257 = vcmp.ge.f32.partialorder %v235, 0.0
  %vm258 = vcmp.ge.f32.partialorder %v238, 0.0
  %vm259 = vcmp.ge.f32.partialorder %v243, 0.0
  %vm260 = vcmp.ge.f32.partialorder %v246, 0.0
  %vm261 = vcmp.ge.f32.partialorder %v251, 0.0
  %v262 = vstv %s256
  %v263 = vmul.f32 %v262, %v235
  %v264 = vmul.f32 %v262, %v238
  %v265 = vmul.f32 %v262, %v243
  %v266 = vmul.f32 %v262, %v246
  %v267 = vmul.f32 %v262, %v251
  %v268 = vsel %vm257, %v235, %v263
  %v269 = vsel %vm258, %v238, %v264
  %v270 = vsel %vm259, %v243, %v265
  %v271 = vsel %vm260, %v246, %v266
  %v272 = vsel %vm261, %v251, %v267
  %273 = vst [vmem:[%s4] sm:$0xff] %v268
  %274 = vst [vmem:[%s4 + $0x8] sm:$0xff] %v269
  %275 = vst [vmem:[%s4 + $0x10] sm:$0xff] %v270
  %276 = vst [vmem:[%s4 + $0x18] sm:$0xff] %v271
  %277 = vst [vmem:[%s4 + $0x20] sm:$0xff] %v272
  // Predicated region
  $region18: #{net_forward.19} parent=0 // pred_check
    _
  $region19: #{net_forward.19} parent=0 // pred_check_branch
    %279 = sbr.rel (0) target = $region21
  $region20: #{net_forward.19} parent=0 // pred_region
    _
  $region21: #{net_forward.19} parent=0 // pred_fallthru
    _
  // Predicated region
  $region22: #{net_forward.19} parent=0 // pred_check
    _
  $region23: #{net_forward.19} parent=0 // pred_check_branch
    %281 = sbr.rel (0) target = $region25
  $region24: #{net_forward.19} parent=0 // pred_region
    _
  $region25: #{net_forward.19} parent=0 // pred_fallthru
    _

// kernel: net_forward.20
$region0: #{net_forward.20}
  #allocation0 [shape = 'u32[]', space=smem, size = 0x4, offset = 0x4, fixed_abs, tag = 'smem constant byte address 0x4 - core index']
  #allocation1 [shape = 'u32[144,128]{1,0:T(1,128)}', space=vmem, size = 0x12000, scoped, tag = 'internal scratch']
  #allocation2 [shape = 'f32[1]{0:T(128)S(6)}', space=smem, size = 0x200, scoped, tag = 'scoped memory for net_forward.20']
  %s0 = inlined_call_operand.<no memory space> [shape: f32[1], index: 0, kind: input, shape index: {}]
  %s1 = inlined_call_operand.vmem [shape: bf16[80,360], index: 1, kind: input, shape index: {}]
  %s2 = inlined_call_operand.vmem [shape: bf16[360,128], index: 2, kind: input, shape index: {}]
  %s3 = inlined_call_operand.vmem [shape: f32[80,1], index: 3, kind: input, shape index: {}]
  %s4 = inlined_call_operand.vmem [shape: f32[80,128], index: 4, kind: output, shape index: {}]
  %s5 = sld [smem:[#allocation0]]
  $region26: #{net_forward.20} parent=0
    _
  %s7 = ssub.s32 1, %s5
  %s8 = scalar_select 0, %s7, %s5
  %9 = sst [smem:[#allocation2]] %s0
  // Predicated region
  $region2: #{net_forward.20} parent=0 // pred_check
    _
  $region3: #{net_forward.20} parent=0 // pred_check_branch
    %11 = sbr.rel (0) target = $region5
  $region4: #{net_forward.20} parent=0 // pred_region
    _
  $region5: #{net_forward.20} parent=0 // pred_fallthru
    _
  // Predicated region
  $region6: #{net_forward.20} parent=0 // pred_check
    _
  $region7: #{net_forward.20} parent=0 // pred_check_branch
    %13 = sbr.rel (0) target = $region9
  $region8: #{net_forward.20} parent=0 // pred_region
    _
  $region9: #{net_forward.20} parent=0 // pred_fallthru
    _
  // Predicated region
  $region10: #{net_forward.20} parent=0 // pred_check
    _
  $region11: #{net_forward.20} parent=0 // pred_check_branch
    %15 = sbr.rel (0) target = $region13
  $region12: #{net_forward.20} parent=0 // pred_region
    _
  $region13: #{net_forward.20} parent=0 // pred_fallthru
    _
  // Predicated region
  $region14: #{net_forward.20} parent=0 // pred_check
    _
  $region15: #{net_forward.20} parent=0 // pred_check_branch
    %17 = sbr.rel (0) target = $region17
  $region16: #{net_forward.20} parent=0 // pred_region
    _
  $region17: #{net_forward.20} parent=0 // pred_fallthru
    _
  %v19 = vld [vmem:[%s1] sm:$0xff]
  %v20 = vld [vmem:[%s1 + $0x8] sm:$0xf]
  %v21 = vld [vmem:[%s1 + $0xc] sm:$0xff]
  %v22 = vld [vmem:[%s1 + $0x14] sm:$0xf]
  %v23 = vld [vmem:[%s1 + $0x18] sm:$0xff]
  %v24 = vld [vmem:[%s1 + $0x20] sm:$0xf]
  %v25 = vld [vmem:[%s1 + $0x24] sm:$0xff]
  %v26 = vld [vmem:[%s1 + $0x2c] sm:$0xf]
  %v27 = vld [vmem:[%s1 + $0x30] sm:$0xff]
  %v28 = vld [vmem:[%s1 + $0x38] sm:$0xf]
  %v29 = vld [vmem:[%s1 + $0x3c] sm:$0xff]
  %v30 = vld [vmem:[%s1 + $0x44] sm:$0xf]
  %v31 = vld [vmem:[%s1 + $0x48] sm:$0xff]
  %v32 = vld [vmem:[%s1 + $0x50] sm:$0xf]
  %v33 = vld [vmem:[%s1 + $0x54] sm:$0xff]
  %v34 = vld [vmem:[%s1 + $0x5c] sm:$0xf]
  %v35 = vld [vmem:[%s1 + $0x60] sm:$0xff]
  %v36 = vld [vmem:[%s1 + $0x68] sm:$0xf]
  %v37 = vld [vmem:[%s1 + $0x6c] sm:$0xff]
  %v38 = vld [vmem:[%s1 + $0x74] sm:$0xf]
  %v39 = vld [vmem:[%s2] sm:$0xf]
  %v40 = vld [vmem:[%s2 + $0x4] sm:$0xf]
  %v41 = vld [vmem:[%s2 + $0x8] sm:$0xf]
  %v42 = vld [vmem:[%s2 + $0xc] sm:$0xf]
  %v43 = vld [vmem:[%s2 + $0x10] sm:$0xf]
  %v44 = vld [vmem:[%s2 + $0x14] sm:$0xf]
  %v45 = vld [vmem:[%s2 + $0x18] sm:$0xf]
  %v46 = vld [vmem:[%s2 + $0x1c] sm:$0xf]
  %v47 = vld [vmem:[%s2 + $0x20] sm:$0xf]
  %v48 = vld [vmem:[%s2 + $0x24] sm:$0xf]
  %v49 = vld [vmem:[%s2 + $0x28] sm:$0xf]
  %v50 = vld [vmem:[%s2 + $0x2c] sm:$0xf]
  %v51 = vld [vmem:[%s2 + $0x30] sm:$0xf]
  %v52 = vld [vmem:[%s2 + $0x34] sm:$0xf]
  %v53 = vld [vmem:[%s2 + $0x38] sm:$0xf]
  %v54 = vld [vmem:[%s2 + $0x3c] sm:$0xf]
  %v55 = vld [vmem:[%s2 + $0x40] sm:$0xf]
  %v56 = vld [vmem:[%s2 + $0x44] sm:$0xf]
  %v57 = vld [vmem:[%s2 + $0x48] sm:$0xf]
  %v58 = vld [vmem:[%s2 + $0x4c] sm:$0xf]
  %v59 = vld [vmem:[%s2 + $0x50] sm:$0xf]
  %v60 = vld [vmem:[%s2 + $0x54] sm:$0xf]
  %v61 = vld [vmem:[%s2 + $0x58] sm:$0xf]
  %v62 = vld [vmem:[%s2 + $0x5c] sm:$0xf]
  %v63 = vld [vmem:[%s2 + $0x60] sm:$0xf]
  %v64 = vld [vmem:[%s2 + $0x64] sm:$0xf]
  %v65 = vld [vmem:[%s2 + $0x68] sm:$0xf]
  %v66 = vld [vmem:[%s2 + $0x6c] sm:$0xf]
  %v67 = vld [vmem:[%s2 + $0x70] sm:$0xf]
  %v68 = vld [vmem:[%s2 + $0x74] sm:$0xf]
  %v69 = vld [vmem:[%s2 + $0x78] sm:$0xf]
  %v70 = vld [vmem:[%s2 + $0x7c] sm:$0xf]
  %v71 = vld [vmem:[%s2 + $0x80] sm:$0xf]
  %v72 = vld [vmem:[%s2 + $0x84] sm:$0xf]
  %v73 = vld [vmem:[%s2 + $0x88] sm:$0xf]
  %v74 = vld [vmem:[%s2 + $0x8c] sm:$0xf]
  %v75 = vld [vmem:[%s2 + $0x90] sm:$0xf]
  %v76 = vld [vmem:[%s2 + $0x94] sm:$0xf]
  %v77 = vld [vmem:[%s2 + $0x98] sm:$0xf]
  %v78 = vld [vmem:[%s2 + $0x9c] sm:$0xf]
  %v79 = vld [vmem:[%s2 + $0xa0] sm:$0xf]
  %v80 = vld [vmem:[%s2 + $0xa4] sm:$0xf]
  %v81 = vld [vmem:[%s2 + $0xa8] sm:$0xf]
  %v82 = vld [vmem:[%s2 + $0xac] sm:$0xf]
  %v83 = vld [vmem:[%s2 + $0xb0] sm:$0xf]
  %v84 = vld [vmem:[%s3] sm:$0xff]
  %v85 = vld [vmem:[%s3 + $0x8] sm:$0xff]
  %v86 = vld [vmem:[%s3 + $0x10] sm:$0xff]
  %v87 = vld [vmem:[%s3 + $0x18] sm:$0xff]
  %v88 = vld [vmem:[%s3 + $0x20] sm:$0xff]
  %v89 = vld [vmem:[%s3 + $0x28] sm:$0xff]
  %v90 = vld [vmem:[%s3 + $0x30] sm:$0xff]
  %v91 = vld [vmem:[%s3 + $0x38] sm:$0xff]
  %v92 = vld [vmem:[%s3 + $0x40] sm:$0xff]
  %v93 = vld [vmem:[%s3 + $0x48] sm:$0xff]
  %95 = vset.pattern.permute.xlu0 0
  %96 = vperm.xlu0 %95, %v84
  %v97 = vpop.permute.xlu0 %96
  %100 = vset.pattern.permute.xlu0 0
  %101 = vperm.xlu0 %100, %v85
  %v102 = vpop.permute.xlu0 %101
  %105 = vset.pattern.permute.xlu0 0
  %106 = vperm.xlu0 %105, %v86
  %v107 = vpop.permute.xlu0 %106
  %110 = vset.pattern.permute.xlu0 0
  %111 = vperm.xlu0 %110, %v87
  %v112 = vpop.permute.xlu0 %111
  %115 = vset.pattern.permute.xlu0 0
  %116 = vperm.xlu0 %115, %v88
  %v117 = vpop.permute.xlu0 %116
  %120 = vset.pattern.permute.xlu0 0
  %121 = vperm.xlu0 %120, %v89
  %v122 = vpop.permute.xlu0 %121
  %125 = vset.pattern.permute.xlu0 0
  %126 = vperm.xlu0 %125, %v90
  %v127 = vpop.permute.xlu0 %126
  %130 = vset.pattern.permute.xlu0 0
  %131 = vperm.xlu0 %130, %v91
  %v132 = vpop.permute.xlu0 %131
  %135 = vset.pattern.permute.xlu0 0
  %136 = vperm.xlu0 %135, %v92
  %v137 = vpop.permute.xlu0 %136
  %140 = vset.pattern.permute.xlu0 0
  %141 = vperm.xlu0 %140, %v93
  %v142 = vpop.permute.xlu0 %141
  %v164 = vunpack.c.l.b16 %v19
  %v165 = vunpack.c.h.b16 %v19
  %v166 = vunpack.c.l.b16 %v20
  %v167 = vunpack.c.l.b16 %v21
  %v168 = vunpack.c.h.b16 %v21
  %v169 = vunpack.c.l.b16 %v22
  %v170 = vunpack.c.l.b16 %v23
  %v171 = vunpack.c.h.b16 %v23
  %v172 = vunpack.c.l.b16 %v24
  %v173 = vunpack.c.l.b16 %v25
  %v174 = vunpack.c.h.b16 %v25
  %v175 = vunpack.c.l.b16 %v26
  %v176 = vunpack.c.l.b16 %v27
  %v177 = vunpack.c.h.b16 %v27
  %v178 = vunpack.c.l.b16 %v28
  %v179 = vunpack.c.l.b16 %v29
  %v180 = vunpack.c.h.b16 %v29
  %v181 = vunpack.c.l.b16 %v30
  %v182 = vunpack.c.l.b16 %v31
  %v183 = vunpack.c.h.b16 %v31
  %v184 = vunpack.c.l.b16 %v32
  %v185 = vunpack.c.l.b16 %v33
  %v186 = vunpack.c.h.b16 %v33
  %v187 = vunpack.c.l.b16 %v34
  %v188 = vunpack.c.l.b16 %v35
  %v189 = vunpack.c.h.b16 %v35
  %v190 = vunpack.c.l.b16 %v36
  %v191 = vunpack.c.l.b16 %v37
  %v192 = vunpack.c.h.b16 %v37
  %v193 = vunpack.c.l.b16 %v38
  %v194 = vpack.c.b16 %v167, %v164
  %v195 = vpack.c.b16 %v168, %v165
  %v196 = vpack.c.b16 %v169, %v166
  %v197 = vpack.c.b16 %v173, %v170
  %v198 = vpack.c.b16 %v174, %v171
  %v199 = vpack.c.b16 %v175, %v172
  %v200 = vpack.c.b16 %v179, %v176
  %v201 = vpack.c.b16 %v180, %v177
  %v202 = vpack.c.b16 %v181, %v178
  %v203 = vpack.c.b16 %v185, %v182
  %v204 = vpack.c.b16 %v186, %v183
  %v205 = vpack.c.b16 %v187, %v184
  %v206 = vpack.c.b16 %v191, %v188
  %v207 = vpack.c.b16 %v192, %v189
  %v208 = vpack.c.b16 %v193, %v190
  %v264 = vunpack.c.l.b16 %v39
  %v265 = vunpack.c.l.b16 %v40
  %v266 = vunpack.c.l.b16 %v41
  %v267 = vunpack.c.l.b16 %v42
  %v268 = vunpack.c.l.b16 %v43
  %v269 = vunpack.c.l.b16 %v44
  %v270 = vunpack.c.l.b16 %v45
  %v271 = vunpack.c.l.b16 %v46
  %v272 = vunpack.c.l.b16 %v47
  %v273 = vunpack.c.l.b16 %v48
  %v274 = vunpack.c.l.b16 %v49
  %v275 = vunpack.c.l.b16 %v50
  %v276 = vunpack.c.l.b16 %v51
  %v277 = vunpack.c.l.b16 %v52
  %v278 = vunpack.c.l.b16 %v53
  %v279 = vunpack.c.l.b16 %v54
  %v280 = vunpack.c.l.b16 %v55
  %v281 = vunpack.c.l.b16 %v56
  %v282 = vunpack.c.l.b16 %v57
  %v283 = vunpack.c.l.b16 %v58
  %v284 = vunpack.c.l.b16 %v59
  %v285 = vunpack.c.l.b16 %v60
  %v286 = vunpack.c.l.b16 %v61
  %v287 = vunpack.c.l.b16 %v62
  %v288 = vunpack.c.l.b16 %v63
  %v289 = vunpack.c.l.b16 %v64
  %v290 = vunpack.c.l.b16 %v65
  %v291 = vunpack.c.l.b16 %v66
  %v292 = vunpack.c.l.b16 %v67
  %v293 = vunpack.c.l.b16 %v68
  %v294 = vunpack.c.l.b16 %v69
  %v295 = vunpack.c.l.b16 %v70
  %v296 = vunpack.c.l.b16 %v71
  %v297 = vunpack.c.l.b16 %v72
  %v298 = vunpack.c.l.b16 %v73
  %v299 = vunpack.c.l.b16 %v74
  %v300 = vunpack.c.l.b16 %v75
  %v301 = vunpack.c.l.b16 %v76
  %v302 = vunpack.c.l.b16 %v77
  %v303 = vunpack.c.l.b16 %v78
  %v304 = vunpack.c.l.b16 %v79
  %v305 = vunpack.c.l.b16 %v80
  %v306 = vunpack.c.l.b16 %v81
  %v307 = vunpack.c.l.b16 %v82
  %v308 = vunpack.c.l.b16 %v83
  %v309 = vpack.c.b16 %v265, %v264
  %v310 = vpack.c.b16 %v267, %v266
  %v311 = vpack.c.b16 %v269, %v268
  %v312 = vpack.c.b16 %v271, %v270
  %v313 = vpack.c.b16 %v273, %v272
  %v314 = vpack.c.b16 %v275, %v274
  %v315 = vpack.c.b16 %v277, %v276
  %v316 = vpack.c.b16 %v279, %v278
  %v317 = vpack.c.b16 %v281, %v280
  %v318 = vpack.c.b16 %v283, %v282
  %v319 = vpack.c.b16 %v285, %v284
  %v320 = vpack.c.b16 %v287, %v286
  %v321 = vpack.c.b16 %v289, %v288
  %v322 = vpack.c.b16 %v291, %v290
  %v323 = vpack.c.b16 %v293, %v292
  %v324 = vpack.c.b16 %v295, %v294
  %v325 = vpack.c.b16 %v297, %v296
  %v326 = vpack.c.b16 %v299, %v298
  %v327 = vpack.c.b16 %v301, %v300
  %v328 = vpack.c.b16 %v303, %v302
  %v329 = vpack.c.b16 %v305, %v304
  %v330 = vpack.c.b16 %v307, %v306
  %v331 = vpack.c.b16 %v308, %v308
  %vm354 = vcmask 850944
  %v356 = vsel %vm354, %v196, 0
  %v359 = vsel %vm354, %v199, 0
  %v362 = vsel %vm354, %v202, 0
  %v365 = vsel %vm354, %v205, 0
  %v368 = vsel %vm354, %v208, 0
  %vm370 = vcmask 1043456
  %v372 = vsel %vm370, %v331, 0
  %374 = vmatprep.subr.bf16.mxu0 0
  %375 = vmatpush1.bf16.msra.mxu0 %v309
  %376 = vmatprep.subr.bf16.mxu0 0
  %377 = vmatpush1.bf16.msra.mxu0 %v310
  %378 = vmatprep.subr.bf16.mxu0 0
  %379 = vmatpush1.bf16.msra.mxu0 %v311
  %380 = vmatprep.subr.bf16.mxu0 0
  %381 = vmatpush1.bf16.msra.mxu0 %v312
  %382 = vmatprep.subr.bf16.mxu0 0
  %383 = vmatpush1.bf16.msra.mxu0 %v313
  %384 = vmatprep.subr.bf16.mxu0 0
  %385 = vmatpush1.bf16.msra.mxu0 %v314
  %386 = vmatprep.subr.bf16.mxu0 0
  %387 = vmatpush1.bf16.msra.mxu0 %v315
  %388 = vmatprep.subr.bf16.mxu0 0
  %389 = vmatpush1.bf16.msra.mxu0 %v316
  %390 = vmatprep.subr.bf16.mxu0 0
  %391 = vmatpush1.bf16.msra.mxu0 %v317
  %392 = vmatprep.subr.bf16.mxu0 0
  %393 = vmatpush1.bf16.msra.mxu0 %v318
  %394 = vmatprep.subr.bf16.mxu0 0
  %395 = vmatpush1.bf16.msra.mxu0 %v319
  %396 = vmatprep.subr.bf16.mxu0 0
  %397 = vmatpush1.bf16.msra.mxu0 %v320
  %398 = vmatprep.subr.bf16.mxu0 0
  %399 = vmatpush1.bf16.msra.mxu0 %v321
  %400 = vmatprep.subr.bf16.mxu0 0
  %401 = vmatpush1.bf16.msra.mxu0 %v322
  %402 = vmatprep.subr.bf16.mxu0 0
  %403 = vmatpush1.bf16.msra.mxu0 %v323
  %404 = vmatprep.subr.bf16.mxu0 0
  %405 = vmatpush1.bf16.msra.mxu0 %v324
  %406 = vmatprep.mubr.bf16.mxu0 %v195
  %407 = vmatmul.mubr.bf16.gmra.mrb[0].mxu0 %v194
  %v408 = vpop.f32.mrb[0].mxu0
  %v409 = vadd.f32 %v97, %v408
  %v410 = vpop.f32.mrb[0].mxu0
  %v411 = vpop.f32.mrb[0].mxu0
  %v412 = vadd.f32 %v102, %v411
  %v413 = vpop.f32.mrb[0].mxu0
  %414 = vmatprep.mubr.bf16.mxu0 %v198
  %415 = vmatmul.mubr.bf16.gmra.mrb[0].mxu0 %v197
  %v416 = vpop.f32.mrb[0].mxu0
  %v417 = vadd.f32 %v107, %v416
  %v418 = vpop.f32.mrb[0].mxu0
  %v419 = vpop.f32.mrb[0].mxu0
  %v420 = vadd.f32 %v112, %v419
  %v421 = vpop.f32.mrb[0].mxu0
  %422 = vmatprep.mubr.bf16.mxu0 %v201
  %423 = vmatmul.mubr.bf16.gmra.mrb[0].mxu0 %v200
  %v424 = vpop.f32.mrb[0].mxu0
  %v425 = vadd.f32 %v117, %v424
  %v426 = vpop.f32.mrb[0].mxu0
  %v427 = vpop.f32.mrb[0].mxu0
  %v428 = vadd.f32 %v122, %v427
  %v429 = vpop.f32.mrb[0].mxu0
  %430 = vmatprep.mubr.bf16.mxu0 %v204
  %431 = vmatmul.mubr.bf16.gmra.mrb[0].mxu0 %v203
  %v432 = vpop.f32.mrb[0].mxu0
  %v433 = vadd.f32 %v127, %v432
  %v434 = vpop.f32.mrb[0].mxu0
  %v435 = vpop.f32.mrb[0].mxu0
  %v436 = vadd.f32 %v132, %v435
  %v437 = vpop.f32.mrb[0].mxu0
  %438 = vmatprep.mubr.bf16.mxu0 %v207
  %439 = vmatmul.mubr.bf16.gmra.mrb[0].mxu0 %v206
  %v440 = vpop.f32.mrb[0].mxu0
  %v441 = vadd.f32 %v137, %v440
  %v442 = vpop.f32.mrb[0].mxu0
  %v443 = vpop.f32.mrb[0].mxu0
  %v444 = vadd.f32 %v142, %v443
  %v445 = vpop.f32.mrb[0].mxu0
  %446 = vdwg.mxu0
  %447 = vmatprep.subr.bf16.mxu0 0
  %448 = vmatpush1.bf16.msra.mxu0 %v325
  %449 = vmatprep.subr.bf16.mxu0 0
  %450 = vmatpush1.bf16.msra.mxu0 %v326
  %451 = vmatprep.subr.bf16.mxu0 0
  %452 = vmatpush1.bf16.msra.mxu0 %v327
  %453 = vmatprep.subr.bf16.mxu0 0
  %454 = vmatpush1.bf16.msra.mxu0 %v328
  %455 = vmatprep.subr.bf16.mxu0 0
  %456 = vmatpush1.bf16.msra.mxu0 %v329
  %457 = vmatprep.subr.bf16.mxu0 0
  %458 = vmatpush1.bf16.msra.mxu0 %v330
  %459 = vmatprep.subr.bf16.mxu0 0
  %460 = vmatpush1.bf16.msra.mxu0 %v372
  %461 = vmatprep.subr.bf16.mxu0 0
  %462 = vmatpush1.bf16.msra.mxu0 0
  %463 = vmatprep.subr.bf16.mxu0 0
  %464 = vmatpush1.bf16.msra.mxu0 0
  %465 = vmatprep.subr.bf16.mxu0 0
  %466 = vmatpush1.bf16.msra.mxu0 0
  %467 = vmatprep.subr.bf16.mxu0 0
  %468 = vmatpush1.bf16.msra.mxu0 0
  %469 = vmatprep.subr.bf16.mxu0 0
  %470 = vmatpush1.bf16.msra.mxu0 0
  %471 = vmatprep.subr.bf16.mxu0 0
  %472 = vmatpush1.bf16.msra.mxu0 0
  %473 = vmatprep.subr.bf16.mxu0 0
  %474 = vmatpush1.bf16.msra.mxu0 0
  %475 = vmatprep.subr.bf16.mxu0 0
  %476 = vmatpush1.bf16.msra.mxu0 0
  %477 = vmatprep.subr.bf16.mxu0 0
  %478 = vmatpush1.bf16.msra.mxu0 0
  %479 = vmatprep.mubr.bf16.mxu0 0
  %480 = vmatmul.mubr.bf16.gmra.mrb[0].mxu0 %v356
  %v481 = vpop.f32.mrb[0].mxu0
  %v482 = vadd.f32 %v409, %v481
  %v483 = vpop.f32.mrb[0].mxu0
  %v484 = vpop.f32.mrb[0].mxu0
  %v485 = vadd.f32 %v412, %v484
  %v486 = vpop.f32.mrb[0].mxu0
  %487 = vmatprep.mubr.bf16.mxu0 0
  %488 = vmatmul.mubr.bf16.gmra.mrb[0].mxu0 %v359
  %v489 = vpop.f32.mrb[0].mxu0
  %v490 = vadd.f32 %v417, %v489
  %v491 = vpop.f32.mrb[0].mxu0
  %v492 = vpop.f32.mrb[0].mxu0
  %v493 = vadd.f32 %v420, %v492
  %v494 = vpop.f32.mrb[0].mxu0
  %495 = vmatprep.mubr.bf16.mxu0 0
  %496 = vmatmul.mubr.bf16.gmra.mrb[0].mxu0 %v362
  %v497 = vpop.f32.mrb[0].mxu0
  %v498 = vadd.f32 %v425, %v497
  %v499 = vpop.f32.mrb[0].mxu0
  %v500 = vpop.f32.mrb[0].mxu0
  %v501 = vadd.f32 %v428, %v500
  %v502 = vpop.f32.mrb[0].mxu0
  %503 = vmatprep.mubr.bf16.mxu0 0
  %504 = vmatmul.mubr.bf16.gmra.mrb[0].mxu0 %v365
  %v505 = vpop.f32.mrb[0].mxu0
  %v506 = vadd.f32 %v433, %v505
  %v507 = vpop.f32.mrb[0].mxu0
  %v508 = vpop.f32.mrb[0].mxu0
  %v509 = vadd.f32 %v436, %v508
  %v510 = vpop.f32.mrb[0].mxu0
  %511 = vmatprep.mubr.bf16.mxu0 0
  %512 = vmatmul.mubr.bf16.gmra.mrb[0].mxu0 %v368
  %v513 = vpop.f32.mrb[0].mxu0
  %v514 = vadd.f32 %v441, %v513
  %v515 = vpop.f32.mrb[0].mxu0
  %v516 = vpop.f32.mrb[0].mxu0
  %v517 = vadd.f32 %v444, %v516
  %v518 = vpop.f32.mrb[0].mxu0
  %519 = vdwg.mxu0
  %s520 = sld [smem:[#allocation2]]
  %vm521 = vcmp.ge.f32.partialorder %v482, 0.0
  %vm522 = vcmp.ge.f32.partialorder %v485, 0.0
  %vm523 = vcmp.ge.f32.partialorder %v490, 0.0
  %vm524 = vcmp.ge.f32.partialorder %v493, 0.0
  %vm525 = vcmp.ge.f32.partialorder %v498, 0.0
  %vm526 = vcmp.ge.f32.partialorder %v501, 0.0
  %vm527 = vcmp.ge.f32.partialorder %v506, 0.0
  %vm528 = vcmp.ge.f32.partialorder %v509, 0.0
  %vm529 = vcmp.ge.f32.partialorder %v514, 0.0
  %vm530 = vcmp.ge.f32.partialorder %v517, 0.0
  %v531 = vstv %s520
  %v532 = vmul.f32 %v531, %v482
  %v533 = vmul.f32 %v531, %v485
  %v534 = vmul.f32 %v531, %v490
  %v535 = vmul.f32 %v531, %v493
  %v536 = vmul.f32 %v531, %v498
  %v537 = vmul.f32 %v531, %v501
  %v538 = vmul.f32 %v531, %v506
  %v539 = vmul.f32 %v531, %v509
  %v540 = vmul.f32 %v531, %v514
  %v541 = vmul.f32 %v531, %v517
  %v542 = vsel %vm521, %v482, %v532
  %v543 = vsel %vm522, %v485, %v533
  %v544 = vsel %vm523, %v490, %v534
  %v545 = vsel %vm524, %v493, %v535
  %v546 = vsel %vm525, %v498, %v536
  %v547 = vsel %vm526, %v501, %v537
  %v548 = vsel %vm527, %v506, %v538
  %v549 = vsel %vm528, %v509, %v539
  %v550 = vsel %vm529, %v514, %v540
  %v551 = vsel %vm530, %v517, %v541
  %552 = vst [vmem:[%s4] sm:$0xff] %v542
  %553 = vst [vmem:[%s4 + $0x8] sm:$0xff] %v543
  %554 = vst [vmem:[%s4 + $0x10] sm:$0xff] %v544
  %555 = vst [vmem:[%s4 + $0x18] sm:$0xff] %v545
  %556 = vst [vmem:[%s4 + $0x20] sm:$0xff] %v546
  %557 = vst [vmem:[%s4 + $0x28] sm:$0xff] %v547
  %558 = vst [vmem:[%s4 + $0x30] sm:$0xff] %v548
  %559 = vst [vmem:[%s4 + $0x38] sm:$0xff] %v549
  %560 = vst [vmem:[%s4 + $0x40] sm:$0xff] %v550
  %561 = vst [vmem:[%s4 + $0x48] sm:$0xff] %v551
  // Predicated region
  $region18: #{net_forward.20} parent=0 // pred_check
    _
  $region19: #{net_forward.20} parent=0 // pred_check_branch
    %563 = sbr.rel (0) target = $region21
  $region20: #{net_forward.20} parent=0 // pred_region
    _
  $region21: #{net_forward.20} parent=0 // pred_fallthru
    _
  // Predicated region
  $region22: #{net_forward.20} parent=0 // pred_check
    _
  $region23: #{net_forward.20} parent=0 // pred_check_branch
    %565 = sbr.rel (0) target = $region25
  $region24: #{net_forward.20} parent=0 // pred_region
    _
  $region25: #{net_forward.20} parent=0 // pred_fallthru
    _

// kernel: net_forward.21
$region0: #{net_forward.21}
  #allocation0 [shape = 'u32[]', space=smem, size = 0x4, offset = 0x4, fixed_abs, tag = 'smem constant byte address 0x4 - core index']
  #allocation1 [shape = 'u32[144,128]{1,0:T(1,128)}', space=vmem, size = 0x12000, scoped, tag = 'internal scratch']
  %s0 = inlined_call_operand.vmem [shape: f32[2], index: 0, kind: input, shape index: {}]
  %s1 = inlined_call_operand.vmem [shape: bf16[2,1280], index: 1, kind: input, shape index: {}]
  %s2 = inlined_call_operand.vmem [shape: bf16[1280,128], index: 2, kind: input, shape index: {}]
  %s3 = inlined_call_operand.vmem [shape: f32[1,128], index: 3, kind: input, shape index: {}]
  %s4 = inlined_call_operand.vmem [shape: bf16[128,128], index: 4, kind: input, shape index: {}]
  %s5 = inlined_call_operand.vmem [shape: f32[1,128], index: 5, kind: input, shape index: {}]
  %s6 = inlined_call_operand.vmem [shape: bf16[128,42], index: 6, kind: input, shape index: {}]
  %s7 = inlined_call_operand.vmem [shape: f32[1,42], index: 7, kind: input, shape index: {}]
  %s8 = inlined_call_operand.hbm [shape: f32[2,42], index: 8, kind: output, shape index: {}]
  %s9 = sld [smem:[#allocation0]]
  $region46: #{net_forward.21} parent=0
    _
  %s11 = ssub.s32 1, %s9
  %s12 = scalar_select 0, %s11, %s9
  $region1: #{net_forward.21} parent=0
    #allocation2 [shape = 'u8[512]{0}', space=smem, size = 0x200, scoped, tag = 'input window, operand 0, single buffered']
    #allocation3 [shape = 's32[1]{0}', space=sflag, size = 0x4, scoped, tag = 'scoped memory for net_forward.21']
    #allocation4 [shape = 's32[1]{0}', space=sflag, size = 0x4, scoped, tag = 'scoped memory for net_forward.21']
    #allocation5 [shape = 'u8[1024]{0}', space=vmem, size = 0x400, scoped, tag = 'output window, operand 0, single buffered']
    %13 = vsyncpa [#allocation4], 0
    %14 = vsyncpa [#allocation3], 0
    // Predicated region
    $region2: #{net_forward.21} parent=1 // pred_check
      _
    $region3: #{net_forward.21} parent=1 // pred_check_branch
      %16 = sbr.rel (0) target = $region5
    $region4: #{net_forward.21} parent=1 // pred_region
      %s18 = ssub.s32 16, 16
      %19 = vsyncadd [#allocation4], %s18
      %s21 = sshll.u32 %s0, 4
      %s22 = int_to_ptr.vmem [resolvable:$true] %s21
      %24 = dma.vmem_to_smem %s22, 16, [#allocation2], [#allocation4]
    $region5: #{net_forward.21} parent=1 // pred_fallthru
      _
    // Predicated region
    $region6: #{net_forward.21} parent=1 // pred_check
      _
    $region7: #{net_forward.21} parent=1 // pred_check_branch
      %26 = sbr.rel (0) target = $region9
    $region8: #{net_forward.21} parent=1 // pred_region
      _
    $region9: #{net_forward.21} parent=1 // pred_fallthru
      _
    // Predicated region
    $region10: #{net_forward.21} parent=1 // pred_check
      _
    $region11: #{net_forward.21} parent=1 // pred_check_branch
      %28 = sbr.rel (0) target = $region13
    $region12: #{net_forward.21} parent=1 // pred_region
      _
    $region13: #{net_forward.21} parent=1 // pred_fallthru
      _
    // Predicated region
    $region14: #{net_forward.21} parent=1 // pred_check
      _
    $region15: #{net_forward.21} parent=1 // pred_check_branch
      %30 = sbr.rel (0) target = $region17
    $region16: #{net_forward.21} parent=1 // pred_region
      _
    $region17: #{net_forward.21} parent=1 // pred_fallthru
      _
    // Predicated region
    $region18: #{net_forward.21} parent=1 // pred_check
      _
    $region19: #{net_forward.21} parent=1 // pred_check_branch
      %32 = sbr.rel (0) target = $region21
    $region20: #{net_forward.21} parent=1 // pred_region
      _
    $region21: #{net_forward.21} parent=1 // pred_fallthru
      _
    // Predicated region
    $region22: #{net_forward.21} parent=1 // pred_check
      _
    $region23: #{net_forward.21} parent=1 // pred_check_branch
      %34 = sbr.rel (0) target = $region25
    $region24: #{net_forward.21} parent=1 // pred_region
      _
    $region25: #{net_forward.21} parent=1 // pred_fallthru
      _
    // Predicated region
    $region26: #{net_forward.21} parent=1 // pred_check
      _
    $region27: #{net_forward.21} parent=1 // pred_check_branch
      %36 = sbr.rel (0) target = $region29
    $region28: #{net_forward.21} parent=1 // pred_region
      _
    $region29: #{net_forward.21} parent=1 // pred_fallthru
      _
    // Predicated region
    $region30: #{net_forward.21} parent=1 // pred_check
      _
    $region31: #{net_forward.21} parent=1 // pred_check_branch
      %38 = sbr.rel (0) target = $region33
    $region32: #{net_forward.21} parent=1 // pred_region
      _
    $region33: #{net_forward.21} parent=1 // pred_fallthru
      _
    // Predicated region
    $region34: #{net_forward.21} parent=1 // pred_check
      _
    $region35: #{net_forward.21} parent=1 // pred_check_branch
      %40 = sbr.rel (0) target = $region37
    $region36: #{net_forward.21} parent=1 // pred_region
      %41 = dma.done [#allocation4], 16
    $region37: #{net_forward.21} parent=1 // pred_fallthru
      _
    %42 = sfence
    %v44 = vld [vmem:[%s1] sm:$0xff]
    %v45 = vld [vmem:[%s1 + $0x8] sm:$0x3]
    %v46 = vld [vmem:[%s2] sm:$0xf]
    %v47 = vld [vmem:[%s2 + $0x4] sm:$0xf]
    %v48 = vld [vmem:[%s2 + $0x8] sm:$0xf]
    %v49 = vld [vmem:[%s2 + $0xc] sm:$0xf]
    %v50 = vld [vmem:[%s2 + $0x10] sm:$0xf]
    %v51 = vld [vmem:[%s2 + $0x14] sm:$0xf]
    %v52 = vld [vmem:[%s2 + $0x18] sm:$0xf]
    %v53 = vld [vmem:[%s2 + $0x1c] sm:$0xf]
    %v54 = vld [vmem:[%s2 + $0x20] sm:$0xf]
    %v55 = vld [vmem:[%s2 + $0x24] sm:$0xf]
    %v56 = vld [vmem:[%s2 + $0x28] sm:$0xf]
    %v57 = vld [vmem:[%s2 + $0x2c] sm:$0xf]
    %v58 = vld [vmem:[%s2 + $0x30] sm:$0xf]
    %v59 = vld [vmem:[%s2 + $0x34] sm:$0xf]
    %v60 = vld [vmem:[%s2 + $0x38] sm:$0xf]
    %v61 = vld [vmem:[%s2 + $0x3c] sm:$0xf]
    %v62 = vld [vmem:[%s2 + $0x40] sm:$0xf]
    %v63 = vld [vmem:[%s2 + $0x44] sm:$0xf]
    %v64 = vld [vmem:[%s2 + $0x48] sm:$0xf]
    %v65 = vld [vmem:[%s2 + $0x4c] sm:$0xf]
    %v66 = vld [vmem:[%s2 + $0x50] sm:$0xf]
    %v67 = vld [vmem:[%s2 + $0x54] sm:$0xf]
    %v68 = vld [vmem:[%s2 + $0x58] sm:$0xf]
    %v69 = vld [vmem:[%s2 + $0x5c] sm:$0xf]
    %v70 = vld [vmem:[%s2 + $0x60] sm:$0xf]
    %v71 = vld [vmem:[%s2 + $0x64] sm:$0xf]
    %v72 = vld [vmem:[%s2 + $0x68] sm:$0xf]
    %v73 = vld [vmem:[%s2 + $0x6c] sm:$0xf]
    %v74 = vld [vmem:[%s2 + $0x70] sm:$0xf]
    %v75 = vld [vmem:[%s2 + $0x74] sm:$0xf]
    %v76 = vld [vmem:[%s2 + $0x78] sm:$0xf]
    %v77 = vld [vmem:[%s2 + $0x7c] sm:$0xf]
    %v78 = vld [vmem:[%s2 + $0x80] sm:$0xf]
    %v79 = vld [vmem:[%s2 + $0x84] sm:$0xf]
    %v80 = vld [vmem:[%s2 + $0x88] sm:$0xf]
    %v81 = vld [vmem:[%s2 + $0x8c] sm:$0xf]
    %v82 = vld [vmem:[%s2 + $0x90] sm:$0xf]
    %v83 = vld [vmem:[%s2 + $0x94] sm:$0xf]
    %v84 = vld [vmem:[%s2 + $0x98] sm:$0xf]
    %v85 = vld [vmem:[%s2 + $0x9c] sm:$0xf]
    %v86 = vld [vmem:[%s2 + $0xa0] sm:$0xf]
    %v87 = vld [vmem:[%s2 + $0xa4] sm:$0xf]
    %v88 = vld [vmem:[%s2 + $0xa8] sm:$0xf]
    %v89 = vld [vmem:[%s2 + $0xac] sm:$0xf]
    %v90 = vld [vmem:[%s2 + $0xb0] sm:$0xf]
    %v91 = vld [vmem:[%s2 + $0xb4] sm:$0xf]
    %v92 = vld [vmem:[%s2 + $0xb8] sm:$0xf]
    %v93 = vld [vmem:[%s2 + $0xbc] sm:$0xf]
    %v94 = vld [vmem:[%s2 + $0xc0] sm:$0xf]
    %v95 = vld [vmem:[%s2 + $0xc4] sm:$0xf]
    %v96 = vld [vmem:[%s2 + $0xc8] sm:$0xf]
    %v97 = vld [vmem:[%s2 + $0xcc] sm:$0xf]
    %v98 = vld [vmem:[%s2 + $0xd0] sm:$0xf]
    %v99 = vld [vmem:[%s2 + $0xd4] sm:$0xf]
    %v100 = vld [vmem:[%s2 + $0xd8] sm:$0xf]
    %v101 = vld [vmem:[%s2 + $0xdc] sm:$0xf]
    %v102 = vld [vmem:[%s2 + $0xe0] sm:$0xf]
    %v103 = vld [vmem:[%s2 + $0xe4] sm:$0xf]
    %v104 = vld [vmem:[%s2 + $0xe8] sm:$0xf]
    %v105 = vld [vmem:[%s2 + $0xec] sm:$0xf]
    %v106 = vld [vmem:[%s2 + $0xf0] sm:$0xf]
    %v107 = vld [vmem:[%s2 + $0xf4] sm:$0xf]
    %v108 = vld [vmem:[%s2 + $0xf8] sm:$0xf]
    %v109 = vld [vmem:[%s2 + $0xfc] sm:$0xf]
    %v110 = vld [vmem:[%s2 + $0x100] sm:$0xf]
    %v111 = vld [vmem:[%s2 + $0x104] sm:$0xf]
    %v112 = vld [vmem:[%s2 + $0x108] sm:$0xf]
    %v113 = vld [vmem:[%s2 + $0x10c] sm:$0xf]
    %v114 = vld [vmem:[%s2 + $0x110] sm:$0xf]
    %v115 = vld [vmem:[%s2 + $0x114] sm:$0xf]
    %v116 = vld [vmem:[%s2 + $0x118] sm:$0xf]
    %v117 = vld [vmem:[%s2 + $0x11c] sm:$0xf]
    %v118 = vld [vmem:[%s2 + $0x120] sm:$0xf]
    %v119 = vld [vmem:[%s2 + $0x124] sm:$0xf]
    %v120 = vld [vmem:[%s2 + $0x128] sm:$0xf]
    %v121 = vld [vmem:[%s2 + $0x12c] sm:$0xf]
    %v122 = vld [vmem:[%s2 + $0x130] sm:$0xf]
    %v123 = vld [vmem:[%s2 + $0x134] sm:$0xf]
    %v124 = vld [vmem:[%s2 + $0x138] sm:$0xf]
    %v125 = vld [vmem:[%s2 + $0x13c] sm:$0xf]
    %v126 = vld [vmem:[%s2 + $0x140] sm:$0xf]
    %v127 = vld [vmem:[%s2 + $0x144] sm:$0xf]
    %v128 = vld [vmem:[%s2 + $0x148] sm:$0xf]
    %v129 = vld [vmem:[%s2 + $0x14c] sm:$0xf]
    %v130 = vld [vmem:[%s2 + $0x150] sm:$0xf]
    %v131 = vld [vmem:[%s2 + $0x154] sm:$0xf]
    %v132 = vld [vmem:[%s2 + $0x158] sm:$0xf]
    %v133 = vld [vmem:[%s2 + $0x15c] sm:$0xf]
    %v134 = vld [vmem:[%s2 + $0x160] sm:$0xf]
    %v135 = vld [vmem:[%s2 + $0x164] sm:$0xf]
    %v136 = vld [vmem:[%s2 + $0x168] sm:$0xf]
    %v137 = vld [vmem:[%s2 + $0x16c] sm:$0xf]
    %v138 = vld [vmem:[%s2 + $0x170] sm:$0xf]
    %v139 = vld [vmem:[%s2 + $0x174] sm:$0xf]
    %v140 = vld [vmem:[%s2 + $0x178] sm:$0xf]
    %v141 = vld [vmem:[%s2 + $0x17c] sm:$0xf]
    %v142 = vld [vmem:[%s2 + $0x180] sm:$0xf]
    %v143 = vld [vmem:[%s2 + $0x184] sm:$0xf]
    %v144 = vld [vmem:[%s2 + $0x188] sm:$0xf]
    %v145 = vld [vmem:[%s2 + $0x18c] sm:$0xf]
    %v146 = vld [vmem:[%s2 + $0x190] sm:$0xf]
    %v147 = vld [vmem:[%s2 + $0x194] sm:$0xf]
    %v148 = vld [vmem:[%s2 + $0x198] sm:$0xf]
    %v149 = vld [vmem:[%s2 + $0x19c] sm:$0xf]
    %v150 = vld [vmem:[%s2 + $0x1a0] sm:$0xf]
    %v151 = vld [vmem:[%s2 + $0x1a4] sm:$0xf]
    %v152 = vld [vmem:[%s2 + $0x1a8] sm:$0xf]
    %v153 = vld [vmem:[%s2 + $0x1ac] sm:$0xf]
    %v154 = vld [vmem:[%s2 + $0x1b0] sm:$0xf]
    %v155 = vld [vmem:[%s2 + $0x1b4] sm:$0xf]
    %v156 = vld [vmem:[%s2 + $0x1b8] sm:$0xf]
    %v157 = vld [vmem:[%s2 + $0x1bc] sm:$0xf]
    %v158 = vld [vmem:[%s2 + $0x1c0] sm:$0xf]
    %v159 = vld [vmem:[%s2 + $0x1c4] sm:$0xf]
    %v160 = vld [vmem:[%s2 + $0x1c8] sm:$0xf]
    %v161 = vld [vmem:[%s2 + $0x1cc] sm:$0xf]
    %v162 = vld [vmem:[%s2 + $0x1d0] sm:$0xf]
    %v163 = vld [vmem:[%s2 + $0x1d4] sm:$0xf]
    %v164 = vld [vmem:[%s2 + $0x1d8] sm:$0xf]
    %v165 = vld [vmem:[%s2 + $0x1dc] sm:$0xf]
    %v166 = vld [vmem:[%s2 + $0x1e0] sm:$0xf]
    %v167 = vld [vmem:[%s2 + $0x1e4] sm:$0xf]
    %v168 = vld [vmem:[%s2 + $0x1e8] sm:$0xf]
    %v169 = vld [vmem:[%s2 + $0x1ec] sm:$0xf]
    %v170 = vld [vmem:[%s2 + $0x1f0] sm:$0xf]
    %v171 = vld [vmem:[%s2 + $0x1f4] sm:$0xf]
    %v172 = vld [vmem:[%s2 + $0x1f8] sm:$0xf]
    %v173 = vld [vmem:[%s2 + $0x1fc] sm:$0xf]
    %v174 = vld [vmem:[%s2 + $0x200] sm:$0xf]
    %v175 = vld [vmem:[%s2 + $0x204] sm:$0xf]
    %v176 = vld [vmem:[%s2 + $0x208] sm:$0xf]
    %v177 = vld [vmem:[%s2 + $0x20c] sm:$0xf]
    %v178 = vld [vmem:[%s2 + $0x210] sm:$0xf]
    %v179 = vld [vmem:[%s2 + $0x214] sm:$0xf]
    %v180 = vld [vmem:[%s2 + $0x218] sm:$0xf]
    %v181 = vld [vmem:[%s2 + $0x21c] sm:$0xf]
    %v182 = vld [vmem:[%s2 + $0x220] sm:$0xf]
    %v183 = vld [vmem:[%s2 + $0x224] sm:$0xf]
    %v184 = vld [vmem:[%s2 + $0x228] sm:$0xf]
    %v185 = vld [vmem:[%s2 + $0x22c] sm:$0xf]
    %v186 = vld [vmem:[%s2 + $0x230] sm:$0xf]
    %v187 = vld [vmem:[%s2 + $0x234] sm:$0xf]
    %v188 = vld [vmem:[%s2 + $0x238] sm:$0xf]
    %v189 = vld [vmem:[%s2 + $0x23c] sm:$0xf]
    %v190 = vld [vmem:[%s2 + $0x240] sm:$0xf]
    %v191 = vld [vmem:[%s2 + $0x244] sm:$0xf]
    %v192 = vld [vmem:[%s2 + $0x248] sm:$0xf]
    %v193 = vld [vmem:[%s2 + $0x24c] sm:$0xf]
    %v194 = vld [vmem:[%s2 + $0x250] sm:$0xf]
    %v195 = vld [vmem:[%s2 + $0x254] sm:$0xf]
    %v196 = vld [vmem:[%s2 + $0x258] sm:$0xf]
    %v197 = vld [vmem:[%s2 + $0x25c] sm:$0xf]
    %v198 = vld [vmem:[%s2 + $0x260] sm:$0xf]
    %v199 = vld [vmem:[%s2 + $0x264] sm:$0xf]
    %v200 = vld [vmem:[%s2 + $0x268] sm:$0xf]
    %v201 = vld [vmem:[%s2 + $0x26c] sm:$0xf]
    %v202 = vld [vmem:[%s2 + $0x270] sm:$0xf]
    %v203 = vld [vmem:[%s2 + $0x274] sm:$0xf]
    %v204 = vld [vmem:[%s2 + $0x278] sm:$0xf]
    %v205 = vld [vmem:[%s2 + $0x27c] sm:$0xf]
    %v206 = vld [vmem:[%s3] sm:$0x1]
    %v208 = vlaneseq
    %v209 = vshrl.u32 %v208, 7
    %v210 = vsub.s32 0, %v209
    %v211 = vrot.slane %v206, %v210
    %v215 = vcombine.high %v44, %v44
    %v217 = vunpack.c.l.s4 1966171168
    %v218 = vunpack.c.0.s8 %v217
    %v219 = vlaneseq
    %v220 = vshrl.u32 %v219, 7
    %v221 = vsub.s32 %v218, %v220
    %v222 = vrot.slane %v44, %v221
    %v224 = vunpack.c.l.s4 1966171168
    %v225 = vunpack.c.0.s8 %v224
    %v226 = vlaneseq
    %v227 = vshrl.u32 %v226, 7
    %v228 = vsub.s32 %v225, %v227
    %v229 = vrot.slane %v215, %v228
    %v230 = vcombine.high %v222, %v222
    %v231 = vcombine.high %v229, %v229
    %v233 = vunpack.c.l.s4 1966171168
    %v234 = vunpack.c.0.s8 %v233
    %v235 = vlaneseq
    %v236 = vshrl.u32 %v235, 7
    %v237 = vsub.s32 %v234, %v236
    %v238 = vrot.slane %v222, %v237
    %v240 = vunpack.c.l.s4 1966171168
    %v241 = vunpack.c.0.s8 %v240
    %v242 = vlaneseq
    %v243 = vshrl.u32 %v242, 7
    %v244 = vsub.s32 %v241, %v243
    %v245 = vrot.slane %v229, %v244
    %v247 = vunpack.c.l.s4 1966171168
    %v248 = vunpack.c.0.s8 %v247
    %v249 = vlaneseq
    %v250 = vshrl.u32 %v249, 7
    %v251 = vsub.s32 %v248, %v250
    %v252 = vrot.slane %v230, %v251
    %v254 = vunpack.c.l.s4 1966171168
    %v255 = vunpack.c.0.s8 %v254
    %v256 = vlaneseq
    %v257 = vshrl.u32 %v256, 7
    %v258 = vsub.s32 %v255, %v257
    %v259 = vrot.slane %v231, %v258
    %v260 = vcombine.high %v238, %v238
    %v261 = vcombine.high %v245, %v245
    %v262 = vcombine.high %v252, %v252
    %v263 = vcombine.high %v259, %v259
    %v265 = vunpack.c.l.s4 1966171168
    %v266 = vunpack.c.0.s8 %v265
    %v267 = vlaneseq
    %v268 = vshrl.u32 %v267, 7
    %v269 = vsub.s32 %v266, %v268
    %v270 = vrot.slane %v45, %v269
    %v271 = vcombine.high %v270, %v270
    %v273 = vunpack.c.l.s4 1966171168
    %v274 = vunpack.c.0.s8 %v273
    %v275 = vlaneseq
    %v276 = vshrl.u32 %v275, 7
    %v277 = vsub.s32 %v274, %v276
    %v278 = vrot.slane %v270, %v277
    %v280 = vunpack.c.l.s4 1966171168
    %v281 = vunpack.c.0.s8 %v280
    %v282 = vlaneseq
    %v283 = vshrl.u32 %v282, 7
    %v284 = vsub.s32 %v281, %v283
    %v285 = vrot.slane %v271, %v284
    %v456 = vunpack.c.l.b16 %v46
    %v457 = vunpack.c.l.b16 %v47
    %v458 = vunpack.c.l.b16 %v48
    %v459 = vunpack.c.l.b16 %v49
    %v460 = vunpack.c.l.b16 %v50
    %v461 = vunpack.c.l.b16 %v51
    %v462 = vunpack.c.l.b16 %v52
    %v463 = vunpack.c.l.b16 %v53
    %v464 = vunpack.c.l.b16 %v54
    %v465 = vunpack.c.l.b16 %v55
    %v466 = vunpack.c.l.b16 %v56
    %v467 = vunpack.c.l.b16 %v57
    %v468 = vunpack.c.l.b16 %v58
    %v469 = vunpack.c.l.b16 %v59
    %v470 = vunpack.c.l.b16 %v60
    %v471 = vunpack.c.l.b16 %v61
    %v472 = vunpack.c.l.b16 %v62
    %v473 = vunpack.c.l.b16 %v63
    %v474 = vunpack.c.l.b16 %v64
    %v475 = vunpack.c.l.b16 %v65
    %v476 = vunpack.c.l.b16 %v66
    %v477 = vunpack.c.l.b16 %v67
    %v478 = vunpack.c.l.b16 %v68
    %v479 = vunpack.c.l.b16 %v69
    %v480 = vunpack.c.l.b16 %v70
    %v481 = vunpack.c.l.b16 %v71
    %v482 = vunpack.c.l.b16 %v72
    %v483 = vunpack.c.l.b16 %v73
    %v484 = vunpack.c.l.b16 %v74
    %v485 = vunpack.c.l.b16 %v75
    %v486 = vunpack.c.l.b16 %v76
    %v487 = vunpack.c.l.b16 %v77
    %v488 = vunpack.c.l.b16 %v78
    %v489 = vunpack.c.l.b16 %v79
    %v490 = vunpack.c.l.b16 %v80
    %v491 = vunpack.c.l.b16 %v81
    %v492 = vunpack.c.l.b16 %v82
    %v493 = vunpack.c.l.b16 %v83
    %v494 = vunpack.c.l.b16 %v84
    %v495 = vunpack.c.l.b16 %v85
    %v496 = vunpack.c.l.b16 %v86
    %v497 = vunpack.c.l.b16 %v87
    %v498 = vunpack.c.l.b16 %v88
    %v499 = vunpack.c.l.b16 %v89
    %v500 = vunpack.c.l.b16 %v90
    %v501 = vunpack.c.l.b16 %v91
    %v502 = vunpack.c.l.b16 %v92
    %v503 = vunpack.c.l.b16 %v93
    %v504 = vunpack.c.l.b16 %v94
    %v505 = vunpack.c.l.b16 %v95
    %v506 = vunpack.c.l.b16 %v96
    %v507 = vunpack.c.l.b16 %v97
    %v508 = vunpack.c.l.b16 %v98
    %v509 = vunpack.c.l.b16 %v99
    %v510 = vunpack.c.l.b16 %v100
    %v511 = vunpack.c.l.b16 %v101
    %v512 = vunpack.c.l.b16 %v102
    %v513 = vunpack.c.l.b16 %v103
    %v514 = vunpack.c.l.b16 %v104
    %v515 = vunpack.c.l.b16 %v105
    %v516 = vunpack.c.l.b16 %v106
    %v517 = vunpack.c.l.b16 %v107
    %v518 = vunpack.c.l.b16 %v108
    %v519 = vunpack.c.l.b16 %v109
    %v520 = vunpack.c.l.b16 %v110
    %v521 = vunpack.c.l.b16 %v111
    %v522 = vunpack.c.l.b16 %v112
    %v523 = vunpack.c.l.b16 %v113
    %v524 = vunpack.c.l.b16 %v114
    %v525 = vunpack.c.l.b16 %v115
    %v526 = vunpack.c.l.b16 %v116
    %v527 = vunpack.c.l.b16 %v117
    %v528 = vunpack.c.l.b16 %v118
    %v529 = vunpack.c.l.b16 %v119
    %v530 = vunpack.c.l.b16 %v120
    %v531 = vunpack.c.l.b16 %v121
    %v532 = vunpack.c.l.b16 %v122
    %v533 = vunpack.c.l.b16 %v123
    %v534 = vunpack.c.l.b16 %v124
    %v535 = vunpack.c.l.b16 %v125
    %v536 = vunpack.c.l.b16 %v126
    %v537 = vunpack.c.l.b16 %v127
    %v538 = vunpack.c.l.b16 %v128
    %v539 = vunpack.c.l.b16 %v129
    %v540 = vunpack.c.l.b16 %v130
    %v541 = vunpack.c.l.b16 %v131
    %v542 = vunpack.c.l.b16 %v132
    %v543 = vunpack.c.l.b16 %v133
    %v544 = vunpack.c.l.b16 %v134
    %v545 = vunpack.c.l.b16 %v135
    %v546 = vunpack.c.l.b16 %v136
    %v547 = vunpack.c.l.b16 %v137
    %v548 = vunpack.c.l.b16 %v138
    %v549 = vunpack.c.l.b16 %v139
    %v550 = vunpack.c.l.b16 %v140
    %v551 = vunpack.c.l.b16 %v141
    %v552 = vunpack.c.l.b16 %v142
    %v553 = vunpack.c.l.b16 %v143
    %v554 = vunpack.c.l.b16 %v144
    %v555 = vunpack.c.l.b16 %v145
    %v556 = vunpack.c.l.b16 %v146
    %v557 = vunpack.c.l.b16 %v147
    %v558 = vunpack.c.l.b16 %v148
    %v559 = vunpack.c.l.b16 %v149
    %v560 = vunpack.c.l.b16 %v150
    %v561 = vunpack.c.l.b16 %v151
    %v562 = vunpack.c.l.b16 %v152
    %v563 = vunpack.c.l.b16 %v153
    %v564 = vunpack.c.l.b16 %v154
    %v565 = vunpack.c.l.b16 %v155
    %v566 = vunpack.c.l.b16 %v156
    %v567 = vunpack.c.l.b16 %v157
    %v568 = vunpack.c.l.b16 %v158
    %v569 = vunpack.c.l.b16 %v159
    %v570 = vunpack.c.l.b16 %v160
    %v571 = vunpack.c.l.b16 %v161
    %v572 = vunpack.c.l.b16 %v162
    %v573 = vunpack.c.l.b16 %v163
    %v574 = vunpack.c.l.b16 %v164
    %v575 = vunpack.c.l.b16 %v165
    %v576 = vunpack.c.l.b16 %v166
    %v577 = vunpack.c.l.b16 %v167
    %v578 = vunpack.c.l.b16 %v168
    %v579 = vunpack.c.l.b16 %v169
    %v580 = vunpack.c.l.b16 %v170
    %v581 = vunpack.c.l.b16 %v171
    %v582 = vunpack.c.l.b16 %v172
    %v583 = vunpack.c.l.b16 %v173
    %v584 = vunpack.c.l.b16 %v174
    %v585 = vunpack.c.l.b16 %v175
    %v586 = vunpack.c.l.b16 %v176
    %v587 = vunpack.c.l.b16 %v177
    %v588 = vunpack.c.l.b16 %v178
    %v589 = vunpack.c.l.b16 %v179
    %v590 = vunpack.c.l.b16 %v180
    %v591 = vunpack.c.l.b16 %v181
    %v592 = vunpack.c.l.b16 %v182
    %v593 = vunpack.c.l.b16 %v183
    %v594 = vunpack.c.l.b16 %v184
    %v595 = vunpack.c.l.b16 %v185
    %v596 = vunpack.c.l.b16 %v186
    %v597 = vunpack.c.l.b16 %v187
    %v598 = vunpack.c.l.b16 %v188
    %v599 = vunpack.c.l.b16 %v189
    %v600 = vunpack.c.l.b16 %v190
    %v601 = vunpack.c.l.b16 %v191
    %v602 = vunpack.c.l.b16 %v192
    %v603 = vunpack.c.l.b16 %v193
    %v604 = vunpack.c.l.b16 %v194
    %v605 = vunpack.c.l.b16 %v195
    %v606 = vunpack.c.l.b16 %v196
    %v607 = vunpack.c.l.b16 %v197
    %v608 = vunpack.c.l.b16 %v198
    %v609 = vunpack.c.l.b16 %v199
    %v610 = vunpack.c.l.b16 %v200
    %v611 = vunpack.c.l.b16 %v201
    %v612 = vunpack.c.l.b16 %v202
    %v613 = vunpack.c.l.b16 %v203
    %v614 = vunpack.c.l.b16 %v204
    %v615 = vunpack.c.l.b16 %v205
    %v616 = vpack.c.b16 %v457, %v456
    %v617 = vpack.c.b16 %v459, %v458
    %v618 = vpack.c.b16 %v461, %v460
    %v619 = vpack.c.b16 %v463, %v462
    %v620 = vpack.c.b16 %v465, %v464
    %v621 = vpack.c.b16 %v467, %v466
    %v622 = vpack.c.b16 %v469, %v468
    %v623 = vpack.c.b16 %v471, %v470
    %v624 = vpack.c.b16 %v473, %v472
    %v625 = vpack.c.b16 %v475, %v474
    %v626 = vpack.c.b16 %v477, %v476
    %v627 = vpack.c.b16 %v479, %v478
    %v628 = vpack.c.b16 %v481, %v480
    %v629 = vpack.c.b16 %v483, %v482
    %v630 = vpack.c.b16 %v485, %v484
    %v631 = vpack.c.b16 %v487, %v486
    %v632 = vpack.c.b16 %v489, %v488
    %v633 = vpack.c.b16 %v491, %v490
    %v634 = vpack.c.b16 %v493, %v492
    %v635 = vpack.c.b16 %v495, %v494
    %v636 = vpack.c.b16 %v497, %v496
    %v637 = vpack.c.b16 %v499, %v498
    %v638 = vpack.c.b16 %v501, %v500
    %v639 = vpack.c.b16 %v503, %v502
    %v640 = vpack.c.b16 %v505, %v504
    %v641 = vpack.c.b16 %v507, %v506
    %v642 = vpack.c.b16 %v509, %v508
    %v643 = vpack.c.b16 %v511, %v510
    %v644 = vpack.c.b16 %v513, %v512
    %v645 = vpack.c.b16 %v515, %v514
    %v646 = vpack.c.b16 %v517, %v516
    %v647 = vpack.c.b16 %v519, %v518
    %v648 = vpack.c.b16 %v521, %v520
    %v649 = vpack.c.b16 %v523, %v522
    %v650 = vpack.c.b16 %v525, %v524
    %v651 = vpack.c.b16 %v527, %v526
    %v652 = vpack.c.b16 %v529, %v528
    %v653 = vpack.c.b16 %v531, %v530
    %v654 = vpack.c.b16 %v533, %v532
    %v655 = vpack.c.b16 %v535, %v534
    %v656 = vpack.c.b16 %v537, %v536
    %v657 = vpack.c.b16 %v539, %v538
    %v658 = vpack.c.b16 %v541, %v540
    %v659 = vpack.c.b16 %v543, %v542
    %v660 = vpack.c.b16 %v545, %v544
    %v661 = vpack.c.b16 %v547, %v546
    %v662 = vpack.c.b16 %v549, %v548
    %v663 = vpack.c.b16 %v551, %v550
    %v664 = vpack.c.b16 %v553, %v552
    %v665 = vpack.c.b16 %v555, %v554
    %v666 = vpack.c.b16 %v557, %v556
    %v667 = vpack.c.b16 %v559, %v558
    %v668 = vpack.c.b16 %v561, %v560
    %v669 = vpack.c.b16 %v563, %v562
    %v670 = vpack.c.b16 %v565, %v564
    %v671 = vpack.c.b16 %v567, %v566
    %v672 = vpack.c.b16 %v569, %v568
    %v673 = vpack.c.b16 %v571, %v570
    %v674 = vpack.c.b16 %v573, %v572
    %v675 = vpack.c.b16 %v575, %v574
    %v676 = vpack.c.b16 %v577, %v576
    %v677 = vpack.c.b16 %v579, %v578
    %v678 = vpack.c.b16 %v581, %v580
    %v679 = vpack.c.b16 %v583, %v582
    %v680 = vpack.c.b16 %v585, %v584
    %v681 = vpack.c.b16 %v587, %v586
    %v682 = vpack.c.b16 %v589, %v588
    %v683 = vpack.c.b16 %v591, %v590
    %v684 = vpack.c.b16 %v593, %v592
    %v685 = vpack.c.b16 %v595, %v594
    %v686 = vpack.c.b16 %v597, %v596
    %v687 = vpack.c.b16 %v599, %v598
    %v688 = vpack.c.b16 %v601, %v600
    %v689 = vpack.c.b16 %v603, %v602
    %v690 = vpack.c.b16 %v605, %v604
    %v691 = vpack.c.b16 %v607, %v606
    %v692 = vpack.c.b16 %v609, %v608
    %v693 = vpack.c.b16 %v611, %v610
    %v694 = vpack.c.b16 %v613, %v612
    %v695 = vpack.c.b16 %v615, %v614
    %776 = vmatprep.subr.bf16.mxu0 0
    %777 = vmatpush1.bf16.msra.mxu0 %v616
    %778 = vmatprep.subr.bf16.mxu0 0
    %779 = vmatpush1.bf16.msra.mxu0 %v617
    %780 = vmatprep.subr.bf16.mxu0 0
    %781 = vmatpush1.bf16.msra.mxu0 %v618
    %782 = vmatprep.subr.bf16.mxu0 0
    %783 = vmatpush1.bf16.msra.mxu0 %v619
    %784 = vmatprep.subr.bf16.mxu0 0
    %785 = vmatpush1.bf16.msra.mxu0 %v620
    %786 = vmatprep.subr.bf16.mxu0 0
    %787 = vmatpush1.bf16.msra.mxu0 %v621
    %788 = vmatprep.subr.bf16.mxu0 0
    %789 = vmatpush1.bf16.msra.mxu0 %v622
    %790 = vmatprep.subr.bf16.mxu0 0
    %791 = vmatpush1.bf16.msra.mxu0 %v623
    %792 = vmatprep.subr.bf16.mxu0 0
    %793 = vmatpush1.bf16.msra.mxu0 %v624
    %794 = vmatprep.subr.bf16.mxu0 0
    %795 = vmatpush1.bf16.msra.mxu0 %v625
    %796 = vmatprep.subr.bf16.mxu0 0
    %797 = vmatpush1.bf16.msra.mxu0 %v626
    %798 = vmatprep.subr.bf16.mxu0 0
    %799 = vmatpush1.bf16.msra.mxu0 %v627
    %800 = vmatprep.subr.bf16.mxu0 0
    %801 = vmatpush1.bf16.msra.mxu0 %v628
    %802 = vmatprep.subr.bf16.mxu0 0
    %803 = vmatpush1.bf16.msra.mxu0 %v629
    %804 = vmatprep.subr.bf16.mxu0 0
    %805 = vmatpush1.bf16.msra.mxu0 %v630
    %806 = vmatprep.subr.bf16.mxu0 0
    %807 = vmatpush1.bf16.msra.mxu0 %v631
    %808 = vmatprep.mubr.bf16.mxu0 %v252
    %809 = vmatmul.mubr.bf16.gmra.mrb[0].mxu0 %v238
    %v810 = vpop.f32.mrb[0].mxu0
    %v811 = vadd.f32 %v211, %v810
    %v812 = vpop.f32.mrb[0].mxu0
    %v813 = vpop.f32.mrb[0].mxu0
    %v814 = vpop.f32.mrb[0].mxu0
    %815 = vdwg.mxu0
    %816 = vmatprep.subr.bf16.mxu0 0
    %817 = vmatpush1.bf16.msra.mxu0 %v632
    %818 = vmatprep.subr.bf16.mxu0 0
    %819 = vmatpush1.bf16.msra.mxu0 %v633
    %820 = vmatprep.subr.bf16.mxu0 0
    %821 = vmatpush1.bf16.msra.mxu0 %v634
    %822 = vmatprep.subr.bf16.mxu0 0
    %823 = vmatpush1.bf16.msra.mxu0 %v635
    %824 = vmatprep.subr.bf16.mxu0 0
    %825 = vmatpush1.bf16.msra.mxu0 %v636
    %826 = vmatprep.subr.bf16.mxu0 0
    %827 = vmatpush1.bf16.msra.mxu0 %v637
    %828 = vmatprep.subr.bf16.mxu0 0
    %829 = vmatpush1.bf16.msra.mxu0 %v638
    %830 = vmatprep.subr.bf16.mxu0 0
    %831 = vmatpush1.bf16.msra.mxu0 %v639
    %832 = vmatprep.subr.bf16.mxu0 0
    %833 = vmatpush1.bf16.msra.mxu0 %v640
    %834 = vmatprep.subr.bf16.mxu0 0
    %835 = vmatpush1.bf16.msra.mxu0 %v641
    %836 = vmatprep.subr.bf16.mxu0 0
    %837 = vmatpush1.bf16.msra.mxu0 %v642
    %838 = vmatprep.subr.bf16.mxu0 0
    %839 = vmatpush1.bf16.msra.mxu0 %v643
    %840 = vmatprep.subr.bf16.mxu0 0
    %841 = vmatpush1.bf16.msra.mxu0 %v644
    %842 = vmatprep.subr.bf16.mxu0 0
    %843 = vmatpush1.bf16.msra.mxu0 %v645
    %844 = vmatprep.subr.bf16.mxu0 0
    %845 = vmatpush1.bf16.msra.mxu0 %v646
    %846 = vmatprep.subr.bf16.mxu0 0
    %847 = vmatpush1.bf16.msra.mxu0 %v647
    %848 = vmatprep.mubr.bf16.mxu0 %v262
    %849 = vmatmul.mubr.bf16.gmra.mrb[0].mxu0 %v260
    %v850 = vpop.f32.mrb[0].mxu0
    %v851 = vadd.f32 %v811, %v850
    %v852 = vpop.f32.mrb[0].mxu0
    %v853 = vpop.f32.mrb[0].mxu0
    %v854 = vpop.f32.mrb[0].mxu0
    %855 = vdwg.mxu0
    %856 = vmatprep.subr.bf16.mxu0 0
    %857 = vmatpush1.bf16.msra.mxu0 %v648
    %858 = vmatprep.subr.bf16.mxu0 0
    %859 = vmatpush1.bf16.msra.mxu0 %v649
    %860 = vmatprep.subr.bf16.mxu0 0
    %861 = vmatpush1.bf16.msra.mxu0 %v650
    %862 = vmatprep.subr.bf16.mxu0 0
    %863 = vmatpush1.bf16.msra.mxu0 %v651
    %864 = vmatprep.subr.bf16.mxu0 0
    %865 = vmatpush1.bf16.msra.mxu0 %v652
    %866 = vmatprep.subr.bf16.mxu0 0
    %867 = vmatpush1.bf16.msra.mxu0 %v653
    %868 = vmatprep.subr.bf16.mxu0 0
    %869 = vmatpush1.bf16.msra.mxu0 %v654
    %870 = vmatprep.subr.bf16.mxu0 0
    %871 = vmatpush1.bf16.msra.mxu0 %v655
    %872 = vmatprep.subr.bf16.mxu0 0
    %873 = vmatpush1.bf16.msra.mxu0 %v656
    %874 = vmatprep.subr.bf16.mxu0 0
    %875 = vmatpush1.bf16.msra.mxu0 %v657
    %876 = vmatprep.subr.bf16.mxu0 0
    %877 = vmatpush1.bf16.msra.mxu0 %v658
    %878 = vmatprep.subr.bf16.mxu0 0
    %879 = vmatpush1.bf16.msra.mxu0 %v659
    %880 = vmatprep.subr.bf16.mxu0 0
    %881 = vmatpush1.bf16.msra.mxu0 %v660
    %882 = vmatprep.subr.bf16.mxu0 0
    %883 = vmatpush1.bf16.msra.mxu0 %v661
    %884 = vmatprep.subr.bf16.mxu0 0
    %885 = vmatpush1.bf16.msra.mxu0 %v662
    %886 = vmatprep.subr.bf16.mxu0 0
    %887 = vmatpush1.bf16.msra.mxu0 %v663
    %888 = vmatprep.mubr.bf16.mxu0 %v259
    %889 = vmatmul.mubr.bf16.gmra.mrb[0].mxu0 %v245
    %v890 = vpop.f32.mrb[0].mxu0
    %v891 = vadd.f32 %v851, %v890
    %v892 = vpop.f32.mrb[0].mxu0
    %v893 = vpop.f32.mrb[0].mxu0
    %v894 = vpop.f32.mrb[0].mxu0
    %895 = vdwg.mxu0
    %896 = vmatprep.subr.bf16.mxu0 0
    %897 = vmatpush1.bf16.msra.mxu0 %v664
    %898 = vmatprep.subr.bf16.mxu0 0
    %899 = vmatpush1.bf16.msra.mxu0 %v665
    %900 = vmatprep.subr.bf16.mxu0 0
    %901 = vmatpush1.bf16.msra.mxu0 %v666
    %902 = vmatprep.subr.bf16.mxu0 0
    %903 = vmatpush1.bf16.msra.mxu0 %v667
    %904 = vmatprep.subr.bf16.mxu0 0
    %905 = vmatpush1.bf16.msra.mxu0 %v668
    %906 = vmatprep.subr.bf16.mxu0 0
    %907 = vmatpush1.bf16.msra.mxu0 %v669
    %908 = vmatprep.subr.bf16.mxu0 0
    %909 = vmatpush1.bf16.msra.mxu0 %v670
    %910 = vmatprep.subr.bf16.mxu0 0
    %911 = vmatpush1.bf16.msra.mxu0 %v671
    %912 = vmatprep.subr.bf16.mxu0 0
    %913 = vmatpush1.bf16.msra.mxu0 %v672
    %914 = vmatprep.subr.bf16.mxu0 0
    %915 = vmatpush1.bf16.msra.mxu0 %v673
    %916 = vmatprep.subr.bf16.mxu0 0
    %917 = vmatpush1.bf16.msra.mxu0 %v674
    %918 = vmatprep.subr.bf16.mxu0 0
    %919 = vmatpush1.bf16.msra.mxu0 %v675
    %920 = vmatprep.subr.bf16.mxu0 0
    %921 = vmatpush1.bf16.msra.mxu0 %v676
    %922 = vmatprep.subr.bf16.mxu0 0
    %923 = vmatpush1.bf16.msra.mxu0 %v677
    %924 = vmatprep.subr.bf16.mxu0 0
    %925 = vmatpush1.bf16.msra.mxu0 %v678
    %926 = vmatprep.subr.bf16.mxu0 0
    %927 = vmatpush1.bf16.msra.mxu0 %v679
    %928 = vmatprep.mubr.bf16.mxu0 %v263
    %929 = vmatmul.mubr.bf16.gmra.mrb[0].mxu0 %v261
    %v930 = vpop.f32.mrb[0].mxu0
    %v931 = vadd.f32 %v891, %v930
    %v932 = vpop.f32.mrb[0].mxu0
    %v933 = vpop.f32.mrb[0].mxu0
    %v934 = vpop.f32.mrb[0].mxu0
    %935 = vdwg.mxu0
    %936 = vmatprep.subr.bf16.mxu0 0
    %937 = vmatpush1.bf16.msra.mxu0 %v680
    %938 = vmatprep.subr.bf16.mxu0 0
    %939 = vmatpush1.bf16.msra.mxu0 %v681
    %940 = vmatprep.subr.bf16.mxu0 0
    %941 = vmatpush1.bf16.msra.mxu0 %v682
    %942 = vmatprep.subr.bf16.mxu0 0
    %943 = vmatpush1.bf16.msra.mxu0 %v683
    %944 = vmatprep.subr.bf16.mxu0 0
    %945 = vmatpush1.bf16.msra.mxu0 %v684
    %946 = vmatprep.subr.bf16.mxu0 0
    %947 = vmatpush1.bf16.msra.mxu0 %v685
    %948 = vmatprep.subr.bf16.mxu0 0
    %949 = vmatpush1.bf16.msra.mxu0 %v686
    %950 = vmatprep.subr.bf16.mxu0 0
    %951 = vmatpush1.bf16.msra.mxu0 %v687
    %952 = vmatprep.subr.bf16.mxu0 0
    %953 = vmatpush1.bf16.msra.mxu0 %v688
    %954 = vmatprep.subr.bf16.mxu0 0
    %955 = vmatpush1.bf16.msra.mxu0 %v689
    %956 = vmatprep.subr.bf16.mxu0 0
    %957 = vmatpush1.bf16.msra.mxu0 %v690
    %958 = vmatprep.subr.bf16.mxu0 0
    %959 = vmatpush1.bf16.msra.mxu0 %v691
    %960 = vmatprep.subr.bf16.mxu0 0
    %961 = vmatpush1.bf16.msra.mxu0 %v692
    %962 = vmatprep.subr.bf16.mxu0 0
    %963 = vmatpush1.bf16.msra.mxu0 %v693
    %964 = vmatprep.subr.bf16.mxu0 0
    %965 = vmatpush1.bf16.msra.mxu0 %v694
    %966 = vmatprep.subr.bf16.mxu0 0
    %967 = vmatpush1.bf16.msra.mxu0 %v695
    %968 = vmatprep.mubr.bf16.mxu0 %v285
    %969 = vmatmul.mubr.bf16.gmra.mrb[0].mxu0 %v278
    %v970 = vpop.f32.mrb[0].mxu0
    %v971 = vadd.f32 %v931, %v970
    %v972 = vpop.f32.mrb[0].mxu0
    %v973 = vpop.f32.mrb[0].mxu0
    %v974 = vpop.f32.mrb[0].mxu0
    %975 = vdwg.mxu0
    %vm976 = vcmp.ge.f32.partialorder %v971, 0.0
    %s977 = sld [smem:[#allocation2]]
    %v978 = vstv %s977
    %v979 = vmul.f32 %v978, %v971
    %v980 = vsel %vm976, %v971, %v979
    %v981 = vpack.c.bf16 %v980, %v980
    %v982 = vld [vmem:[%s4] sm:$0xf]
    %v983 = vld [vmem:[%s4 + $0x4] sm:$0xf]
    %v984 = vld [vmem:[%s4 + $0x8] sm:$0xf]
    %v985 = vld [vmem:[%s4 + $0xc] sm:$0xf]
    %v986 = vld [vmem:[%s4 + $0x10] sm:$0xf]
    %v987 = vld [vmem:[%s4 + $0x14] sm:$0xf]
    %v988 = vld [vmem:[%s4 + $0x18] sm:$0xf]
    %v989 = vld [vmem:[%s4 + $0x1c] sm:$0xf]
    %v990 = vld [vmem:[%s4 + $0x20] sm:$0xf]
    %v991 = vld [vmem:[%s4 + $0x24] sm:$0xf]
    %v992 = vld [vmem:[%s4 + $0x28] sm:$0xf]
    %v993 = vld [vmem:[%s4 + $0x2c] sm:$0xf]
    %v994 = vld [vmem:[%s4 + $0x30] sm:$0xf]
    %v995 = vld [vmem:[%s4 + $0x34] sm:$0xf]
    %v996 = vld [vmem:[%s4 + $0x38] sm:$0xf]
    %v997 = vld [vmem:[%s4 + $0x3c] sm:$0xf]
    %v998 = vld [vmem:[%s5] sm:$0x1]
    %v1000 = vlaneseq
    %v1001 = vshrl.u32 %v1000, 7
    %v1002 = vsub.s32 0, %v1001
    %v1003 = vrot.slane %v998, %v1002
    %v1021 = vunpack.c.l.b16 %v982
    %v1022 = vunpack.c.l.b16 %v983
    %v1023 = vunpack.c.l.b16 %v984
    %v1024 = vunpack.c.l.b16 %v985
    %v1025 = vunpack.c.l.b16 %v986
    %v1026 = vunpack.c.l.b16 %v987
    %v1027 = vunpack.c.l.b16 %v988
    %v1028 = vunpack.c.l.b16 %v989
    %v1029 = vunpack.c.l.b16 %v990
    %v1030 = vunpack.c.l.b16 %v991
    %v1031 = vunpack.c.l.b16 %v992
    %v1032 = vunpack.c.l.b16 %v993
    %v1033 = vunpack.c.l.b16 %v994
    %v1034 = vunpack.c.l.b16 %v995
    %v1035 = vunpack.c.l.b16 %v996
    %v1036 = vunpack.c.l.b16 %v997
    %v1037 = vpack.c.b16 %v1022, %v1021
    %v1038 = vpack.c.b16 %v1024, %v1023
    %v1039 = vpack.c.b16 %v1026, %v1025
    %v1040 = vpack.c.b16 %v1028, %v1027
    %v1041 = vpack.c.b16 %v1030, %v1029
    %v1042 = vpack.c.b16 %v1032, %v1031
    %v1043 = vpack.c.b16 %v1034, %v1033
    %v1044 = vpack.c.b16 %v1036, %v1035
    %1053 = vmatprep.subr.bf16.mxu0 0
    %1054 = vmatpush1.bf16.msra.mxu0 %v1037
    %1055 = vmatprep.subr.bf16.mxu0 0
    %1056 = vmatpush1.bf16.msra.mxu0 %v1038
    %1057 = vmatprep.subr.bf16.mxu0 0
    %1058 = vmatpush1.bf16.msra.mxu0 %v1039
    %1059 = vmatprep.subr.bf16.mxu0 0
    %1060 = vmatpush1.bf16.msra.mxu0 %v1040
    %1061 = vmatprep.subr.bf16.mxu0 0
    %1062 = vmatpush1.bf16.msra.mxu0 %v1041
    %1063 = vmatprep.subr.bf16.mxu0 0
    %1064 = vmatpush1.bf16.msra.mxu0 %v1042
    %1065 = vmatprep.subr.bf16.mxu0 0
    %1066 = vmatpush1.bf16.msra.mxu0 %v1043
    %1067 = vmatprep.subr.bf16.mxu0 0
    %1068 = vmatpush1.bf16.msra.mxu0 %v1044
    %1069 = vmatprep.subr.bf16.mxu0 0
    %1070 = vmatpush1.bf16.msra.mxu0 0
    %1071 = vmatprep.subr.bf16.mxu0 0
    %1072 = vmatpush1.bf16.msra.mxu0 0
    %1073 = vmatprep.subr.bf16.mxu0 0
    %1074 = vmatpush1.bf16.msra.mxu0 0
    %1075 = vmatprep.subr.bf16.mxu0 0
    %1076 = vmatpush1.bf16.msra.mxu0 0
    %1077 = vmatprep.subr.bf16.mxu0 0
    %1078 = vmatpush1.bf16.msra.mxu0 0
    %1079 = vmatprep.subr.bf16.mxu0 0
    %1080 = vmatpush1.bf16.msra.mxu0 0
    %1081 = vmatprep.subr.bf16.mxu0 0
    %1082 = vmatpush1.bf16.msra.mxu0 0
    %1083 = vmatprep.subr.bf16.mxu0 0
    %1084 = vmatpush1.bf16.msra.mxu0 0
    %1085 = vmatprep.mubr.bf16.mxu0 0
    %1086 = vmatmul.mubr.bf16.gmra.mrb[0].mxu0 %v981
    %v1087 = vpop.f32.mrb[0].mxu0
    %v1088 = vadd.f32 %v1003, %v1087
    %v1089 = vpop.f32.mrb[0].mxu0
    %v1090 = vpop.f32.mrb[0].mxu0
    %v1091 = vpop.f32.mrb[0].mxu0
    %1092 = vdwg.mxu0
    %vm1093 = vcmp.ge.f32.partialorder %v1088, 0.0
    %s1094 = sld [smem:[#allocation2 + $0x1]]
    %v1095 = vstv %s1094
    %v1096 = vmul.f32 %v1095, %v1088
    %v1097 = vsel %vm1093, %v1088, %v1096
    %v1098 = vpack.c.bf16 %v1097, %v1097
    %v1099 = vld [vmem:[%s6] sm:$0xf]
    %v1100 = vld [vmem:[%s6 + $0x4] sm:$0xf]
    %v1101 = vld [vmem:[%s6 + $0x8] sm:$0xf]
    %v1102 = vld [vmem:[%s6 + $0xc] sm:$0xf]
    %v1103 = vld [vmem:[%s6 + $0x10] sm:$0xf]
    %v1104 = vld [vmem:[%s6 + $0x14] sm:$0xf]
    %v1105 = vld [vmem:[%s6 + $0x18] sm:$0xf]
    %v1106 = vld [vmem:[%s6 + $0x1c] sm:$0xf]
    %v1107 = vld [vmem:[%s6 + $0x20] sm:$0xf]
    %v1108 = vld [vmem:[%s6 + $0x24] sm:$0xf]
    %v1109 = vld [vmem:[%s6 + $0x28] sm:$0xf]
    %v1110 = vld [vmem:[%s6 + $0x2c] sm:$0xf]
    %v1111 = vld [vmem:[%s6 + $0x30] sm:$0xf]
    %v1112 = vld [vmem:[%s6 + $0x34] sm:$0xf]
    %v1113 = vld [vmem:[%s6 + $0x38] sm:$0xf]
    %v1114 = vld [vmem:[%s6 + $0x3c] sm:$0xf]
    %v1115 = vld [vmem:[%s7] sm:$0x1]
    %v1117 = vlaneseq
    %v1118 = vshrl.u32 %v1117, 7
    %v1119 = vsub.s32 0, %v1118
    %v1120 = vrot.slane %v1115, %v1119
    %v1138 = vunpack.c.l.b16 %v1099
    %v1139 = vunpack.c.l.b16 %v1100
    %v1140 = vunpack.c.l.b16 %v1101
    %v1141 = vunpack.c.l.b16 %v1102
    %v1142 = vunpack.c.l.b16 %v1103
    %v1143 = vunpack.c.l.b16 %v1104
    %v1144 = vunpack.c.l.b16 %v1105
    %v1145 = vunpack.c.l.b16 %v1106
    %v1146 = vunpack.c.l.b16 %v1107
    %v1147 = vunpack.c.l.b16 %v1108
    %v1148 = vunpack.c.l.b16 %v1109
    %v1149 = vunpack.c.l.b16 %v1110
    %v1150 = vunpack.c.l.b16 %v1111
    %v1151 = vunpack.c.l.b16 %v1112
    %v1152 = vunpack.c.l.b16 %v1113
    %v1153 = vunpack.c.l.b16 %v1114
    %v1154 = vpack.c.b16 %v1139, %v1138
    %v1155 = vpack.c.b16 %v1141, %v1140
    %v1156 = vpack.c.b16 %v1143, %v1142
    %v1157 = vpack.c.b16 %v1145, %v1144
    %v1158 = vpack.c.b16 %v1147, %v1146
    %v1159 = vpack.c.b16 %v1149, %v1148
    %v1160 = vpack.c.b16 %v1151, %v1150
    %v1161 = vpack.c.b16 %v1153, %v1152
    %1170 = vmatprep.subr.bf16.mxu0 0
    %1171 = vmatpush1.bf16.msra.mxu0 %v1154
    %1172 = vmatprep.subr.bf16.mxu0 0
    %1173 = vmatpush1.bf16.msra.mxu0 %v1155
    %1174 = vmatprep.subr.bf16.mxu0 0
    %1175 = vmatpush1.bf16.msra.mxu0 %v1156
    %1176 = vmatprep.subr.bf16.mxu0 0
    %1177 = vmatpush1.bf16.msra.mxu0 %v1157
    %1178 = vmatprep.subr.bf16.mxu0 0
    %1179 = vmatpush1.bf16.msra.mxu0 %v1158
    %1180 = vmatprep.subr.bf16.mxu0 0
    %1181 = vmatpush1.bf16.msra.mxu0 %v1159
    %1182 = vmatprep.subr.bf16.mxu0 0
    %1183 = vmatpush1.bf16.msra.mxu0 %v1160
    %1184 = vmatprep.subr.bf16.mxu0 0
    %1185 = vmatpush1.bf16.msra.mxu0 %v1161
    %1186 = vmatprep.subr.bf16.mxu0 0
    %1187 = vmatpush1.bf16.msra.mxu0 0
    %1188 = vmatprep.subr.bf16.mxu0 0
    %1189 = vmatpush1.bf16.msra.mxu0 0
    %1190 = vmatprep.subr.bf16.mxu0 0
    %1191 = vmatpush1.bf16.msra.mxu0 0
    %1192 = vmatprep.subr.bf16.mxu0 0
    %1193 = vmatpush1.bf16.msra.mxu0 0
    %1194 = vmatprep.subr.bf16.mxu0 0
    %1195 = vmatpush1.bf16.msra.mxu0 0
    %1196 = vmatprep.subr.bf16.mxu0 0
    %1197 = vmatpush1.bf16.msra.mxu0 0
    %1198 = vmatprep.subr.bf16.mxu0 0
    %1199 = vmatpush1.bf16.msra.mxu0 0
    %1200 = vmatprep.subr.bf16.mxu0 0
    %1201 = vmatpush1.bf16.msra.mxu0 0
    %1202 = vmatprep.mubr.bf16.mxu0 0
    %1203 = vmatmul.mubr.bf16.gmra.mrb[0].mxu0 %v1098
    %v1204 = vpop.f32.mrb[0].mxu0
    %v1205 = vadd.f32 %v1120, %v1204
    %v1206 = vpop.f32.mrb[0].mxu0
    %v1207 = vpop.f32.mrb[0].mxu0
    %v1208 = vpop.f32.mrb[0].mxu0
    %1209 = vdwg.mxu0
    %vm1210 = vcmask 336896
    %1211 = vst.msk [vmem:[#allocation5] sm:$0x3] %vm1210, %v1205
    // Predicated region
    $region38: #{net_forward.21} parent=1 // pred_check
      _
    $region39: #{net_forward.21} parent=1 // pred_check_branch
      %1213 = sbr.rel (0) target = $region41
    $region40: #{net_forward.21} parent=1 // pred_region
      %s1215 = ssub.s32 32, 32
      %1216 = vsyncadd [#allocation3], %s1215
      %s1218 = sshll.u32 [#allocation5], 4
      %s1219 = int_to_ptr.vmem [resolvable:$true] %s1218
      %1221 = dma.vmem_to_hbm [thread:$0]  %s1219, 32, %s8, [#allocation3]
    $region41: #{net_forward.21} parent=1 // pred_fallthru
      _
    // Predicated region
    $region42: #{net_forward.21} parent=1 // pred_check
      _
    $region43: #{net_forward.21} parent=1 // pred_check_branch
      %1223 = sbr.rel (0) target = $region45
    $region44: #{net_forward.21} parent=1 // pred_region
      %1224 = dma.done [#allocation3], 32
    $region45: #{net_forward.21} parent=1 // pred_fallthru
      _
    %1225 = vsyncpa [#allocation3], 1
    %1226 = vsyncpa [#allocation4], 1

</llo_original>
